<compile_context>
chip_gen: v6e
topology: v6e:2x2x1
jax: 0.10.0
libtpu: 0.0.40
codegen_flags: <defaults>
</compile_context>

<pallas_src>
import functools

import jax
import jax.numpy as jnp
from jax import lax
from jax.experimental import pallas as pl
from jax.experimental.pallas import tpu as pltpu


# ----------------------------------------------------------------------------
# Kernel A: fused conv1 (im2col matmul) + bias + ReLU + 2x2 max-pool
#   p_ref: (4*N*144, 25) bf16 patches, the 4 pool offsets stacked along rows
#   w_ref: (25, 20) bf16, b_ref: (1, 20) f32
#   o_ref: (N*144, 20) f32, rows ordered (n, ph, pw)
# ----------------------------------------------------------------------------

def _conv_pool_kernel(p_ref, w_ref, b_ref, o_ref, *, rows):
    c = jnp.dot(p_ref[...], w_ref[...], preferred_element_type=jnp.float32)
    m = jnp.maximum(jnp.maximum(c[0 * rows:1 * rows], c[1 * rows:2 * rows]),
                    jnp.maximum(c[2 * rows:3 * rows], c[3 * rows:4 * rows]))
    o_ref[...] = jnp.maximum(m + b_ref[...], 0.0)


# ----------------------------------------------------------------------------
# Kernel B: attention heads + LayerNorm + fc2 + log_softmax,
#           head-conv matmul pipelined over a K-reduction grid axis.
# ----------------------------------------------------------------------------

def _heads_tail_kernel(xsplit_ref, wc_ref, f_ref, wa_ref, ba_ref, vblk_ref,
                       bv_ref, ea_ref, ef_ref, sel_ref, projblk_ref, pb_ref,
                       bc_ref, maskT_ref, mask_ref, lnw_ref, lnb_ref,
                       w2_ref, b2_ref, o_ref, acc_ref,
                       *, batch, positions, out_dim, lam, gamma,
                       hard_max, use_ln, eps):
    f32 = jnp.float32
    bf16 = jnp.bfloat16
    k = pl.program_id(0)
    nk = pl.num_programs(0)

    # ---- k == 0: attention branch (overlaps later wc-chunk DMAs) ----------
    @pl.when(k == 0)
    def _():
        fb = f_ref[...]                                          # (B*P, 20) bf16
        hid = jnp.tanh(jnp.dot(fb, wa_ref[...],
                               preferred_element_type=f32) + ba_ref[...])
        scores = (jnp.dot(hid.astype(bf16), vblk_ref[...],
                          preferred_element_type=f32) + bv_ref[...]) * lam

        # per-sample softmax / hard-max over positions (static unroll, B small)
        a_rows = []
        for i in range(batch):
            s_i = scores[i * positions:(i + 1) * positions, :]   # (P, H)
            m_i = jnp.max(s_i, axis=0, keepdims=True)
            if hard_max:
                # TODO(synk): tie-averaged hard max; verify vs the PyTorch
                # ConvAddAttention max_type='max' semantics (source missing).
                one = (s_i >= m_i).astype(f32)
                a_i = one / jnp.sum(one, axis=0, keepdims=True)
            else:
                e_i = jnp.exp(s_i - m_i)
                a_i = e_i / jnp.sum(e_i, axis=0, keepdims=True)
            a_rows.append(a_i)
        a_all = jnp.concatenate(a_rows, axis=0).astype(bf16)     # (B*P, H)

        # attention pooling + per-head projection as lane-dense matmuls:
        #   A_exp[p, h*20+c] = a[p, h]      F_exp[p, h*20+c] = f[p, c]
        #   af  = sel @ (A_exp * F_exp)               -> (B, H*20)
        #   att = af  @ blockdiag(proj_1..proj_H)     -> (B, 500)
        a_exp = jnp.dot(a_all, ea_ref[...], preferred_element_type=f32)
        f_exp = jnp.dot(fb, ef_ref[...], preferred_element_type=f32)
        af = jnp.dot(sel_ref[...], (a_exp * f_exp).astype(bf16),
                     preferred_element_type=f32)
        att = jnp.dot(af.astype(bf16), projblk_ref[...],
                      preferred_element_type=f32)                # (B, 500)
        acc_ref[...] = bc_ref[...] + gamma * (att + pb_ref[...])

    # ---- every k: accumulate one 720-row chunk of the head-conv matmul ----
    acc_ref[...] += jnp.dot(xsplit_ref[0], wc_ref[...],
                            preferred_element_type=f32)

    # ---- k == last: per-head LayerNorm + ReLU + fc2 + log_softmax ---------
    @pl.when(k == nk - 1)
    def _():
        out = acc_ref[...]
        if use_ln:
            # per-head LayerNorm via segment-mask matmuls (no reshapes).
            # TODO(synk): DEFAULT MXU precision may truncate these f32
            # operands to bf16; use precision=HIGHEST if exact LN stats are
            # required.
            inv_d = 1.0 / out_dim
            seg_mean = jnp.dot(out, maskT_ref[...],
                               preferred_element_type=f32) * inv_d
            xc = out - jnp.dot(seg_mean, mask_ref[...],
                               preferred_element_type=f32)
            seg_var = jnp.dot(xc * xc, maskT_ref[...],
                              preferred_element_type=f32) * inv_d
            var_b = jnp.dot(seg_var, mask_ref[...],
                            preferred_element_type=f32)
            out = xc * lax.rsqrt(var_b + eps) * lnw_ref[...] + lnb_ref[...]

        h2 = jnp.maximum(out, 0.0)
        logits = jnp.dot(h2.astype(bf16), w2_ref[...],
                         preferred_element_type=f32) + b2_ref[...]
        m = jnp.max(logits, axis=-1, keepdims=True)
        s = logits - m
        o_ref[...] = s - jnp.log(jnp.sum(jnp.exp(s), axis=-1, keepdims=True))


# ----------------------------------------------------------------------------
# The network
# ----------------------------------------------------------------------------

class PallasNet:
    def __init__(self, key, max_type="softmax", layer_norm_flag=True,
                 lam=1.0, gamma=1.0, head_cnt=4, att_hidden=32):
        assert 500 % head_cnt == 0
        self.max_type = max_type
        self.layer_norm_flag = bool(layer_norm_flag)
        self.lam = float(lam)
        self.gamma = float(gamma)
        self.head_cnt = head_cnt
        self.att_hidden = att_hidden
        self.out_dim = 500 // head_cnt

        kdim = 12 * 12 * 20                       # 2880
        self.k_chunks = 4
        assert kdim % self.k_chunks == 0
        self.chunk = kdim // self.k_chunks        # 720 (multiple of 16 -> bf16 tiles)

        def nrm(k, shape, scale=0.05):
            return scale * jax.random.normal(k, shape, dtype=jnp.float32)

        keys = jax.random.split(key, 2 + head_cnt)

        # conv1: (20, 1, 5, 5) -> (25, 20) im2col matmul weight (bf16 on MXU)
        conv1_w = nrm(keys[0], (20, 1, 5, 5))
        self.w1_mat = conv1_w.reshape(20, 25).T.astype(jnp.bfloat16)   # (25, 20)
        self.b1 = jnp.zeros((1, 20), jnp.float32)

        # fc2
        self.fc2_w = nrm(keys[1], (500, 10)).astype(jnp.bfloat16)
        self.fc2_b = jnp.zeros((1, 10), jnp.float32)

        # per-head params, pre-permuted / stacked at init (no per-call work)
        wc_blocks, wa_blocks = [], []
        vblk = jnp.zeros((head_cnt * att_hidden, head_cnt), jnp.float32)
        projblk = jnp.zeros((head_cnt * 20, 500), jnp.float32)
        for h in range(head_cnt):
            hk = jax.random.split(keys[2 + h], 4)
            conv_w = nrm(hk[0], (self.out_dim, 20, 12, 12))     # (f, c, kh, kw)
            # rows ordered (kh, kw, c) to match the pooled activation layout
            wc_blocks.append(conv_w.transpose(2, 3, 1, 0).reshape(kdim, self.out_dim))
            wa_blocks.append(nrm(hk[1], (20, att_hidden)))
            vblk = vblk.at[h * att_hidden:(h + 1) * att_hidden, h].set(
                nrm(hk[2], (att_hidden,)))
            projblk = projblk.at[h * 20:(h + 1) * 20,
                                 h * self.out_dim:(h + 1) * self.out_dim].set(
                nrm(hk[3], (20, self.out_dim)))

        self.wc = jnp.concatenate(wc_blocks, axis=1).astype(jnp.bfloat16)  # (2880, 500)
        self.bc = jnp.zeros((1, 500), jnp.float32)
        self.wa = jnp.concatenate(wa_blocks, axis=1).astype(jnp.bfloat16)  # (20, 128)
        self.ba = jnp.zeros((1, head_cnt * att_hidden), jnp.float32)
        self.vblk = vblk.astype(jnp.bfloat16)                              # (128, 4)
        self.bv = jnp.zeros((1, head_cnt), jnp.float32)
        self.projblk = projblk.astype(jnp.bfloat16)                        # (80, 500)
        self.pb = jnp.zeros((1, 500), jnp.float32)

        # expansion matrices for the attention-pooling outer product
        self.expand_a = jnp.kron(jnp.eye(head_cnt, dtype=jnp.float32),
                                 jnp.ones((1, 20), jnp.float32)
                                 ).astype(jnp.bfloat16)                    # (H, H*20)
        self.expand_f = jnp.tile(jnp.eye(20, dtype=jnp.float32),
                                 (1, head_cnt)).astype(jnp.bfloat16)       # (20, H*20)

        # per-head segment indicators (used for LayerNorm statistics)
        seg = jnp.arange(500) // self.out_dim
        self.mask = (seg[None, :] == jnp.arange(head_cnt)[:, None]
                     ).astype(jnp.float32)                                 # (H, 500)
        self.maskT = self.mask.T                                           # (500, H)
        self.lnw = jnp.ones((1, 500), jnp.float32)
        self.lnb = jnp.zeros((1, 500), jnp.float32)

    def __call__(self, x):
        """x: (N, 1, 28, 28) float32 NCHW -> log-probs (N, 10)."""
        n, c, hgt, wid = x.shape
        assert (c, hgt, wid) == (1, 28, 28)
        oh = hgt - 5 + 1          # 24
        ph = oh // 2              # 12
        pos = ph * ph             # 144
        rows = n * pos            # multiple of 8 (pos == 144)

        # ---- XLA glue: im2col patches, 4 pool offsets stacked along rows ---
        # TODO(synk): for large batches move im2col into kernel A (DMA raw
        # images, build the 25 taps with shifted slices in-kernel).
        xs = x[:, 0, :, :]                                       # (N, 28, 28)
        cols = [xs[:, ky:ky + oh, kx:kx + oh]
                for ky in range(5) for kx in range(5)]
        allp = jnp.stack(cols, axis=-1)                          # (N, 24, 24, 25)
        pcat = jnp.concatenate(
            [allp[:, dy::2, dx::2, :].reshape(rows, 25)
             for dy in (0, 1) for dx in (0, 1)],
            axis=0).astype(jnp.bfloat16)                         # (4*rows, 25)

        # ---- Kernel A: fused conv1 + ReLU + max-pool ------------------------
        pooled = pl.pallas_call(
            functools.partial(_conv_pool_kernel, rows=rows),
            out_shape=jax.ShapeDtypeStruct((rows, 20), jnp.float32),
            grid=(1,),
            in_specs=[pl.BlockSpec((4 * rows, 25), lambda i: (0, 0)),
                      pl.BlockSpec((25, 20), lambda i: (0, 0)),
                      pl.BlockSpec((1, 20), lambda i: (0, 0))],
            out_specs=pl.BlockSpec((rows, 20), lambda i: (0, 0)),
            compiler_params=pltpu.CompilerParams(
                dimension_semantics=("arbitrary",)),
        )(pcat, self.w1_mat, self.b1)                            # (rows, 20) f32

        # ---- Kernel B inputs -------------------------------------------------
        f_bf16 = pooled.astype(jnp.bfloat16)                     # (rows, 20)
        # (N, 2880) split into k_chunks K-chunks, chunk-major for the grid axis
        x_split = f_bf16.reshape(n, self.k_chunks, self.chunk
                                 ).transpose(1, 0, 2)            # (4, N, 720)
        sel_mat = jnp.repeat(jnp.eye(n, dtype=jnp.float32), pos,
                             axis=1).astype(jnp.bfloat16)        # (N, N*pos)

        kern = functools.partial(
            _heads_tail_kernel, batch=n, positions=pos,
            out_dim=self.out_dim, lam=self.lam, gamma=self.gamma,
            hard_max=(self.max_type == "max"),
            use_ln=self.layer_norm_flag, eps=1e-5)

        def full(a):
            return pl.BlockSpec(a.shape, lambda k, nd=a.ndim: (0,) * nd)

        return pl.pallas_call(
            kern,
            out_shape=jax.ShapeDtypeStruct((n, 10), jnp.float32),
            grid=(self.k_chunks,),
            in_specs=[
                pl.BlockSpec((1, n, self.chunk), lambda k: (k, 0, 0)),   # x_split
                pl.BlockSpec((self.chunk, 500), lambda k: (k, 0)),       # wc chunk
                full(f_bf16), full(self.wa), full(self.ba), full(self.vblk),
                full(self.bv), full(self.expand_a), full(self.expand_f),
                full(sel_mat), full(self.projblk), full(self.pb),
                full(self.bc), full(self.maskT), full(self.mask),
                full(self.lnw), full(self.lnb), full(self.fc2_w),
                full(self.fc2_b),
            ],
            out_specs=pl.BlockSpec((n, 10), lambda k: (0, 0)),
            scratch_shapes=[pltpu.VMEM((n, 500), jnp.float32)],
            compiler_params=pltpu.CompilerParams(
                dimension_semantics=("arbitrary",)),
        )(x_split, self.wc, f_bf16, self.wa, self.ba, self.vblk, self.bv,
          self.expand_a, self.expand_f, sel_mat, self.projblk, self.pb,
          self.bc, self.maskT, self.mask, self.lnw, self.lnb,
          self.fc2_w, self.fc2_b)


# ----------------------------------------------------------------------------
# Main
# ----------------------------------------------------------------------------

if __name__ == "__main__":
    key = jax.random.PRNGKey(0)
    pkey, xkey = jax.random.split(key)

    net = PallasNet(pkey, max_type="softmax", layer_norm_flag=True,
                    lam=1.0, gamma=1.0, head_cnt=4)

    # batch=2 MNIST-shaped input (28x28 is required by the conv/pool/attention
    # geometry: 28 -5x5-> 24 -pool-> 12 -12x12 attention conv-> 1)
    x = jax.random.normal(xkey, (2, 1, 28, 28), dtype=jnp.float32)

    fwd = jax.jit(net.__call__)
    out = jax.block_until_ready(fwd(x))

    assert out.shape == (2, 10), out.shape
    assert bool(jnp.all(jnp.isfinite(out)))
    print("KERNEL_OK")
</pallas_src>

<mosaic_0001>
module attributes {stable_mosaic.version = 11 : i64} {
  func.func @_conv_pool_kernel(%arg0: i32, %arg1: memref<1152x25xbf16, #tpu.memory_space<vmem>>, %arg2: memref<25x20xbf16, #tpu.memory_space<vmem>>, %arg3: memref<1x20xf32, #tpu.memory_space<vmem>>, %arg4: memref<288x20xf32, #tpu.memory_space<vmem>>) attributes {dimension_semantics = [#tpu.dimension_semantics<arbitrary>], iteration_bounds = array<i64: 1>, scalar_prefetch = 0 : i64, scratch_operands = 0 : i64, tpu.core_type = #tpu.core_type<tc>, window_params = [{pipeline_mode = #tpu.pipeline_mode<synchronous>, transform_indices = @transform_0, window_bounds = array<i64: 1152, 25>}, {pipeline_mode = #tpu.pipeline_mode<synchronous>, transform_indices = @transform_1, window_bounds = array<i64: 25, 20>}, {pipeline_mode = #tpu.pipeline_mode<synchronous>, transform_indices = @transform_2, window_bounds = array<i64: 1, 20>}, {pipeline_mode = #tpu.pipeline_mode<synchronous>, transform_indices = @transform_3, window_bounds = array<i64: 288, 20>}]} {
    %c0 = arith.constant 0 : index
    %c0_0 = arith.constant 0 : index
    %0 = vector.load %arg1[%c0, %c0_0] : memref<1152x25xbf16, #tpu.memory_space<vmem>>, vector<1152x25xbf16>
    %c0_1 = arith.constant 0 : index
    %c0_2 = arith.constant 0 : index
    %1 = vector.load %arg2[%c0_1, %c0_2] : memref<25x20xbf16, #tpu.memory_space<vmem>>, vector<25x20xbf16>
    %cst = arith.constant dense<0.000000e+00> : vector<1152x20xf32>
    %2 = tpu.matmul %0, %1, %cst {dimension_numbers = #tpu.dot_dimension_numbers<[1], [0], [0], [1], [0, 0, 1, 1], [], []>} : vector<1152x25xbf16>, vector<25x20xbf16>, vector<1152x20xf32> -> vector<1152x20xf32>
    %3 = vector.extract_strided_slice %2 {offsets = [0, 0], sizes = [288, 20], strides = [1, 1]} : vector<1152x20xf32> to vector<288x20xf32>
    %4 = vector.extract_strided_slice %2 {offsets = [288, 0], sizes = [288, 20], strides = [1, 1]} : vector<1152x20xf32> to vector<288x20xf32>
    %5 = arith.maximumf %3, %4 : vector<288x20xf32>
    %6 = vector.extract_strided_slice %2 {offsets = [576, 0], sizes = [288, 20], strides = [1, 1]} : vector<1152x20xf32> to vector<288x20xf32>
    %7 = vector.extract_strided_slice %2 {offsets = [864, 0], sizes = [288, 20], strides = [1, 1]} : vector<1152x20xf32> to vector<288x20xf32>
    %8 = arith.maximumf %6, %7 : vector<288x20xf32>
    %9 = arith.maximumf %5, %8 : vector<288x20xf32>
    %c0_3 = arith.constant 0 : index
    %c0_4 = arith.constant 0 : index
    %10 = vector.load %arg3[%c0_3, %c0_4] : memref<1x20xf32, #tpu.memory_space<vmem>>, vector<1x20xf32>
    %11 = vector.broadcast %10 : vector<1x20xf32> to vector<288x20xf32>
    %12 = arith.addf %9, %11 : vector<288x20xf32>
    %cst_5 = arith.constant 0.000000e+00 : f32
    %13 = vector.broadcast %cst_5 : f32 to vector<288x20xf32>
    %14 = arith.maximumf %12, %13 : vector<288x20xf32>
    %c0_6 = arith.constant 0 : index
    %c0_7 = arith.constant 0 : index
    %15 = vector.load %arg4[%c0_6, %c0_7] : memref<288x20xf32, #tpu.memory_space<vmem>>, vector<288x20xf32>
    tpu.vector_store %arg4[%c0_6, %c0_7], %14 {strides = array<i32>} : memref<288x20xf32, #tpu.memory_space<vmem>>, vector<288x20xf32>,
    return
  }
  func.func @transform_0(%arg0: i32) -> (i32, i32) {
    %c0_i32 = arith.constant 0 : i32
    %c0_i32_0 = arith.constant 0 : i32
    %c0_i32_1 = arith.constant 0 : i32
    return %c0_i32, %c0_i32_0 : i32, i32
  }
  func.func @transform_1(%arg0: i32) -> (i32, i32) {
    %c0_i32 = arith.constant 0 : i32
    %c0_i32_0 = arith.constant 0 : i32
    %c0_i32_1 = arith.constant 0 : i32
    return %c0_i32, %c0_i32_0 : i32, i32
  }
  func.func @transform_2(%arg0: i32) -> (i32, i32) {
    %c0_i32 = arith.constant 0 : i32
    %c0_i32_0 = arith.constant 0 : i32
    %c0_i32_1 = arith.constant 0 : i32
    return %c0_i32, %c0_i32_0 : i32, i32
  }
  func.func @transform_3(%arg0: i32) -> (i32, i32) {
    %c0_i32 = arith.constant 0 : i32
    %c0_i32_0 = arith.constant 0 : i32
    %c0_i32_1 = arith.constant 0 : i32
    return %c0_i32, %c0_i32_0 : i32, i32
  }
}

module attributes {stable_mosaic.version = 11 : i64} {
  func.func @_heads_tail_kernel(%arg0: i32, %arg1: memref<1x2x720xbf16, #tpu.memory_space<vmem>>, %arg2: memref<720x500xbf16, #tpu.memory_space<vmem>>, %arg3: memref<288x20xbf16, #tpu.memory_space<vmem>>, %arg4: memref<20x128xbf16, #tpu.memory_space<vmem>>, %arg5: memref<1x128xf32, #tpu.memory_space<vmem>>, %arg6: memref<128x4xbf16, #tpu.memory_space<vmem>>, %arg7: memref<1x4xf32, #tpu.memory_space<vmem>>, %arg8: memref<4x80xbf16, #tpu.memory_space<vmem>>, %arg9: memref<20x80xbf16, #tpu.memory_space<vmem>>, %arg10: memref<2x288xbf16, #tpu.memory_space<vmem>>, %arg11: memref<80x500xbf16, #tpu.memory_space<vmem>>, %arg12: memref<1x500xf32, #tpu.memory_space<vmem>>, %arg13: memref<1x500xf32, #tpu.memory_space<vmem>>, %arg14: memref<500x4xf32, #tpu.memory_space<vmem>>, %arg15: memref<4x500xf32, #tpu.memory_space<vmem>>, %arg16: memref<1x500xf32, #tpu.memory_space<vmem>>, %arg17: memref<1x500xf32, #tpu.memory_space<vmem>>, %arg18: memref<500x10xbf16, #tpu.memory_space<vmem>>, %arg19: memref<1x10xf32, #tpu.memory_space<vmem>>, %arg20: memref<2x10xf32, #tpu.memory_space<vmem>>, %arg21: memref<2x500xf32, #tpu.memory_space<vmem>>) attributes {dimension_semantics = [#tpu.dimension_semantics<arbitrary>], iteration_bounds = array<i64: 4>, scalar_prefetch = 0 : i64, scratch_operands = 1 : i64, tpu.core_type = #tpu.core_type<tc>, window_params = [{transform_indices = @transform_0, window_bounds = array<i64: 1, 2, 720>}, {transform_indices = @transform_1, window_bounds = array<i64: 720, 500>}, {pipeline_mode = #tpu.pipeline_mode<synchronous>, transform_indices = @transform_2, window_bounds = array<i64: 288, 20>}, {pipeline_mode = #tpu.pipeline_mode<synchronous>, transform_indices = @transform_3, window_bounds = array<i64: 20, 128>}, {pipeline_mode = #tpu.pipeline_mode<synchronous>, transform_indices = @transform_4, window_bounds = array<i64: 1, 128>}, {pipeline_mode = #tpu.pipeline_mode<synchronous>, transform_indices = @transform_5, window_bounds = array<i64: 128, 4>}, {pipeline_mode = #tpu.pipeline_mode<synchronous>, transform_indices = @transform_6, window_bounds = array<i64: 1, 4>}, {pipeline_mode = #tpu.pipeline_mode<synchronous>, transform_indices = @transform_7, window_bounds = array<i64: 4, 80>}, {pipeline_mode = #tpu.pipeline_mode<synchronous>, transform_indices = @transform_8, window_bounds = array<i64: 20, 80>}, {pipeline_mode = #tpu.pipeline_mode<synchronous>, transform_indices = @transform_9, window_bounds = array<i64: 2, 288>}, {pipeline_mode = #tpu.pipeline_mode<synchronous>, transform_indices = @transform_10, window_bounds = array<i64: 80, 500>}, {pipeline_mode = #tpu.pipeline_mode<synchronous>, transform_indices = @transform_11, window_bounds = array<i64: 1, 500>}, {pipeline_mode = #tpu.pipeline_mode<synchronous>, transform_indices = @transform_12, window_bounds = array<i64: 1, 500>}, {pipeline_mode = #tpu.pipeline_mode<synchronous>, transform_indices = @transform_13, window_bounds = array<i64: 500, 4>}, {pipeline_mode = #tpu.pipeline_mode<synchronous>, transform_indices = @transform_14, window_bounds = array<i64: 4, 500>}, {pipeline_mode = #tpu.pipeline_mode<synchronous>, transform_indices = @transform_15, window_bounds = array<i64: 1, 500>}, {pipeline_mode = #tpu.pipeline_mode<synchronous>, transform_indices = @transform_16, window_bounds = array<i64: 1, 500>}, {pipeline_mode = #tpu.pipeline_mode<synchronous>, transform_indices = @transform_17, window_bounds = array<i64: 500, 10>}, {pipeline_mode = #tpu.pipeline_mode<synchronous>, transform_indices = @transform_18, window_bounds = array<i64: 1, 10>}, {pipeline_mode = #tpu.pipeline_mode<synchronous>, transform_indices = @transform_19, window_bounds = array<i64: 2, 10>}]} {
    %c0_i32 = arith.constant 0 : i32
    %0 = arith.cmpi eq, %arg0, %c0_i32 : i32
    %1 = arith.extui %0 : i1 to i32
    %c0_i32_0 = arith.constant 0 : i32
    %2 = arith.cmpi ne, %1, %c0_i32_0 : i32
    scf.if %2 {
      %c0_10 = arith.constant 0 : index
      %c0_11 = arith.constant 0 : index
      %13 = vector.load %arg3[%c0_10, %c0_11] : memref<288x20xbf16, #tpu.memory_space<vmem>>, vector<288x20xbf16>
      %c0_12 = arith.constant 0 : index
      %c0_13 = arith.constant 0 : index
      %14 = vector.load %arg4[%c0_12, %c0_13] : memref<20x128xbf16, #tpu.memory_space<vmem>>, vector<20x128xbf16>
      %cst_14 = arith.constant dense<0.000000e+00> : vector<288x128xf32>
      %15 = tpu.matmul %13, %14, %cst_14 {dimension_numbers = #tpu.dot_dimension_numbers<[1], [0], [0], [1], [0, 0, 1, 1], [], []>} : vector<288x20xbf16>, vector<20x128xbf16>, vector<288x128xf32> -> vector<288x128xf32>
      %c0_15 = arith.constant 0 : index
      %c0_16 = arith.constant 0 : index
      %16 = vector.load %arg5[%c0_15, %c0_16] : memref<1x128xf32, #tpu.memory_space<vmem>>, vector<1x128xf32>
      %17 = vector.broadcast %16 : vector<1x128xf32> to vector<288x128xf32>
      %18 = arith.addf %15, %17 : vector<288x128xf32>
      %19 = math.tanh %18 : vector<288x128xf32>
      %20 = arith.truncf %19 : vector<288x128xf32> to vector<288x128xbf16>
      %c0_17 = arith.constant 0 : index
      %c0_18 = arith.constant 0 : index
      %21 = vector.load %arg6[%c0_17, %c0_18] : memref<128x4xbf16, #tpu.memory_space<vmem>>, vector<128x4xbf16>
      %cst_19 = arith.constant dense<0.000000e+00> : vector<288x4xf32>
      %22 = tpu.matmul %20, %21, %cst_19 {dimension_numbers = #tpu.dot_dimension_numbers<[1], [0], [0], [1], [0, 0, 1, 1], [], []>} : vector<288x128xbf16>, vector<128x4xbf16>, vector<288x4xf32> -> vector<288x4xf32>
      %c0_20 = arith.constant 0 : index
      %c0_21 = arith.constant 0 : index
      %23 = vector.load %arg7[%c0_20, %c0_21] : memref<1x4xf32, #tpu.memory_space<vmem>>, vector<1x4xf32>
      %24 = vector.broadcast %23 : vector<1x4xf32> to vector<288x4xf32>
      %25 = arith.addf %22, %24 : vector<288x4xf32>
      %cst_22 = arith.constant 1.000000e+00 : f32
      %26 = vector.broadcast %cst_22 : f32 to vector<288x4xf32>
      %27 = arith.mulf %25, %26 : vector<288x4xf32>
      %28 = vector.extract_strided_slice %27 {offsets = [0, 0], sizes = [144, 4], strides = [1, 1]} : vector<288x4xf32> to vector<144x4xf32>
      %cst_23 = arith.constant dense<0xFF800000> : vector<4xf32>
      %29 = vector.multi_reduction <maximumf>, %28, %cst_23 [0] : vector<144x4xf32> to vector<4xf32>
      %30 = vector.shape_cast %29 : vector<4xf32> to vector<1x4xf32>
      %31 = vector.broadcast %30 : vector<1x4xf32> to vector<144x4xf32>
      %32 = arith.subf %28, %31 : vector<144x4xf32>
      %33 = math.exp %32 : vector<144x4xf32>
      %cst_24 = arith.constant dense<0.000000e+00> : vector<4xf32>
      %34 = vector.multi_reduction <add>, %33, %cst_24 [0] : vector<144x4xf32> to vector<4xf32>
      %35 = vector.shape_cast %34 : vector<4xf32> to vector<1x4xf32>
      %36 = vector.broadcast %35 : vector<1x4xf32> to vector<144x4xf32>
      %37 = arith.divf %33, %36 : vector<144x4xf32>
      %38 = vector.extract_strided_slice %27 {offsets = [144, 0], sizes = [144, 4], strides = [1, 1]} : vector<288x4xf32> to vector<144x4xf32>
      %cst_25 = arith.constant dense<0xFF800000> : vector<4xf32>
      %39 = vector.multi_reduction <maximumf>, %38, %cst_25 [0] : vector<144x4xf32> to vector<4xf32>
      %40 = vector.shape_cast %39 : vector<4xf32> to vector<1x4xf32>
      %41 = vector.broadcast %40 : vector<1x4xf32> to vector<144x4xf32>
      %42 = arith.subf %38, %41 : vector<144x4xf32>
      %43 = math.exp %42 : vector<144x4xf32>
      %cst_26 = arith.constant dense<0.000000e+00> : vector<4xf32>
      %44 = vector.multi_reduction <add>, %43, %cst_26 [0] : vector<144x4xf32> to vector<4xf32>
      %45 = vector.shape_cast %44 : vector<4xf32> to vector<1x4xf32>
      %46 = vector.broadcast %45 : vector<1x4xf32> to vector<144x4xf32>
      %47 = arith.divf %43, %46 : vector<144x4xf32>
      %48 = tpu.concatenate %37, %47 in 0 : vector<144x4xf32>, vector<144x4xf32> -> vector<288x4xf32>
      %49 = arith.truncf %48 : vector<288x4xf32> to vector<288x4xbf16>
      %c0_27 = arith.constant 0 : index
      %c0_28 = arith.constant 0 : index
      %50 = vector.load %arg8[%c0_27, %c0_28] : memref<4x80xbf16, #tpu.memory_space<vmem>>, vector<4x80xbf16>
      %cst_29 = arith.constant dense<0.000000e+00> : vector<288x80xf32>
      %51 = tpu.matmul %49, %50, %cst_29 {dimension_numbers = #tpu.dot_dimension_numbers<[1], [0], [0], [1], [0, 0, 1, 1], [], []>} : vector<288x4xbf16>, vector<4x80xbf16>, vector<288x80xf32> -> vector<288x80xf32>
      %c0_30 = arith.constant 0 : index
      %c0_31 = arith.constant 0 : index
      %52 = vector.load %arg9[%c0_30, %c0_31] : memref<20x80xbf16, #tpu.memory_space<vmem>>, vector<20x80xbf16>
      %cst_32 = arith.constant dense<0.000000e+00> : vector<288x80xf32>
      %53 = tpu.matmul %13, %52, %cst_32 {dimension_numbers = #tpu.dot_dimension_numbers<[1], [0], [0], [1], [0, 0, 1, 1], [], []>} : vector<288x20xbf16>, vector<20x80xbf16>, vector<288x80xf32> -> vector<288x80xf32>
      %c0_33 = arith.constant 0 : index
      %c0_34 = arith.constant 0 : index
      %54 = vector.load %arg10[%c0_33, %c0_34] : memref<2x288xbf16, #tpu.memory_space<vmem>>, vector<2x288xbf16>
      %55 = arith.mulf %51, %53 : vector<288x80xf32>
      %56 = arith.truncf %55 : vector<288x80xf32> to vector<288x80xbf16>
      %cst_35 = arith.constant dense<0.000000e+00> : vector<2x80xf32>
      %57 = tpu.matmul %54, %56, %cst_35 {dimension_numbers = #tpu.dot_dimension_numbers<[1], [0], [0], [1], [0, 0, 1, 1], [], []>} : vector<2x288xbf16>, vector<288x80xbf16>, vector<2x80xf32> -> vector<2x80xf32>
      %58 = arith.truncf %57 : vector<2x80xf32> to vector<2x80xbf16>
      %c0_36 = arith.constant 0 : index
      %c0_37 = arith.constant 0 : index
      %59 = vector.load %arg11[%c0_36, %c0_37] : memref<80x500xbf16, #tpu.memory_space<vmem>>, vector<80x500xbf16>
      %cst_38 = arith.constant dense<0.000000e+00> : vector<2x500xf32>
      %60 = tpu.matmul %58, %59, %cst_38 {dimension_numbers = #tpu.dot_dimension_numbers<[1], [0], [0], [1], [0, 0, 1, 1], [], []>} : vector<2x80xbf16>, vector<80x500xbf16>, vector<2x500xf32> -> vector<2x500xf32>
      %c0_39 = arith.constant 0 : index
      %c0_40 = arith.constant 0 : index
      %61 = vector.load %arg13[%c0_39, %c0_40] : memref<1x500xf32, #tpu.memory_space<vmem>>, vector<1x500xf32>
      %c0_41 = arith.constant 0 : index
      %c0_42 = arith.constant 0 : index
      %62 = vector.load %arg12[%c0_41, %c0_42] : memref<1x500xf32, #tpu.memory_space<vmem>>, vector<1x500xf32>
      %63 = vector.broadcast %62 : vector<1x500xf32> to vector<2x500xf32>
      %64 = arith.addf %60, %63 : vector<2x500xf32>
      %cst_43 = arith.constant 1.000000e+00 : f32
      %65 = vector.broadcast %cst_43 : f32 to vector<2x500xf32>
      %66 = arith.mulf %65, %64 : vector<2x500xf32>
      %67 = vector.broadcast %61 : vector<1x500xf32> to vector<2x500xf32>
      %68 = arith.addf %67, %66 : vector<2x500xf32>
      %c0_44 = arith.constant 0 : index
      %c0_45 = arith.constant 0 : index
      %69 = vector.load %arg21[%c0_44, %c0_45] : memref<2x500xf32, #tpu.memory_space<vmem>>, vector<2x500xf32>
      tpu.vector_store %arg21[%c0_44, %c0_45], %68 {strides = array<i32>} : memref<2x500xf32, #tpu.memory_space<vmem>>, vector<2x500xf32>,
    } else {
    }
    %c0 = arith.constant 0 : index
    %c0_1 = arith.constant 0 : index
    %3 = vector.load %arg21[%c0, %c0_1] : memref<2x500xf32, #tpu.memory_space<vmem>>, vector<2x500xf32>
    %c0_2 = arith.constant 0 : index
    %c0_3 = arith.constant 0 : index
    %c0_4 = arith.constant 0 : index
    %4 = vector.load %arg1[%c0_2, %c0_3, %c0_4] : memref<1x2x720xbf16, #tpu.memory_space<vmem>>, vector<1x2x720xbf16>
    %5 = vector.shape_cast %4 : vector<1x2x720xbf16> to vector<2x720xbf16>
    %c0_5 = arith.constant 0 : index
    %c0_6 = arith.constant 0 : index
    %6 = vector.load %arg2[%c0_5, %c0_6] : memref<720x500xbf16, #tpu.memory_space<vmem>>, vector<720x500xbf16>
    %cst = arith.constant dense<0.000000e+00> : vector<2x500xf32>
    %7 = tpu.matmul %5, %6, %cst {dimension_numbers = #tpu.dot_dimension_numbers<[1], [0], [0], [1], [0, 0, 1, 1], [], []>} : vector<2x720xbf16>, vector<720x500xbf16>, vector<2x500xf32> -> vector<2x500xf32>
    %8 = arith.addf %3, %7 : vector<2x500xf32>
    %c0_7 = arith.constant 0 : index
    %c0_8 = arith.constant 0 : index
    %9 = vector.load %arg21[%c0_7, %c0_8] : memref<2x500xf32, #tpu.memory_space<vmem>>, vector<2x500xf32>
    tpu.vector_store %arg21[%c0_7, %c0_8], %8 {strides = array<i32>} : memref<2x500xf32, #tpu.memory_space<vmem>>, vector<2x500xf32>,
    %c3_i32 = arith.constant 3 : i32
    %10 = arith.cmpi eq, %arg0, %c3_i32 : i32
    %11 = arith.extui %10 : i1 to i32
    %c0_i32_9 = arith.constant 0 : i32
    %12 = arith.cmpi ne, %11, %c0_i32_9 : i32
    scf.if %12 {
      %c0_10 = arith.constant 0 : index
      %c0_11 = arith.constant 0 : index
      %13 = vector.load %arg21[%c0_10, %c0_11] : memref<2x500xf32, #tpu.memory_space<vmem>>, vector<2x500xf32>
      %c0_12 = arith.constant 0 : index
      %c0_13 = arith.constant 0 : index
      %14 = vector.load %arg14[%c0_12, %c0_13] : memref<500x4xf32, #tpu.memory_space<vmem>>, vector<500x4xf32>
      %cst_14 = arith.constant dense<0.000000e+00> : vector<2x4xf32>
      %15 = tpu.matmul %13, %14, %cst_14 {dimension_numbers = #tpu.dot_dimension_numbers<[1], [0], [0], [1], [0, 0, 1, 1], [], []>} : vector<2x500xf32>, vector<500x4xf32>, vector<2x4xf32> -> vector<2x4xf32>
      %cst_15 = arith.constant 8.000000e-03 : f32
      %16 = vector.broadcast %cst_15 : f32 to vector<2x4xf32>
      %17 = arith.mulf %15, %16 : vector<2x4xf32>
      %c0_16 = arith.constant 0 : index
      %c0_17 = arith.constant 0 : index
      %18 = vector.load %arg15[%c0_16, %c0_17] : memref<4x500xf32, #tpu.memory_space<vmem>>, vector<4x500xf32>
      %cst_18 = arith.constant dense<0.000000e+00> : vector<2x500xf32>
      %19 = tpu.matmul %17, %18, %cst_18 {dimension_numbers = #tpu.dot_dimension_numbers<[1], [0], [0], [1], [0, 0, 1, 1], [], []>} : vector<2x4xf32>, vector<4x500xf32>, vector<2x500xf32> -> vector<2x500xf32>
      %20 = arith.subf %13, %19 : vector<2x500xf32>
      %21 = arith.mulf %20, %20 : vector<2x500xf32>
      %c0_19 = arith.constant 0 : index
      %c0_20 = arith.constant 0 : index
      %22 = vector.load %arg14[%c0_19, %c0_20] : memref<500x4xf32, #tpu.memory_space<vmem>>, vector<500x4xf32>
      %cst_21 = arith.constant dense<0.000000e+00> : vector<2x4xf32>
      %23 = tpu.matmul %21, %22, %cst_21 {dimension_numbers = #tpu.dot_dimension_numbers<[1], [0], [0], [1], [0, 0, 1, 1], [], []>} : vector<2x500xf32>, vector<500x4xf32>, vector<2x4xf32> -> vector<2x4xf32>
      %cst_22 = arith.constant 8.000000e-03 : f32
      %24 = vector.broadcast %cst_22 : f32 to vector<2x4xf32>
      %25 = arith.mulf %23, %24 : vector<2x4xf32>
      %c0_23 = arith.constant 0 : index
      %c0_24 = arith.constant 0 : index
      %26 = vector.load %arg15[%c0_23, %c0_24] : memref<4x500xf32, #tpu.memory_space<vmem>>, vector<4x500xf32>
      %cst_25 = arith.constant dense<0.000000e+00> : vector<2x500xf32>
      %27 = tpu.matmul %25, %26, %cst_25 {dimension_numbers = #tpu.dot_dimension_numbers<[1], [0], [0], [1], [0, 0, 1, 1], [], []>} : vector<2x4xf32>, vector<4x500xf32>, vector<2x500xf32> -> vector<2x500xf32>
      %cst_26 = arith.constant 9.99999974E-6 : f32
      %28 = vector.broadcast %cst_26 : f32 to vector<2x500xf32>
      %29 = arith.addf %27, %28 : vector<2x500xf32>
      %30 = math.rsqrt %29 : vector<2x500xf32>
      %31 = arith.mulf %20, %30 : vector<2x500xf32>
      %c0_27 = arith.constant 0 : index
      %c0_28 = arith.constant 0 : index
      %32 = vector.load %arg16[%c0_27, %c0_28] : memref<1x500xf32, #tpu.memory_space<vmem>>, vector<1x500xf32>
      %33 = vector.broadcast %32 : vector<1x500xf32> to vector<2x500xf32>
      %34 = arith.mulf %31, %33 : vector<2x500xf32>
      %c0_29 = arith.constant 0 : index
      %c0_30 = arith.constant 0 : index
      %35 = vector.load %arg17[%c0_29, %c0_30] : memref<1x500xf32, #tpu.memory_space<vmem>>, vector<1x500xf32>
      %36 = vector.broadcast %35 : vector<1x500xf32> to vector<2x500xf32>
      %37 = arith.addf %34, %36 : vector<2x500xf32>
      %cst_31 = arith.constant 0.000000e+00 : f32
      %38 = vector.broadcast %cst_31 : f32 to vector<2x500xf32>
      %39 = arith.maximumf %37, %38 : vector<2x500xf32>
      %40 = arith.truncf %39 : vector<2x500xf32> to vector<2x500xbf16>
      %c0_32 = arith.constant 0 : index
      %c0_33 = arith.constant 0 : index
      %41 = vector.load %arg18[%c0_32, %c0_33] : memref<500x10xbf16, #tpu.memory_space<vmem>>, vector<500x10xbf16>
      %cst_34 = arith.constant dense<0.000000e+00> : vector<2x10xf32>
      %42 = tpu.matmul %40, %41, %cst_34 {dimension_numbers = #tpu.dot_dimension_numbers<[1], [0], [0], [1], [0, 0, 1, 1], [], []>} : vector<2x500xbf16>, vector<500x10xbf16>, vector<2x10xf32> -> vector<2x10xf32>
      %c0_35 = arith.constant 0 : index
      %c0_36 = arith.constant 0 : index
      %43 = vector.load %arg19[%c0_35, %c0_36] : memref<1x10xf32, #tpu.memory_space<vmem>>, vector<1x10xf32>
      %44 = vector.broadcast %43 : vector<1x10xf32> to vector<2x10xf32>
      %45 = arith.addf %42, %44 : vector<2x10xf32>
      %cst_37 = arith.constant dense<0xFF800000> : vector<2xf32>
      %46 = vector.multi_reduction <maximumf>, %45, %cst_37 [1] : vector<2x10xf32> to vector<2xf32>
      %47 = vector.shape_cast %46 : vector<2xf32> to vector<2x1xf32>
      %48 = vector.broadcast %47 : vector<2x1xf32> to vector<2x10xf32>
      %49 = arith.subf %45, %48 : vector<2x10xf32>
      %50 = math.exp %49 : vector<2x10xf32>
      %cst_38 = arith.constant dense<0.000000e+00> : vector<2xf32>
      %51 = vector.multi_reduction <add>, %50, %cst_38 [1] : vector<2x10xf32> to vector<2xf32>
      %52 = vector.shape_cast %51 : vector<2xf32> to vector<2x1xf32>
      %53 = math.log %52 : vector<2x1xf32>
      %54 = vector.broadcast %53 : vector<2x1xf32> to vector<2x10xf32>
      %55 = arith.subf %49, %54 : vector<2x10xf32>
      %c0_39 = arith.constant 0 : index
      %c0_40 = arith.constant 0 : index
      %56 = vector.load %arg20[%c0_39, %c0_40] : memref<2x10xf32, #tpu.memory_space<vmem>>, vector<2x10xf32>
      tpu.vector_store %arg20[%c0_39, %c0_40], %55 {strides = array<i32>} : memref<2x10xf32, #tpu.memory_space<vmem>>, vector<2x10xf32>,
    } else {
    }
    return
  }
  func.func @transform_0(%arg0: i32) -> (i32, i32, i32) {
    %c0_i32 = arith.constant 0 : i32
    %c0_i32_0 = arith.constant 0 : i32
    %c0_i32_1 = arith.constant 0 : i32
    return %arg0, %c0_i32, %c0_i32_0 : i32, i32, i32
  }
  func.func @transform_1(%arg0: i32) -> (i32, i32) {
    %c0_i32 = arith.constant 0 : i32
    %c0_i32_0 = arith.constant 0 : i32
    return %arg0, %c0_i32 : i32, i32
  }
  func.func @transform_2(%arg0: i32) -> (i32, i32) {
    %c0_i32 = arith.constant 0 : i32
    %c0_i32_0 = arith.constant 0 : i32
    %c0_i32_1 = arith.constant 0 : i32
    return %c0_i32, %c0_i32_0 : i32, i32
  }
  func.func @transform_3(%arg0: i32) -> (i32, i32) {
    %c0_i32 = arith.constant 0 : i32
    %c0_i32_0 = arith.constant 0 : i32
    %c0_i32_1 = arith.constant 0 : i32
    return %c0_i32, %c0_i32_0 : i32, i32
  }
  func.func @transform_4(%arg0: i32) -> (i32, i32) {
    %c0_i32 = arith.constant 0 : i32
    %c0_i32_0 = arith.constant 0 : i32
    %c0_i32_1 = arith.constant 0 : i32
    return %c0_i32, %c0_i32_0 : i32, i32
  }
  func.func @transform_5(%arg0: i32) -> (i32, i32) {
    %c0_i32 = arith.constant 0 : i32
    %c0_i32_0 = arith.constant 0 : i32
    %c0_i32_1 = arith.constant 0 : i32
    return %c0_i32, %c0_i32_0 : i32, i32
  }
  func.func @transform_6(%arg0: i32) -> (i32, i32) {
    %c0_i32 = arith.constant 0 : i32
    %c0_i32_0 = arith.constant 0 : i32
    %c0_i32_1 = arith.constant 0 : i32
    return %c0_i32, %c0_i32_0 : i32, i32
  }
  func.func @transform_7(%arg0: i32) -> (i32, i32) {
    %c0_i32 = arith.constant 0 : i32
    %c0_i32_0 = arith.constant 0 : i32
    %c0_i32_1 = arith.constant 0 : i32
    return %c0_i32, %c0_i32_0 : i32, i32
  }
  func.func @transform_8(%arg0: i32) -> (i32, i32) {
    %c0_i32 = arith.constant 0 : i32
    %c0_i32_0 = arith.constant 0 : i32
    %c0_i32_1 = arith.constant 0 : i32
    return %c0_i32, %c0_i32_0 : i32, i32
  }
  func.func @transform_9(%arg0: i32) -> (i32, i32) {
    %c0_i32 = arith.constant 0 : i32
    %c0_i32_0 = arith.constant 0 : i32
    %c0_i32_1 = arith.constant 0 : i32
    return %c0_i32, %c0_i32_0 : i32, i32
  }
  func.func @transform_10(%arg0: i32) -> (i32, i32) {
    %c0_i32 = arith.constant 0 : i32
    %c0_i32_0 = arith.constant 0 : i32
    %c0_i32_1 = arith.constant 0 : i32
    return %c0_i32, %c0_i32_0 : i32, i32
  }
  func.func @transform_11(%arg0: i32) -> (i32, i32) {
    %c0_i32 = arith.constant 0 : i32
    %c0_i32_0 = arith.constant 0 : i32
    %c0_i32_1 = arith.constant 0 : i32
    return %c0_i32, %c0_i32_0 : i32, i32
  }
  func.func @transform_12(%arg0: i32) -> (i32, i32) {
    %c0_i32 = arith.constant 0 : i32
    %c0_i32_0 = arith.constant 0 : i32
    %c0_i32_1 = arith.constant 0 : i32
    return %c0_i32, %c0_i32_0 : i32, i32
  }
  func.func @transform_13(%arg0: i32) -> (i32, i32) {
    %c0_i32 = arith.constant 0 : i32
    %c0_i32_0 = arith.constant 0 : i32
    %c0_i32_1 = arith.constant 0 : i32
    return %c0_i32, %c0_i32_0 : i32, i32
  }
  func.func @transform_14(%arg0: i32) -> (i32, i32) {
    %c0_i32 = arith.constant 0 : i32
    %c0_i32_0 = arith.constant 0 : i32
    %c0_i32_1 = arith.constant 0 : i32
    return %c0_i32, %c0_i32_0 : i32, i32
  }
  func.func @transform_15(%arg0: i32) -> (i32, i32) {
    %c0_i32 = arith.constant 0 : i32
    %c0_i32_0 = arith.constant 0 : i32
    %c0_i32_1 = arith.constant 0 : i32
    return %c0_i32, %c0_i32_0 : i32, i32
  }
  func.func @transform_16(%arg0: i32) -> (i32, i32) {
    %c0_i32 = arith.constant 0 : i32
    %c0_i32_0 = arith.constant 0 : i32
    %c0_i32_1 = arith.constant 0 : i32
    return %c0_i32, %c0_i32_0 : i32, i32
  }
  func.func @transform_17(%arg0: i32) -> (i32, i32) {
    %c0_i32 = arith.constant 0 : i32
    %c0_i32_0 = arith.constant 0 : i32
    %c0_i32_1 = arith.constant 0 : i32
    return %c0_i32, %c0_i32_0 : i32, i32
  }
  func.func @transform_18(%arg0: i32) -> (i32, i32) {
    %c0_i32 = arith.constant 0 : i32
    %c0_i32_0 = arith.constant 0 : i32
    %c0_i32_1 = arith.constant 0 : i32
    return %c0_i32, %c0_i32_0 : i32, i32
  }
  func.func @transform_19(%arg0: i32) -> (i32, i32) {
    %c0_i32 = arith.constant 0 : i32
    %c0_i32_0 = arith.constant 0 : i32
    %c0_i32_1 = arith.constant 0 : i32
    return %c0_i32, %c0_i32_0 : i32, i32
  }
}

</mosaic_0001>

<llo_original>
// kernel: a_call__.2
$region0: #{a_call__.2}
  #allocation0 [shape = 'u32[]', space=smem, size = 0x4, offset = 0x4, fixed_abs, tag = 'smem constant byte address 0x4 - core index']
  #allocation1 [shape = 'u32[144,128]{1,0:T(1,128)}', space=vmem, size = 0x12000, scoped, tag = 'internal scratch']
  %s0 = inlined_call_operand.vmem [shape: bf16[1152,25], index: 0, kind: input, shape index: {}]
  %s1 = inlined_call_operand.vmem [shape: bf16[25,20], index: 1, kind: input, shape index: {}]
  %s2 = inlined_call_operand.vmem [shape: f32[1,20], index: 2, kind: input, shape index: {}]
  %s3 = inlined_call_operand.vmem [shape: f32[288,20], index: 3, kind: output, shape index: {}]
  %s4 = sld [smem:[#allocation0]]
  $region22: #{a_call__.2} parent=0
    _
  %s6 = ssub.s32 1, %s4
  %s7 = scalar_select 0, %s6, %s4
  // Predicated region
  $region2: #{a_call__.2} parent=0 // pred_check
    _
  $region3: #{a_call__.2} parent=0 // pred_check_branch
    %9 = sbr.rel (0) target = $region5
  $region4: #{a_call__.2} parent=0 // pred_region
    _
  $region5: #{a_call__.2} parent=0 // pred_fallthru
    _
  // Predicated region
  $region6: #{a_call__.2} parent=0 // pred_check
    _
  $region7: #{a_call__.2} parent=0 // pred_check_branch
    %11 = sbr.rel (0) target = $region9
  $region8: #{a_call__.2} parent=0 // pred_region
    _
  $region9: #{a_call__.2} parent=0 // pred_fallthru
    _
  // Predicated region
  $region10: #{a_call__.2} parent=0 // pred_check
    _
  $region11: #{a_call__.2} parent=0 // pred_check_branch
    %13 = sbr.rel (0) target = $region13
  $region12: #{a_call__.2} parent=0 // pred_region
    _
  $region13: #{a_call__.2} parent=0 // pred_fallthru
    _
  %v15 = vld [vmem:[%s0] sm:$0xf]
  %v16 = vld [vmem:[%s0 + $0x4] sm:$0xf]
  %v17 = vld [vmem:[%s0 + $0x8] sm:$0xf]
  %v18 = vld [vmem:[%s0 + $0xc] sm:$0xf]
  %v19 = vld [vmem:[%s0 + $0x10] sm:$0xf]
  %v20 = vld [vmem:[%s0 + $0x14] sm:$0xf]
  %v21 = vld [vmem:[%s0 + $0x18] sm:$0xf]
  %v22 = vld [vmem:[%s0 + $0x1c] sm:$0xf]
  %v23 = vld [vmem:[%s0 + $0x20] sm:$0xf]
  %v24 = vld [vmem:[%s0 + $0x24] sm:$0xf]
  %v25 = vld [vmem:[%s0 + $0x28] sm:$0xf]
  %v26 = vld [vmem:[%s0 + $0x2c] sm:$0xf]
  %v27 = vld [vmem:[%s0 + $0x30] sm:$0xf]
  %v28 = vld [vmem:[%s0 + $0x34] sm:$0xf]
  %v29 = vld [vmem:[%s0 + $0x38] sm:$0xf]
  %v30 = vld [vmem:[%s0 + $0x3c] sm:$0xf]
  %v31 = vld [vmem:[%s0 + $0x40] sm:$0xf]
  %v32 = vld [vmem:[%s0 + $0x44] sm:$0xf]
  %v33 = vld [vmem:[%s0 + $0x48] sm:$0xf]
  %v34 = vld [vmem:[%s0 + $0x4c] sm:$0xf]
  %v35 = vld [vmem:[%s0 + $0x50] sm:$0xf]
  %v36 = vld [vmem:[%s0 + $0x54] sm:$0xf]
  %v37 = vld [vmem:[%s0 + $0x58] sm:$0xf]
  %v38 = vld [vmem:[%s0 + $0x5c] sm:$0xf]
  %v39 = vld [vmem:[%s0 + $0x60] sm:$0xf]
  %v40 = vld [vmem:[%s0 + $0x64] sm:$0xf]
  %v41 = vld [vmem:[%s0 + $0x68] sm:$0xf]
  %v42 = vld [vmem:[%s0 + $0x6c] sm:$0xf]
  %v43 = vld [vmem:[%s0 + $0x70] sm:$0xf]
  %v44 = vld [vmem:[%s0 + $0x74] sm:$0xf]
  %v45 = vld [vmem:[%s0 + $0x78] sm:$0xf]
  %v46 = vld [vmem:[%s0 + $0x7c] sm:$0xf]
  %v47 = vld [vmem:[%s0 + $0x80] sm:$0xf]
  %v48 = vld [vmem:[%s0 + $0x84] sm:$0xf]
  %v49 = vld [vmem:[%s0 + $0x88] sm:$0xf]
  %v50 = vld [vmem:[%s0 + $0x8c] sm:$0xf]
  %v51 = vld [vmem:[%s0 + $0x90] sm:$0xf]
  %v52 = vld [vmem:[%s0 + $0x94] sm:$0xf]
  %v53 = vld [vmem:[%s0 + $0x98] sm:$0xf]
  %v54 = vld [vmem:[%s0 + $0x9c] sm:$0xf]
  %v55 = vld [vmem:[%s0 + $0xa0] sm:$0xf]
  %v56 = vld [vmem:[%s0 + $0xa4] sm:$0xf]
  %v57 = vld [vmem:[%s0 + $0xa8] sm:$0xf]
  %v58 = vld [vmem:[%s0 + $0xac] sm:$0xf]
  %v59 = vld [vmem:[%s0 + $0xb0] sm:$0xf]
  %v60 = vld [vmem:[%s0 + $0xb4] sm:$0xf]
  %v61 = vld [vmem:[%s0 + $0xb8] sm:$0xf]
  %v62 = vld [vmem:[%s0 + $0xbc] sm:$0xf]
  %v63 = vld [vmem:[%s0 + $0xc0] sm:$0xf]
  %v64 = vld [vmem:[%s0 + $0xc4] sm:$0xf]
  %v65 = vld [vmem:[%s0 + $0xc8] sm:$0xf]
  %v66 = vld [vmem:[%s0 + $0xcc] sm:$0xf]
  %v67 = vld [vmem:[%s0 + $0xd0] sm:$0xf]
  %v68 = vld [vmem:[%s0 + $0xd4] sm:$0xf]
  %v69 = vld [vmem:[%s0 + $0xd8] sm:$0xf]
  %v70 = vld [vmem:[%s0 + $0xdc] sm:$0xf]
  %v71 = vld [vmem:[%s0 + $0xe0] sm:$0xf]
  %v72 = vld [vmem:[%s0 + $0xe4] sm:$0xf]
  %v73 = vld [vmem:[%s0 + $0xe8] sm:$0xf]
  %v74 = vld [vmem:[%s0 + $0xec] sm:$0xf]
  %v75 = vld [vmem:[%s0 + $0xf0] sm:$0xf]
  %v76 = vld [vmem:[%s0 + $0xf4] sm:$0xf]
  %v77 = vld [vmem:[%s0 + $0xf8] sm:$0xf]
  %v78 = vld [vmem:[%s0 + $0xfc] sm:$0xf]
  %v79 = vld [vmem:[%s0 + $0x100] sm:$0xf]
  %v80 = vld [vmem:[%s0 + $0x104] sm:$0xf]
  %v81 = vld [vmem:[%s0 + $0x108] sm:$0xf]
  %v82 = vld [vmem:[%s0 + $0x10c] sm:$0xf]
  %v83 = vld [vmem:[%s0 + $0x110] sm:$0xf]
  %v84 = vld [vmem:[%s0 + $0x114] sm:$0xf]
  %v85 = vld [vmem:[%s0 + $0x118] sm:$0xf]
  %v86 = vld [vmem:[%s0 + $0x11c] sm:$0xf]
  %v87 = vld [vmem:[%s0 + $0x120] sm:$0xf]
  %v88 = vld [vmem:[%s0 + $0x124] sm:$0xf]
  %v89 = vld [vmem:[%s0 + $0x128] sm:$0xf]
  %v90 = vld [vmem:[%s0 + $0x12c] sm:$0xf]
  %v91 = vld [vmem:[%s0 + $0x130] sm:$0xf]
  %v92 = vld [vmem:[%s0 + $0x134] sm:$0xf]
  %v93 = vld [vmem:[%s0 + $0x138] sm:$0xf]
  %v94 = vld [vmem:[%s0 + $0x13c] sm:$0xf]
  %v95 = vld [vmem:[%s0 + $0x140] sm:$0xf]
  %v96 = vld [vmem:[%s0 + $0x144] sm:$0xf]
  %v97 = vld [vmem:[%s0 + $0x148] sm:$0xf]
  %v98 = vld [vmem:[%s0 + $0x14c] sm:$0xf]
  %v99 = vld [vmem:[%s0 + $0x150] sm:$0xf]
  %v100 = vld [vmem:[%s0 + $0x154] sm:$0xf]
  %v101 = vld [vmem:[%s0 + $0x158] sm:$0xf]
  %v102 = vld [vmem:[%s0 + $0x15c] sm:$0xf]
  %v103 = vld [vmem:[%s0 + $0x160] sm:$0xf]
  %v104 = vld [vmem:[%s0 + $0x164] sm:$0xf]
  %v105 = vld [vmem:[%s0 + $0x168] sm:$0xf]
  %v106 = vld [vmem:[%s0 + $0x16c] sm:$0xf]
  %v107 = vld [vmem:[%s0 + $0x170] sm:$0xf]
  %v108 = vld [vmem:[%s0 + $0x174] sm:$0xf]
  %v109 = vld [vmem:[%s0 + $0x178] sm:$0xf]
  %v110 = vld [vmem:[%s0 + $0x17c] sm:$0xf]
  %v111 = vld [vmem:[%s0 + $0x180] sm:$0xf]
  %v112 = vld [vmem:[%s0 + $0x184] sm:$0xf]
  %v113 = vld [vmem:[%s0 + $0x188] sm:$0xf]
  %v114 = vld [vmem:[%s0 + $0x18c] sm:$0xf]
  %v115 = vld [vmem:[%s0 + $0x190] sm:$0xf]
  %v116 = vld [vmem:[%s0 + $0x194] sm:$0xf]
  %v117 = vld [vmem:[%s0 + $0x198] sm:$0xf]
  %v118 = vld [vmem:[%s0 + $0x19c] sm:$0xf]
  %v119 = vld [vmem:[%s0 + $0x1a0] sm:$0xf]
  %v120 = vld [vmem:[%s0 + $0x1a4] sm:$0xf]
  %v121 = vld [vmem:[%s0 + $0x1a8] sm:$0xf]
  %v122 = vld [vmem:[%s0 + $0x1ac] sm:$0xf]
  %v123 = vld [vmem:[%s0 + $0x1b0] sm:$0xf]
  %v124 = vld [vmem:[%s0 + $0x1b4] sm:$0xf]
  %v125 = vld [vmem:[%s0 + $0x1b8] sm:$0xf]
  %v126 = vld [vmem:[%s0 + $0x1bc] sm:$0xf]
  %v127 = vld [vmem:[%s0 + $0x1c0] sm:$0xf]
  %v128 = vld [vmem:[%s0 + $0x1c4] sm:$0xf]
  %v129 = vld [vmem:[%s0 + $0x1c8] sm:$0xf]
  %v130 = vld [vmem:[%s0 + $0x1cc] sm:$0xf]
  %v131 = vld [vmem:[%s0 + $0x1d0] sm:$0xf]
  %v132 = vld [vmem:[%s0 + $0x1d4] sm:$0xf]
  %v133 = vld [vmem:[%s0 + $0x1d8] sm:$0xf]
  %v134 = vld [vmem:[%s0 + $0x1dc] sm:$0xf]
  %v135 = vld [vmem:[%s0 + $0x1e0] sm:$0xf]
  %v136 = vld [vmem:[%s0 + $0x1e4] sm:$0xf]
  %v137 = vld [vmem:[%s0 + $0x1e8] sm:$0xf]
  %v138 = vld [vmem:[%s0 + $0x1ec] sm:$0xf]
  %v139 = vld [vmem:[%s0 + $0x1f0] sm:$0xf]
  %v140 = vld [vmem:[%s0 + $0x1f4] sm:$0xf]
  %v141 = vld [vmem:[%s0 + $0x1f8] sm:$0xf]
  %v142 = vld [vmem:[%s0 + $0x1fc] sm:$0xf]
  %v143 = vld [vmem:[%s0 + $0x200] sm:$0xf]
  %v144 = vld [vmem:[%s0 + $0x204] sm:$0xf]
  %v145 = vld [vmem:[%s0 + $0x208] sm:$0xf]
  %v146 = vld [vmem:[%s0 + $0x20c] sm:$0xf]
  %v147 = vld [vmem:[%s0 + $0x210] sm:$0xf]
  %v148 = vld [vmem:[%s0 + $0x214] sm:$0xf]
  %v149 = vld [vmem:[%s0 + $0x218] sm:$0xf]
  %v150 = vld [vmem:[%s0 + $0x21c] sm:$0xf]
  %v151 = vld [vmem:[%s0 + $0x220] sm:$0xf]
  %v152 = vld [vmem:[%s0 + $0x224] sm:$0xf]
  %v153 = vld [vmem:[%s0 + $0x228] sm:$0xf]
  %v154 = vld [vmem:[%s0 + $0x22c] sm:$0xf]
  %v155 = vld [vmem:[%s0 + $0x230] sm:$0xf]
  %v156 = vld [vmem:[%s0 + $0x234] sm:$0xf]
  %v157 = vld [vmem:[%s0 + $0x238] sm:$0xf]
  %v158 = vld [vmem:[%s0 + $0x23c] sm:$0xf]
  %v159 = vld [vmem:[%s1] sm:$0xf]
  %v160 = vld [vmem:[%s1 + $0x4] sm:$0xf]
  %v161 = vld [vmem:[%s1 + $0x8] sm:$0xf]
  %v162 = vld [vmem:[%s1 + $0xc] sm:$0x1]
  %v307 = vunpack.c.l.b16 %v15
  %v308 = vunpack.c.l.b16 %v16
  %v309 = vunpack.c.l.b16 %v17
  %v310 = vunpack.c.l.b16 %v18
  %v311 = vunpack.c.l.b16 %v19
  %v312 = vunpack.c.l.b16 %v20
  %v313 = vunpack.c.l.b16 %v21
  %v314 = vunpack.c.l.b16 %v22
  %v315 = vunpack.c.l.b16 %v23
  %v316 = vunpack.c.l.b16 %v24
  %v317 = vunpack.c.l.b16 %v25
  %v318 = vunpack.c.l.b16 %v26
  %v319 = vunpack.c.l.b16 %v27
  %v320 = vunpack.c.l.b16 %v28
  %v321 = vunpack.c.l.b16 %v29
  %v322 = vunpack.c.l.b16 %v30
  %v323 = vunpack.c.l.b16 %v31
  %v324 = vunpack.c.l.b16 %v32
  %v325 = vunpack.c.l.b16 %v33
  %v326 = vunpack.c.l.b16 %v34
  %v327 = vunpack.c.l.b16 %v35
  %v328 = vunpack.c.l.b16 %v36
  %v329 = vunpack.c.l.b16 %v37
  %v330 = vunpack.c.l.b16 %v38
  %v331 = vunpack.c.l.b16 %v39
  %v332 = vunpack.c.l.b16 %v40
  %v333 = vunpack.c.l.b16 %v41
  %v334 = vunpack.c.l.b16 %v42
  %v335 = vunpack.c.l.b16 %v43
  %v336 = vunpack.c.l.b16 %v44
  %v337 = vunpack.c.l.b16 %v45
  %v338 = vunpack.c.l.b16 %v46
  %v339 = vunpack.c.l.b16 %v47
  %v340 = vunpack.c.l.b16 %v48
  %v341 = vunpack.c.l.b16 %v49
  %v342 = vunpack.c.l.b16 %v50
  %v343 = vunpack.c.l.b16 %v51
  %v344 = vunpack.c.l.b16 %v52
  %v345 = vunpack.c.l.b16 %v53
  %v346 = vunpack.c.l.b16 %v54
  %v347 = vunpack.c.l.b16 %v55
  %v348 = vunpack.c.l.b16 %v56
  %v349 = vunpack.c.l.b16 %v57
  %v350 = vunpack.c.l.b16 %v58
  %v351 = vunpack.c.l.b16 %v59
  %v352 = vunpack.c.l.b16 %v60
  %v353 = vunpack.c.l.b16 %v61
  %v354 = vunpack.c.l.b16 %v62
  %v355 = vunpack.c.l.b16 %v63
  %v356 = vunpack.c.l.b16 %v64
  %v357 = vunpack.c.l.b16 %v65
  %v358 = vunpack.c.l.b16 %v66
  %v359 = vunpack.c.l.b16 %v67
  %v360 = vunpack.c.l.b16 %v68
  %v361 = vunpack.c.l.b16 %v69
  %v362 = vunpack.c.l.b16 %v70
  %v363 = vunpack.c.l.b16 %v71
  %v364 = vunpack.c.l.b16 %v72
  %v365 = vunpack.c.l.b16 %v73
  %v366 = vunpack.c.l.b16 %v74
  %v367 = vunpack.c.l.b16 %v75
  %v368 = vunpack.c.l.b16 %v76
  %v369 = vunpack.c.l.b16 %v77
  %v370 = vunpack.c.l.b16 %v78
  %v371 = vunpack.c.l.b16 %v79
  %v372 = vunpack.c.l.b16 %v80
  %v373 = vunpack.c.l.b16 %v81
  %v374 = vunpack.c.l.b16 %v82
  %v375 = vunpack.c.l.b16 %v83
  %v376 = vunpack.c.l.b16 %v84
  %v377 = vunpack.c.l.b16 %v85
  %v378 = vunpack.c.l.b16 %v86
  %v379 = vunpack.c.l.b16 %v87
  %v380 = vunpack.c.l.b16 %v88
  %v381 = vunpack.c.l.b16 %v89
  %v382 = vunpack.c.l.b16 %v90
  %v383 = vunpack.c.l.b16 %v91
  %v384 = vunpack.c.l.b16 %v92
  %v385 = vunpack.c.l.b16 %v93
  %v386 = vunpack.c.l.b16 %v94
  %v387 = vunpack.c.l.b16 %v95
  %v388 = vunpack.c.l.b16 %v96
  %v389 = vunpack.c.l.b16 %v97
  %v390 = vunpack.c.l.b16 %v98
  %v391 = vunpack.c.l.b16 %v99
  %v392 = vunpack.c.l.b16 %v100
  %v393 = vunpack.c.l.b16 %v101
  %v394 = vunpack.c.l.b16 %v102
  %v395 = vunpack.c.l.b16 %v103
  %v396 = vunpack.c.l.b16 %v104
  %v397 = vunpack.c.l.b16 %v105
  %v398 = vunpack.c.l.b16 %v106
  %v399 = vunpack.c.l.b16 %v107
  %v400 = vunpack.c.l.b16 %v108
  %v401 = vunpack.c.l.b16 %v109
  %v402 = vunpack.c.l.b16 %v110
  %v403 = vunpack.c.l.b16 %v111
  %v404 = vunpack.c.l.b16 %v112
  %v405 = vunpack.c.l.b16 %v113
  %v406 = vunpack.c.l.b16 %v114
  %v407 = vunpack.c.l.b16 %v115
  %v408 = vunpack.c.l.b16 %v116
  %v409 = vunpack.c.l.b16 %v117
  %v410 = vunpack.c.l.b16 %v118
  %v411 = vunpack.c.l.b16 %v119
  %v412 = vunpack.c.l.b16 %v120
  %v413 = vunpack.c.l.b16 %v121
  %v414 = vunpack.c.l.b16 %v122
  %v415 = vunpack.c.l.b16 %v123
  %v416 = vunpack.c.l.b16 %v124
  %v417 = vunpack.c.l.b16 %v125
  %v418 = vunpack.c.l.b16 %v126
  %v419 = vunpack.c.l.b16 %v127
  %v420 = vunpack.c.l.b16 %v128
  %v421 = vunpack.c.l.b16 %v129
  %v422 = vunpack.c.l.b16 %v130
  %v423 = vunpack.c.l.b16 %v131
  %v424 = vunpack.c.l.b16 %v132
  %v425 = vunpack.c.l.b16 %v133
  %v426 = vunpack.c.l.b16 %v134
  %v427 = vunpack.c.l.b16 %v135
  %v428 = vunpack.c.l.b16 %v136
  %v429 = vunpack.c.l.b16 %v137
  %v430 = vunpack.c.l.b16 %v138
  %v431 = vunpack.c.l.b16 %v139
  %v432 = vunpack.c.l.b16 %v140
  %v433 = vunpack.c.l.b16 %v141
  %v434 = vunpack.c.l.b16 %v142
  %v435 = vunpack.c.l.b16 %v143
  %v436 = vunpack.c.l.b16 %v144
  %v437 = vunpack.c.l.b16 %v145
  %v438 = vunpack.c.l.b16 %v146
  %v439 = vunpack.c.l.b16 %v147
  %v440 = vunpack.c.l.b16 %v148
  %v441 = vunpack.c.l.b16 %v149
  %v442 = vunpack.c.l.b16 %v150
  %v443 = vunpack.c.l.b16 %v151
  %v444 = vunpack.c.l.b16 %v152
  %v445 = vunpack.c.l.b16 %v153
  %v446 = vunpack.c.l.b16 %v154
  %v447 = vunpack.c.l.b16 %v155
  %v448 = vunpack.c.l.b16 %v156
  %v449 = vunpack.c.l.b16 %v157
  %v450 = vunpack.c.l.b16 %v158
  %v451 = vpack.c.b16 %v308, %v307
  %v452 = vpack.c.b16 %v310, %v309
  %v453 = vpack.c.b16 %v312, %v311
  %v454 = vpack.c.b16 %v314, %v313
  %v455 = vpack.c.b16 %v316, %v315
  %v456 = vpack.c.b16 %v318, %v317
  %v457 = vpack.c.b16 %v320, %v319
  %v458 = vpack.c.b16 %v322, %v321
  %v459 = vpack.c.b16 %v324, %v323
  %v460 = vpack.c.b16 %v326, %v325
  %v461 = vpack.c.b16 %v328, %v327
  %v462 = vpack.c.b16 %v330, %v329
  %v463 = vpack.c.b16 %v332, %v331
  %v464 = vpack.c.b16 %v334, %v333
  %v465 = vpack.c.b16 %v336, %v335
  %v466 = vpack.c.b16 %v338, %v337
  %v467 = vpack.c.b16 %v340, %v339
  %v468 = vpack.c.b16 %v342, %v341
  %v469 = vpack.c.b16 %v344, %v343
  %v470 = vpack.c.b16 %v346, %v345
  %v471 = vpack.c.b16 %v348, %v347
  %v472 = vpack.c.b16 %v350, %v349
  %v473 = vpack.c.b16 %v352, %v351
  %v474 = vpack.c.b16 %v354, %v353
  %v475 = vpack.c.b16 %v356, %v355
  %v476 = vpack.c.b16 %v358, %v357
  %v477 = vpack.c.b16 %v360, %v359
  %v478 = vpack.c.b16 %v362, %v361
  %v479 = vpack.c.b16 %v364, %v363
  %v480 = vpack.c.b16 %v366, %v365
  %v481 = vpack.c.b16 %v368, %v367
  %v482 = vpack.c.b16 %v370, %v369
  %v483 = vpack.c.b16 %v372, %v371
  %v484 = vpack.c.b16 %v374, %v373
  %v485 = vpack.c.b16 %v376, %v375
  %v486 = vpack.c.b16 %v378, %v377
  %v487 = vpack.c.b16 %v380, %v379
  %v488 = vpack.c.b16 %v382, %v381
  %v489 = vpack.c.b16 %v384, %v383
  %v490 = vpack.c.b16 %v386, %v385
  %v491 = vpack.c.b16 %v388, %v387
  %v492 = vpack.c.b16 %v390, %v389
  %v493 = vpack.c.b16 %v392, %v391
  %v494 = vpack.c.b16 %v394, %v393
  %v495 = vpack.c.b16 %v396, %v395
  %v496 = vpack.c.b16 %v398, %v397
  %v497 = vpack.c.b16 %v400, %v399
  %v498 = vpack.c.b16 %v402, %v401
  %v499 = vpack.c.b16 %v404, %v403
  %v500 = vpack.c.b16 %v406, %v405
  %v501 = vpack.c.b16 %v408, %v407
  %v502 = vpack.c.b16 %v410, %v409
  %v503 = vpack.c.b16 %v412, %v411
  %v504 = vpack.c.b16 %v414, %v413
  %v505 = vpack.c.b16 %v416, %v415
  %v506 = vpack.c.b16 %v418, %v417
  %v507 = vpack.c.b16 %v420, %v419
  %v508 = vpack.c.b16 %v422, %v421
  %v509 = vpack.c.b16 %v424, %v423
  %v510 = vpack.c.b16 %v426, %v425
  %v511 = vpack.c.b16 %v428, %v427
  %v512 = vpack.c.b16 %v430, %v429
  %v513 = vpack.c.b16 %v432, %v431
  %v514 = vpack.c.b16 %v434, %v433
  %v515 = vpack.c.b16 %v436, %v435
  %v516 = vpack.c.b16 %v438, %v437
  %v517 = vpack.c.b16 %v440, %v439
  %v518 = vpack.c.b16 %v442, %v441
  %v519 = vpack.c.b16 %v444, %v443
  %v520 = vpack.c.b16 %v446, %v445
  %v521 = vpack.c.b16 %v448, %v447
  %v522 = vpack.c.b16 %v450, %v449
  %v527 = vunpack.c.l.b16 %v159
  %v528 = vunpack.c.l.b16 %v160
  %v529 = vunpack.c.l.b16 %v161
  %v530 = vunpack.c.l.b16 %v162
  %v531 = vpack.c.b16 %v528, %v527
  %v532 = vpack.c.b16 %v530, %v529
  %vm534 = vcmask 203776
  %v536 = vsel %vm534, %v451, 0
  %v539 = vsel %vm534, %v452, 0
  %v542 = vsel %vm534, %v453, 0
  %v545 = vsel %vm534, %v454, 0
  %v548 = vsel %vm534, %v455, 0
  %v551 = vsel %vm534, %v456, 0
  %v554 = vsel %vm534, %v457, 0
  %v557 = vsel %vm534, %v458, 0
  %v560 = vsel %vm534, %v459, 0
  %v563 = vsel %vm534, %v460, 0
  %v566 = vsel %vm534, %v461, 0
  %v569 = vsel %vm534, %v462, 0
  %v572 = vsel %vm534, %v463, 0
  %v575 = vsel %vm534, %v464, 0
  %v578 = vsel %vm534, %v465, 0
  %v581 = vsel %vm534, %v466, 0
  %v584 = vsel %vm534, %v467, 0
  %v587 = vsel %vm534, %v468, 0
  %v590 = vsel %vm534, %v469, 0
  %v593 = vsel %vm534, %v470, 0
  %v596 = vsel %vm534, %v471, 0
  %v599 = vsel %vm534, %v472, 0
  %v602 = vsel %vm534, %v473, 0
  %v605 = vsel %vm534, %v474, 0
  %v608 = vsel %vm534, %v475, 0
  %v611 = vsel %vm534, %v476, 0
  %v614 = vsel %vm534, %v477, 0
  %v617 = vsel %vm534, %v478, 0
  %v620 = vsel %vm534, %v479, 0
  %v623 = vsel %vm534, %v480, 0
  %v626 = vsel %vm534, %v481, 0
  %v629 = vsel %vm534, %v482, 0
  %v632 = vsel %vm534, %v483, 0
  %v635 = vsel %vm534, %v484, 0
  %v638 = vsel %vm534, %v485, 0
  %v641 = vsel %vm534, %v486, 0
  %v644 = vsel %vm534, %v487, 0
  %v647 = vsel %vm534, %v488, 0
  %v650 = vsel %vm534, %v489, 0
  %v653 = vsel %vm534, %v490, 0
  %v656 = vsel %vm534, %v491, 0
  %v659 = vsel %vm534, %v492, 0
  %v662 = vsel %vm534, %v493, 0
  %v665 = vsel %vm534, %v494, 0
  %v668 = vsel %vm534, %v495, 0
  %v671 = vsel %vm534, %v496, 0
  %v674 = vsel %vm534, %v497, 0
  %v677 = vsel %vm534, %v498, 0
  %v680 = vsel %vm534, %v499, 0
  %v683 = vsel %vm534, %v500, 0
  %v686 = vsel %vm534, %v501, 0
  %v689 = vsel %vm534, %v502, 0
  %v692 = vsel %vm534, %v503, 0
  %v695 = vsel %vm534, %v504, 0
  %v698 = vsel %vm534, %v505, 0
  %v701 = vsel %vm534, %v506, 0
  %v704 = vsel %vm534, %v507, 0
  %v707 = vsel %vm534, %v508, 0
  %v710 = vsel %vm534, %v509, 0
  %v713 = vsel %vm534, %v510, 0
  %v716 = vsel %vm534, %v511, 0
  %v719 = vsel %vm534, %v512, 0
  %v722 = vsel %vm534, %v513, 0
  %v725 = vsel %vm534, %v514, 0
  %v728 = vsel %vm534, %v515, 0
  %v731 = vsel %vm534, %v516, 0
  %v734 = vsel %vm534, %v517, 0
  %v737 = vsel %vm534, %v518, 0
  %v740 = vsel %vm534, %v519, 0
  %v743 = vsel %vm534, %v520, 0
  %v746 = vsel %vm534, %v521, 0
  %v749 = vsel %vm534, %v522, 0
  %vm751 = vcmask 1043456
  %vm752 = vcmask 1044480
  %v753 = vsel %vm751, 4294967295, 65535
  %v754 = vsel %vm752, %v753, 0
  %v756 = vand.u32 %v532, %v754
  %758 = vmatprep.subr.bf16.mxu0 0
  %759 = vmatpush1.bf16.msra.mxu0 0
  %760 = vmatprep.subr.bf16.mxu0 0
  %761 = vmatpush1.bf16.msra.mxu0 0
  %762 = vmatprep.subr.bf16.mxu0 0
  %763 = vmatpush1.bf16.msra.mxu0 0
  %764 = vmatprep.subr.bf16.mxu0 0
  %765 = vmatpush1.bf16.msra.mxu0 0
  %766 = vmatprep.subr.bf16.mxu0 0
  %767 = vmatpush1.bf16.msra.mxu0 0
  %768 = vmatprep.subr.bf16.mxu0 0
  %769 = vmatpush1.bf16.msra.mxu0 0
  %770 = vmatprep.subr.bf16.mxu0 0
  %771 = vmatpush1.bf16.msra.mxu0 %v756
  %772 = vmatprep.subr.bf16.mxu0 0
  %773 = vmatpush1.bf16.msra.mxu0 %v531
  %774 = vmatprep.subr.bf16.mxu0 0
  %775 = vmatpush2.bf16.msra.mxu0 0
  %776 = vmatprep.subr.bf16.mxu0 0
  %777 = vmatpush2.bf16.msra.mxu0 0
  %778 = vmatprep.subr.bf16.mxu0 0
  %779 = vmatpush2.bf16.msra.mxu0 0
  %780 = vmatprep.subr.bf16.mxu0 0
  %781 = vmatpush2.bf16.msra.mxu0 0
  %782 = vmatprep.subr.bf16.mxu0 0
  %783 = vmatpush2.bf16.msra.mxu0 0
  %784 = vmatprep.subr.bf16.mxu0 0
  %785 = vmatpush2.bf16.msra.mxu0 0
  %786 = vmatprep.subr.bf16.mxu0 0
  %787 = vmatpush2.bf16.msra.mxu0 0
  %788 = vmatprep.subr.bf16.mxu0 0
  %789 = vmatpush2.bf16.msra.mxu0 0
  %790 = vmatprep.mubr.bf16.mxu0 0
  %791 = vmatmul.mubr.bf16.gmra.mxu0 %v536
  %v792 = vpop.f32.mrf.mxu0
  %v793 = vadd.f32 0.0, %v792
  %v794 = vpop.f32.mrf.mxu0
  %v795 = vpop.f32.mrf.mxu0
  %v796 = vadd.f32 0.0, %v795
  %v797 = vpop.f32.mrf.mxu0
  %798 = vmatprep.mubr.bf16.mxu0 0
  %799 = vmatmul.mubr.bf16.gmra.mxu0 %v539
  %v800 = vpop.f32.mrf.mxu0
  %v801 = vadd.f32 0.0, %v800
  %v802 = vpop.f32.mrf.mxu0
  %v803 = vpop.f32.mrf.mxu0
  %v804 = vadd.f32 0.0, %v803
  %v805 = vpop.f32.mrf.mxu0
  %806 = vmatprep.mubr.bf16.mxu0 0
  %807 = vmatmul.mubr.bf16.gmra.mxu0 %v542
  %v808 = vpop.f32.mrf.mxu0
  %v809 = vadd.f32 0.0, %v808
  %v810 = vpop.f32.mrf.mxu0
  %v811 = vpop.f32.mrf.mxu0
  %v812 = vadd.f32 0.0, %v811
  %v813 = vpop.f32.mrf.mxu0
  %814 = vmatprep.mubr.bf16.mxu0 0
  %815 = vmatmul.mubr.bf16.gmra.mxu0 %v545
  %v816 = vpop.f32.mrf.mxu0
  %v817 = vadd.f32 0.0, %v816
  %v818 = vpop.f32.mrf.mxu0
  %v819 = vpop.f32.mrf.mxu0
  %v820 = vadd.f32 0.0, %v819
  %v821 = vpop.f32.mrf.mxu0
  %822 = vmatprep.mubr.bf16.mxu0 0
  %823 = vmatmul.mubr.bf16.gmra.mxu0 %v548
  %v824 = vpop.f32.mrf.mxu0
  %v825 = vadd.f32 0.0, %v824
  %v826 = vpop.f32.mrf.mxu0
  %v827 = vpop.f32.mrf.mxu0
  %v828 = vadd.f32 0.0, %v827
  %v829 = vpop.f32.mrf.mxu0
  %830 = vmatprep.mubr.bf16.mxu0 0
  %831 = vmatmul.mubr.bf16.gmra.mxu0 %v551
  %v832 = vpop.f32.mrf.mxu0
  %v833 = vadd.f32 0.0, %v832
  %v834 = vpop.f32.mrf.mxu0
  %v835 = vpop.f32.mrf.mxu0
  %v836 = vadd.f32 0.0, %v835
  %v837 = vpop.f32.mrf.mxu0
  %838 = vmatprep.mubr.bf16.mxu0 0
  %839 = vmatmul.mubr.bf16.gmra.mxu0 %v554
  %v840 = vpop.f32.mrf.mxu0
  %v841 = vadd.f32 0.0, %v840
  %v842 = vpop.f32.mrf.mxu0
  %v843 = vpop.f32.mrf.mxu0
  %v844 = vadd.f32 0.0, %v843
  %v845 = vpop.f32.mrf.mxu0
  %846 = vmatprep.mubr.bf16.mxu0 0
  %847 = vmatmul.mubr.bf16.gmra.mxu0 %v557
  %v848 = vpop.f32.mrf.mxu0
  %v849 = vadd.f32 0.0, %v848
  %v850 = vpop.f32.mrf.mxu0
  %v851 = vpop.f32.mrf.mxu0
  %v852 = vadd.f32 0.0, %v851
  %v853 = vpop.f32.mrf.mxu0
  %854 = vmatprep.mubr.bf16.mxu0 0
  %855 = vmatmul.mubr.bf16.gmra.mxu0 %v560
  %v856 = vpop.f32.mrf.mxu0
  %v857 = vadd.f32 0.0, %v856
  %v858 = vpop.f32.mrf.mxu0
  %v859 = vpop.f32.mrf.mxu0
  %v860 = vadd.f32 0.0, %v859
  %v861 = vpop.f32.mrf.mxu0
  %862 = vmatprep.mubr.bf16.mxu0 0
  %863 = vmatmul.mubr.bf16.gmra.mxu0 %v563
  %v864 = vpop.f32.mrf.mxu0
  %v865 = vadd.f32 0.0, %v864
  %v866 = vpop.f32.mrf.mxu0
  %v867 = vpop.f32.mrf.mxu0
  %v868 = vadd.f32 0.0, %v867
  %v869 = vpop.f32.mrf.mxu0
  %870 = vmatprep.mubr.bf16.mxu0 0
  %871 = vmatmul.mubr.bf16.gmra.mxu0 %v566
  %v872 = vpop.f32.mrf.mxu0
  %v873 = vadd.f32 0.0, %v872
  %v874 = vpop.f32.mrf.mxu0
  %v875 = vpop.f32.mrf.mxu0
  %v876 = vadd.f32 0.0, %v875
  %v877 = vpop.f32.mrf.mxu0
  %878 = vmatprep.mubr.bf16.mxu0 0
  %879 = vmatmul.mubr.bf16.gmra.mxu0 %v569
  %v880 = vpop.f32.mrf.mxu0
  %v881 = vadd.f32 0.0, %v880
  %v882 = vpop.f32.mrf.mxu0
  %v883 = vpop.f32.mrf.mxu0
  %v884 = vadd.f32 0.0, %v883
  %v885 = vpop.f32.mrf.mxu0
  %886 = vmatprep.mubr.bf16.mxu0 0
  %887 = vmatmul.mubr.bf16.gmra.mxu0 %v572
  %v888 = vpop.f32.mrf.mxu0
  %v889 = vadd.f32 0.0, %v888
  %v890 = vpop.f32.mrf.mxu0
  %v891 = vpop.f32.mrf.mxu0
  %v892 = vadd.f32 0.0, %v891
  %v893 = vpop.f32.mrf.mxu0
  %894 = vmatprep.mubr.bf16.mxu0 0
  %895 = vmatmul.mubr.bf16.gmra.mxu0 %v575
  %v896 = vpop.f32.mrf.mxu0
  %v897 = vadd.f32 0.0, %v896
  %v898 = vpop.f32.mrf.mxu0
  %v899 = vpop.f32.mrf.mxu0
  %v900 = vadd.f32 0.0, %v899
  %v901 = vpop.f32.mrf.mxu0
  %902 = vmatprep.mubr.bf16.mxu0 0
  %903 = vmatmul.mubr.bf16.gmra.mxu0 %v578
  %v904 = vpop.f32.mrf.mxu0
  %v905 = vadd.f32 0.0, %v904
  %v906 = vpop.f32.mrf.mxu0
  %v907 = vpop.f32.mrf.mxu0
  %v908 = vadd.f32 0.0, %v907
  %v909 = vpop.f32.mrf.mxu0
  %910 = vmatprep.mubr.bf16.mxu0 0
  %911 = vmatmul.mubr.bf16.gmra.mxu0 %v581
  %v912 = vpop.f32.mrf.mxu0
  %v913 = vadd.f32 0.0, %v912
  %v914 = vpop.f32.mrf.mxu0
  %v915 = vpop.f32.mrf.mxu0
  %v916 = vadd.f32 0.0, %v915
  %v917 = vpop.f32.mrf.mxu0
  %918 = vmatprep.mubr.bf16.mxu0 0
  %919 = vmatmul.mubr.bf16.gmra.mxu0 %v584
  %v920 = vpop.f32.mrf.mxu0
  %v921 = vadd.f32 0.0, %v920
  %v922 = vpop.f32.mrf.mxu0
  %v923 = vpop.f32.mrf.mxu0
  %v924 = vadd.f32 0.0, %v923
  %v925 = vpop.f32.mrf.mxu0
  %926 = vmatprep.mubr.bf16.mxu0 0
  %927 = vmatmul.mubr.bf16.gmra.mxu0 %v587
  %v928 = vpop.f32.mrf.mxu0
  %v929 = vadd.f32 0.0, %v928
  %v930 = vpop.f32.mrf.mxu0
  %v931 = vpop.f32.mrf.mxu0
  %v932 = vadd.f32 0.0, %v931
  %v933 = vpop.f32.mrf.mxu0
  %934 = vmatprep.mubr.bf16.mxu0 0
  %935 = vmatmul.mubr.bf16.gmra.mxu0 %v590
  %v936 = vpop.f32.mrf.mxu0
  %v937 = vadd.f32 0.0, %v936
  %v938 = vpop.f32.mrf.mxu0
  %v939 = vpop.f32.mrf.mxu0
  %v940 = vadd.f32 0.0, %v939
  %v941 = vpop.f32.mrf.mxu0
  %942 = vmatprep.mubr.bf16.mxu0 0
  %943 = vmatmul.mubr.bf16.gmra.mxu0 %v593
  %v944 = vpop.f32.mrf.mxu0
  %v945 = vadd.f32 0.0, %v944
  %v946 = vpop.f32.mrf.mxu0
  %v947 = vpop.f32.mrf.mxu0
  %v948 = vadd.f32 0.0, %v947
  %v949 = vpop.f32.mrf.mxu0
  %950 = vmatprep.mubr.bf16.mxu0 0
  %951 = vmatmul.mubr.bf16.gmra.mxu0 %v596
  %v952 = vpop.f32.mrf.mxu0
  %v953 = vadd.f32 0.0, %v952
  %v954 = vpop.f32.mrf.mxu0
  %v955 = vpop.f32.mrf.mxu0
  %v956 = vadd.f32 0.0, %v955
  %v957 = vpop.f32.mrf.mxu0
  %958 = vmatprep.mubr.bf16.mxu0 0
  %959 = vmatmul.mubr.bf16.gmra.mxu0 %v599
  %v960 = vpop.f32.mrf.mxu0
  %v961 = vadd.f32 0.0, %v960
  %v962 = vpop.f32.mrf.mxu0
  %v963 = vpop.f32.mrf.mxu0
  %v964 = vadd.f32 0.0, %v963
  %v965 = vpop.f32.mrf.mxu0
  %966 = vmatprep.mubr.bf16.mxu0 0
  %967 = vmatmul.mubr.bf16.gmra.mxu0 %v602
  %v968 = vpop.f32.mrf.mxu0
  %v969 = vadd.f32 0.0, %v968
  %v970 = vpop.f32.mrf.mxu0
  %v971 = vpop.f32.mrf.mxu0
  %v972 = vadd.f32 0.0, %v971
  %v973 = vpop.f32.mrf.mxu0
  %974 = vmatprep.mubr.bf16.mxu0 0
  %975 = vmatmul.mubr.bf16.gmra.mxu0 %v605
  %v976 = vpop.f32.mrf.mxu0
  %v977 = vadd.f32 0.0, %v976
  %v978 = vpop.f32.mrf.mxu0
  %v979 = vpop.f32.mrf.mxu0
  %v980 = vadd.f32 0.0, %v979
  %v981 = vpop.f32.mrf.mxu0
  %982 = vmatprep.mubr.bf16.mxu0 0
  %983 = vmatmul.mubr.bf16.gmra.mxu0 %v608
  %v984 = vpop.f32.mrf.mxu0
  %v985 = vadd.f32 0.0, %v984
  %v986 = vpop.f32.mrf.mxu0
  %v987 = vpop.f32.mrf.mxu0
  %v988 = vadd.f32 0.0, %v987
  %v989 = vpop.f32.mrf.mxu0
  %990 = vmatprep.mubr.bf16.mxu0 0
  %991 = vmatmul.mubr.bf16.gmra.mxu0 %v611
  %v992 = vpop.f32.mrf.mxu0
  %v993 = vadd.f32 0.0, %v992
  %v994 = vpop.f32.mrf.mxu0
  %v995 = vpop.f32.mrf.mxu0
  %v996 = vadd.f32 0.0, %v995
  %v997 = vpop.f32.mrf.mxu0
  %998 = vmatprep.mubr.bf16.mxu0 0
  %999 = vmatmul.mubr.bf16.gmra.mxu0 %v614
  %v1000 = vpop.f32.mrf.mxu0
  %v1001 = vadd.f32 0.0, %v1000
  %v1002 = vpop.f32.mrf.mxu0
  %v1003 = vpop.f32.mrf.mxu0
  %v1004 = vadd.f32 0.0, %v1003
  %v1005 = vpop.f32.mrf.mxu0
  %1006 = vmatprep.mubr.bf16.mxu0 0
  %1007 = vmatmul.mubr.bf16.gmra.mxu0 %v617
  %v1008 = vpop.f32.mrf.mxu0
  %v1009 = vadd.f32 0.0, %v1008
  %v1010 = vpop.f32.mrf.mxu0
  %v1011 = vpop.f32.mrf.mxu0
  %v1012 = vadd.f32 0.0, %v1011
  %v1013 = vpop.f32.mrf.mxu0
  %1014 = vmatprep.mubr.bf16.mxu0 0
  %1015 = vmatmul.mubr.bf16.gmra.mxu0 %v620
  %v1016 = vpop.f32.mrf.mxu0
  %v1017 = vadd.f32 0.0, %v1016
  %v1018 = vpop.f32.mrf.mxu0
  %v1019 = vpop.f32.mrf.mxu0
  %v1020 = vadd.f32 0.0, %v1019
  %v1021 = vpop.f32.mrf.mxu0
  %1022 = vmatprep.mubr.bf16.mxu0 0
  %1023 = vmatmul.mubr.bf16.gmra.mxu0 %v623
  %v1024 = vpop.f32.mrf.mxu0
  %v1025 = vadd.f32 0.0, %v1024
  %v1026 = vpop.f32.mrf.mxu0
  %v1027 = vpop.f32.mrf.mxu0
  %v1028 = vadd.f32 0.0, %v1027
  %v1029 = vpop.f32.mrf.mxu0
  %1030 = vmatprep.mubr.bf16.mxu0 0
  %1031 = vmatmul.mubr.bf16.gmra.mxu0 %v626
  %v1032 = vpop.f32.mrf.mxu0
  %v1033 = vadd.f32 0.0, %v1032
  %v1034 = vpop.f32.mrf.mxu0
  %v1035 = vpop.f32.mrf.mxu0
  %v1036 = vadd.f32 0.0, %v1035
  %v1037 = vpop.f32.mrf.mxu0
  %1038 = vmatprep.mubr.bf16.mxu0 0
  %1039 = vmatmul.mubr.bf16.gmra.mxu0 %v629
  %v1040 = vpop.f32.mrf.mxu0
  %v1041 = vadd.f32 0.0, %v1040
  %v1042 = vpop.f32.mrf.mxu0
  %v1043 = vpop.f32.mrf.mxu0
  %v1044 = vadd.f32 0.0, %v1043
  %v1045 = vpop.f32.mrf.mxu0
  %1046 = vmatprep.mubr.bf16.mxu0 0
  %1047 = vmatmul.mubr.bf16.gmra.mxu0 %v632
  %v1048 = vpop.f32.mrf.mxu0
  %v1049 = vadd.f32 0.0, %v1048
  %v1050 = vpop.f32.mrf.mxu0
  %v1051 = vpop.f32.mrf.mxu0
  %v1052 = vadd.f32 0.0, %v1051
  %v1053 = vpop.f32.mrf.mxu0
  %1054 = vmatprep.mubr.bf16.mxu0 0
  %1055 = vmatmul.mubr.bf16.gmra.mxu0 %v635
  %v1056 = vpop.f32.mrf.mxu0
  %v1057 = vadd.f32 0.0, %v1056
  %v1058 = vpop.f32.mrf.mxu0
  %v1059 = vpop.f32.mrf.mxu0
  %v1060 = vadd.f32 0.0, %v1059
  %v1061 = vpop.f32.mrf.mxu0
  %1062 = vmatprep.mubr.bf16.mxu0 0
  %1063 = vmatmul.mubr.bf16.gmra.mxu0 %v638
  %v1064 = vpop.f32.mrf.mxu0
  %v1065 = vadd.f32 0.0, %v1064
  %v1066 = vpop.f32.mrf.mxu0
  %v1067 = vpop.f32.mrf.mxu0
  %v1068 = vadd.f32 0.0, %v1067
  %v1069 = vpop.f32.mrf.mxu0
  %1070 = vmatprep.mubr.bf16.mxu0 0
  %1071 = vmatmul.mubr.bf16.gmra.mxu0 %v641
  %v1072 = vpop.f32.mrf.mxu0
  %v1073 = vadd.f32 0.0, %v1072
  %v1074 = vpop.f32.mrf.mxu0
  %v1075 = vpop.f32.mrf.mxu0
  %v1076 = vadd.f32 0.0, %v1075
  %v1077 = vpop.f32.mrf.mxu0
  %1078 = vmatprep.mubr.bf16.mxu0 0
  %1079 = vmatmul.mubr.bf16.gmra.mxu0 %v644
  %v1080 = vpop.f32.mrf.mxu0
  %v1081 = vadd.f32 0.0, %v1080
  %v1082 = vpop.f32.mrf.mxu0
  %v1083 = vpop.f32.mrf.mxu0
  %v1084 = vadd.f32 0.0, %v1083
  %v1085 = vpop.f32.mrf.mxu0
  %1086 = vmatprep.mubr.bf16.mxu0 0
  %1087 = vmatmul.mubr.bf16.gmra.mxu0 %v647
  %v1088 = vpop.f32.mrf.mxu0
  %v1089 = vadd.f32 0.0, %v1088
  %v1090 = vpop.f32.mrf.mxu0
  %v1091 = vpop.f32.mrf.mxu0
  %v1092 = vadd.f32 0.0, %v1091
  %v1093 = vpop.f32.mrf.mxu0
  %1094 = vmatprep.mubr.bf16.mxu0 0
  %1095 = vmatmul.mubr.bf16.gmra.mxu0 %v650
  %v1096 = vpop.f32.mrf.mxu0
  %v1097 = vadd.f32 0.0, %v1096
  %v1098 = vpop.f32.mrf.mxu0
  %v1099 = vpop.f32.mrf.mxu0
  %v1100 = vadd.f32 0.0, %v1099
  %v1101 = vpop.f32.mrf.mxu0
  %1102 = vmatprep.mubr.bf16.mxu0 0
  %1103 = vmatmul.mubr.bf16.gmra.mxu0 %v653
  %v1104 = vpop.f32.mrf.mxu0
  %v1105 = vadd.f32 0.0, %v1104
  %v1106 = vpop.f32.mrf.mxu0
  %v1107 = vpop.f32.mrf.mxu0
  %v1108 = vadd.f32 0.0, %v1107
  %v1109 = vpop.f32.mrf.mxu0
  %1110 = vmatprep.mubr.bf16.mxu0 0
  %1111 = vmatmul.mubr.bf16.gmra.mxu0 %v656
  %v1112 = vpop.f32.mrf.mxu0
  %v1113 = vadd.f32 0.0, %v1112
  %v1114 = vpop.f32.mrf.mxu0
  %v1115 = vpop.f32.mrf.mxu0
  %v1116 = vadd.f32 0.0, %v1115
  %v1117 = vpop.f32.mrf.mxu0
  %1118 = vmatprep.mubr.bf16.mxu0 0
  %1119 = vmatmul.mubr.bf16.gmra.mxu0 %v659
  %v1120 = vpop.f32.mrf.mxu0
  %v1121 = vadd.f32 0.0, %v1120
  %v1122 = vpop.f32.mrf.mxu0
  %v1123 = vpop.f32.mrf.mxu0
  %v1124 = vadd.f32 0.0, %v1123
  %v1125 = vpop.f32.mrf.mxu0
  %1126 = vmatprep.mubr.bf16.mxu0 0
  %1127 = vmatmul.mubr.bf16.gmra.mxu0 %v662
  %v1128 = vpop.f32.mrf.mxu0
  %v1129 = vadd.f32 0.0, %v1128
  %v1130 = vpop.f32.mrf.mxu0
  %v1131 = vpop.f32.mrf.mxu0
  %v1132 = vadd.f32 0.0, %v1131
  %v1133 = vpop.f32.mrf.mxu0
  %1134 = vmatprep.mubr.bf16.mxu0 0
  %1135 = vmatmul.mubr.bf16.gmra.mxu0 %v665
  %v1136 = vpop.f32.mrf.mxu0
  %v1137 = vadd.f32 0.0, %v1136
  %v1138 = vpop.f32.mrf.mxu0
  %v1139 = vpop.f32.mrf.mxu0
  %v1140 = vadd.f32 0.0, %v1139
  %v1141 = vpop.f32.mrf.mxu0
  %1142 = vmatprep.mubr.bf16.mxu0 0
  %1143 = vmatmul.mubr.bf16.gmra.mxu0 %v668
  %v1144 = vpop.f32.mrf.mxu0
  %v1145 = vadd.f32 0.0, %v1144
  %v1146 = vpop.f32.mrf.mxu0
  %v1147 = vpop.f32.mrf.mxu0
  %v1148 = vadd.f32 0.0, %v1147
  %v1149 = vpop.f32.mrf.mxu0
  %1150 = vmatprep.mubr.bf16.mxu0 0
  %1151 = vmatmul.mubr.bf16.gmra.mxu0 %v671
  %v1152 = vpop.f32.mrf.mxu0
  %v1153 = vadd.f32 0.0, %v1152
  %v1154 = vpop.f32.mrf.mxu0
  %v1155 = vpop.f32.mrf.mxu0
  %v1156 = vadd.f32 0.0, %v1155
  %v1157 = vpop.f32.mrf.mxu0
  %1158 = vmatprep.mubr.bf16.mxu0 0
  %1159 = vmatmul.mubr.bf16.gmra.mxu0 %v674
  %v1160 = vpop.f32.mrf.mxu0
  %v1161 = vadd.f32 0.0, %v1160
  %v1162 = vpop.f32.mrf.mxu0
  %v1163 = vpop.f32.mrf.mxu0
  %v1164 = vadd.f32 0.0, %v1163
  %v1165 = vpop.f32.mrf.mxu0
  %1166 = vmatprep.mubr.bf16.mxu0 0
  %1167 = vmatmul.mubr.bf16.gmra.mxu0 %v677
  %v1168 = vpop.f32.mrf.mxu0
  %v1169 = vadd.f32 0.0, %v1168
  %v1170 = vpop.f32.mrf.mxu0
  %v1171 = vpop.f32.mrf.mxu0
  %v1172 = vadd.f32 0.0, %v1171
  %v1173 = vpop.f32.mrf.mxu0
  %1174 = vmatprep.mubr.bf16.mxu0 0
  %1175 = vmatmul.mubr.bf16.gmra.mxu0 %v680
  %v1176 = vpop.f32.mrf.mxu0
  %v1177 = vadd.f32 0.0, %v1176
  %v1178 = vpop.f32.mrf.mxu0
  %v1179 = vpop.f32.mrf.mxu0
  %v1180 = vadd.f32 0.0, %v1179
  %v1181 = vpop.f32.mrf.mxu0
  %1182 = vmatprep.mubr.bf16.mxu0 0
  %1183 = vmatmul.mubr.bf16.gmra.mxu0 %v683
  %v1184 = vpop.f32.mrf.mxu0
  %v1185 = vadd.f32 0.0, %v1184
  %v1186 = vpop.f32.mrf.mxu0
  %v1187 = vpop.f32.mrf.mxu0
  %v1188 = vadd.f32 0.0, %v1187
  %v1189 = vpop.f32.mrf.mxu0
  %1190 = vmatprep.mubr.bf16.mxu0 0
  %1191 = vmatmul.mubr.bf16.gmra.mxu0 %v686
  %v1192 = vpop.f32.mrf.mxu0
  %v1193 = vadd.f32 0.0, %v1192
  %v1194 = vpop.f32.mrf.mxu0
  %v1195 = vpop.f32.mrf.mxu0
  %v1196 = vadd.f32 0.0, %v1195
  %v1197 = vpop.f32.mrf.mxu0
  %1198 = vmatprep.mubr.bf16.mxu0 0
  %1199 = vmatmul.mubr.bf16.gmra.mxu0 %v689
  %v1200 = vpop.f32.mrf.mxu0
  %v1201 = vadd.f32 0.0, %v1200
  %v1202 = vpop.f32.mrf.mxu0
  %v1203 = vpop.f32.mrf.mxu0
  %v1204 = vadd.f32 0.0, %v1203
  %v1205 = vpop.f32.mrf.mxu0
  %1206 = vmatprep.mubr.bf16.mxu0 0
  %1207 = vmatmul.mubr.bf16.gmra.mxu0 %v692
  %v1208 = vpop.f32.mrf.mxu0
  %v1209 = vadd.f32 0.0, %v1208
  %v1210 = vpop.f32.mrf.mxu0
  %v1211 = vpop.f32.mrf.mxu0
  %v1212 = vadd.f32 0.0, %v1211
  %v1213 = vpop.f32.mrf.mxu0
  %1214 = vmatprep.mubr.bf16.mxu0 0
  %1215 = vmatmul.mubr.bf16.gmra.mxu0 %v695
  %v1216 = vpop.f32.mrf.mxu0
  %v1217 = vadd.f32 0.0, %v1216
  %v1218 = vpop.f32.mrf.mxu0
  %v1219 = vpop.f32.mrf.mxu0
  %v1220 = vadd.f32 0.0, %v1219
  %v1221 = vpop.f32.mrf.mxu0
  %1222 = vmatprep.mubr.bf16.mxu0 0
  %1223 = vmatmul.mubr.bf16.gmra.mxu0 %v698
  %v1224 = vpop.f32.mrf.mxu0
  %v1225 = vadd.f32 0.0, %v1224
  %v1226 = vpop.f32.mrf.mxu0
  %v1227 = vpop.f32.mrf.mxu0
  %v1228 = vadd.f32 0.0, %v1227
  %v1229 = vpop.f32.mrf.mxu0
  %1230 = vmatprep.mubr.bf16.mxu0 0
  %1231 = vmatmul.mubr.bf16.gmra.mxu0 %v701
  %v1232 = vpop.f32.mrf.mxu0
  %v1233 = vadd.f32 0.0, %v1232
  %v1234 = vpop.f32.mrf.mxu0
  %v1235 = vpop.f32.mrf.mxu0
  %v1236 = vadd.f32 0.0, %v1235
  %v1237 = vpop.f32.mrf.mxu0
  %1238 = vmatprep.mubr.bf16.mxu0 0
  %1239 = vmatmul.mubr.bf16.gmra.mxu0 %v704
  %v1240 = vpop.f32.mrf.mxu0
  %v1241 = vadd.f32 0.0, %v1240
  %v1242 = vpop.f32.mrf.mxu0
  %v1243 = vpop.f32.mrf.mxu0
  %v1244 = vadd.f32 0.0, %v1243
  %v1245 = vpop.f32.mrf.mxu0
  %1246 = vmatprep.mubr.bf16.mxu0 0
  %1247 = vmatmul.mubr.bf16.gmra.mxu0 %v707
  %v1248 = vpop.f32.mrf.mxu0
  %v1249 = vadd.f32 0.0, %v1248
  %v1250 = vpop.f32.mrf.mxu0
  %v1251 = vpop.f32.mrf.mxu0
  %v1252 = vadd.f32 0.0, %v1251
  %v1253 = vpop.f32.mrf.mxu0
  %1254 = vmatprep.mubr.bf16.mxu0 0
  %1255 = vmatmul.mubr.bf16.gmra.mxu0 %v710
  %v1256 = vpop.f32.mrf.mxu0
  %v1257 = vadd.f32 0.0, %v1256
  %v1258 = vpop.f32.mrf.mxu0
  %v1259 = vpop.f32.mrf.mxu0
  %v1260 = vadd.f32 0.0, %v1259
  %v1261 = vpop.f32.mrf.mxu0
  %1262 = vmatprep.mubr.bf16.mxu0 0
  %1263 = vmatmul.mubr.bf16.gmra.mxu0 %v713
  %v1264 = vpop.f32.mrf.mxu0
  %v1265 = vadd.f32 0.0, %v1264
  %v1266 = vpop.f32.mrf.mxu0
  %v1267 = vpop.f32.mrf.mxu0
  %v1268 = vadd.f32 0.0, %v1267
  %v1269 = vpop.f32.mrf.mxu0
  %1270 = vmatprep.mubr.bf16.mxu0 0
  %1271 = vmatmul.mubr.bf16.gmra.mxu0 %v716
  %v1272 = vpop.f32.mrf.mxu0
  %v1273 = vadd.f32 0.0, %v1272
  %v1274 = vpop.f32.mrf.mxu0
  %v1275 = vpop.f32.mrf.mxu0
  %v1276 = vadd.f32 0.0, %v1275
  %v1277 = vpop.f32.mrf.mxu0
  %1278 = vmatprep.mubr.bf16.mxu0 0
  %1279 = vmatmul.mubr.bf16.gmra.mxu0 %v719
  %v1280 = vpop.f32.mrf.mxu0
  %v1281 = vadd.f32 0.0, %v1280
  %v1282 = vpop.f32.mrf.mxu0
  %v1283 = vpop.f32.mrf.mxu0
  %v1284 = vadd.f32 0.0, %v1283
  %v1285 = vpop.f32.mrf.mxu0
  %1286 = vmatprep.mubr.bf16.mxu0 0
  %1287 = vmatmul.mubr.bf16.gmra.mxu0 %v722
  %v1288 = vpop.f32.mrf.mxu0
  %v1289 = vadd.f32 0.0, %v1288
  %v1290 = vpop.f32.mrf.mxu0
  %v1291 = vpop.f32.mrf.mxu0
  %v1292 = vadd.f32 0.0, %v1291
  %v1293 = vpop.f32.mrf.mxu0
  %1294 = vmatprep.mubr.bf16.mxu0 0
  %1295 = vmatmul.mubr.bf16.gmra.mxu0 %v725
  %v1296 = vpop.f32.mrf.mxu0
  %v1297 = vadd.f32 0.0, %v1296
  %v1298 = vpop.f32.mrf.mxu0
  %v1299 = vpop.f32.mrf.mxu0
  %v1300 = vadd.f32 0.0, %v1299
  %v1301 = vpop.f32.mrf.mxu0
  %1302 = vmatprep.mubr.bf16.mxu0 0
  %1303 = vmatmul.mubr.bf16.gmra.mxu0 %v728
  %v1304 = vpop.f32.mrf.mxu0
  %v1305 = vadd.f32 0.0, %v1304
  %v1306 = vpop.f32.mrf.mxu0
  %v1307 = vpop.f32.mrf.mxu0
  %v1308 = vadd.f32 0.0, %v1307
  %v1309 = vpop.f32.mrf.mxu0
  %1310 = vmatprep.mubr.bf16.mxu0 0
  %1311 = vmatmul.mubr.bf16.gmra.mxu0 %v731
  %v1312 = vpop.f32.mrf.mxu0
  %v1313 = vadd.f32 0.0, %v1312
  %v1314 = vpop.f32.mrf.mxu0
  %v1315 = vpop.f32.mrf.mxu0
  %v1316 = vadd.f32 0.0, %v1315
  %v1317 = vpop.f32.mrf.mxu0
  %1318 = vmatprep.mubr.bf16.mxu0 0
  %1319 = vmatmul.mubr.bf16.gmra.mxu0 %v734
  %v1320 = vpop.f32.mrf.mxu0
  %v1321 = vadd.f32 0.0, %v1320
  %v1322 = vpop.f32.mrf.mxu0
  %v1323 = vpop.f32.mrf.mxu0
  %v1324 = vadd.f32 0.0, %v1323
  %v1325 = vpop.f32.mrf.mxu0
  %1326 = vmatprep.mubr.bf16.mxu0 0
  %1327 = vmatmul.mubr.bf16.gmra.mxu0 %v737
  %v1328 = vpop.f32.mrf.mxu0
  %v1329 = vadd.f32 0.0, %v1328
  %v1330 = vpop.f32.mrf.mxu0
  %v1331 = vpop.f32.mrf.mxu0
  %v1332 = vadd.f32 0.0, %v1331
  %v1333 = vpop.f32.mrf.mxu0
  %1334 = vmatprep.mubr.bf16.mxu0 0
  %1335 = vmatmul.mubr.bf16.gmra.mxu0 %v740
  %v1336 = vpop.f32.mrf.mxu0
  %v1337 = vadd.f32 0.0, %v1336
  %v1338 = vpop.f32.mrf.mxu0
  %v1339 = vpop.f32.mrf.mxu0
  %v1340 = vadd.f32 0.0, %v1339
  %v1341 = vpop.f32.mrf.mxu0
  %1342 = vmatprep.mubr.bf16.mxu0 0
  %1343 = vmatmul.mubr.bf16.gmra.mxu0 %v743
  %v1344 = vpop.f32.mrf.mxu0
  %v1345 = vadd.f32 0.0, %v1344
  %v1346 = vpop.f32.mrf.mxu0
  %v1347 = vpop.f32.mrf.mxu0
  %v1348 = vadd.f32 0.0, %v1347
  %v1349 = vpop.f32.mrf.mxu0
  %1350 = vmatprep.mubr.bf16.mxu0 0
  %1351 = vmatmul.mubr.bf16.gmra.mxu0 %v746
  %v1352 = vpop.f32.mrf.mxu0
  %v1353 = vadd.f32 0.0, %v1352
  %v1354 = vpop.f32.mrf.mxu0
  %v1355 = vpop.f32.mrf.mxu0
  %v1356 = vadd.f32 0.0, %v1355
  %v1357 = vpop.f32.mrf.mxu0
  %1358 = vmatprep.mubr.bf16.mxu0 0
  %1359 = vmatmul.mubr.bf16.gmra.mxu0 %v749
  %v1360 = vpop.f32.mrf.mxu0
  %v1361 = vadd.f32 0.0, %v1360
  %v1362 = vpop.f32.mrf.mxu0
  %v1363 = vpop.f32.mrf.mxu0
  %v1364 = vadd.f32 0.0, %v1363
  %v1365 = vpop.f32.mrf.mxu0
  %1366 = vdwg.mxu0
  %v1367 = vmax.f32 %v793, %v937
  %v1368 = vmax.f32 %v796, %v940
  %v1369 = vmax.f32 %v801, %v945
  %v1370 = vmax.f32 %v804, %v948
  %v1371 = vmax.f32 %v809, %v953
  %v1372 = vmax.f32 %v812, %v956
  %v1373 = vmax.f32 %v817, %v961
  %v1374 = vmax.f32 %v820, %v964
  %v1375 = vmax.f32 %v825, %v969
  %v1376 = vmax.f32 %v828, %v972
  %v1377 = vmax.f32 %v833, %v977
  %v1378 = vmax.f32 %v836, %v980
  %v1379 = vmax.f32 %v841, %v985
  %v1380 = vmax.f32 %v844, %v988
  %v1381 = vmax.f32 %v849, %v993
  %v1382 = vmax.f32 %v852, %v996
  %v1383 = vmax.f32 %v857, %v1001
  %v1384 = vmax.f32 %v860, %v1004
  %v1385 = vmax.f32 %v865, %v1009
  %v1386 = vmax.f32 %v868, %v1012
  %v1387 = vmax.f32 %v873, %v1017
  %v1388 = vmax.f32 %v876, %v1020
  %v1389 = vmax.f32 %v881, %v1025
  %v1390 = vmax.f32 %v884, %v1028
  %v1391 = vmax.f32 %v889, %v1033
  %v1392 = vmax.f32 %v892, %v1036
  %v1393 = vmax.f32 %v897, %v1041
  %v1394 = vmax.f32 %v900, %v1044
  %v1395 = vmax.f32 %v905, %v1049
  %v1396 = vmax.f32 %v908, %v1052
  %v1397 = vmax.f32 %v913, %v1057
  %v1398 = vmax.f32 %v916, %v1060
  %v1399 = vmax.f32 %v921, %v1065
  %v1400 = vmax.f32 %v924, %v1068
  %v1401 = vmax.f32 %v929, %v1073
  %v1402 = vmax.f32 %v932, %v1076
  %v1403 = vmax.f32 %v1081, %v1225
  %v1404 = vmax.f32 %v1084, %v1228
  %v1405 = vmax.f32 %v1089, %v1233
  %v1406 = vmax.f32 %v1092, %v1236
  %v1407 = vmax.f32 %v1097, %v1241
  %v1408 = vmax.f32 %v1100, %v1244
  %v1409 = vmax.f32 %v1105, %v1249
  %v1410 = vmax.f32 %v1108, %v1252
  %v1411 = vmax.f32 %v1113, %v1257
  %v1412 = vmax.f32 %v1116, %v1260
  %v1413 = vmax.f32 %v1121, %v1265
  %v1414 = vmax.f32 %v1124, %v1268
  %v1415 = vmax.f32 %v1129, %v1273
  %v1416 = vmax.f32 %v1132, %v1276
  %v1417 = vmax.f32 %v1137, %v1281
  %v1418 = vmax.f32 %v1140, %v1284
  %v1419 = vmax.f32 %v1145, %v1289
  %v1420 = vmax.f32 %v1148, %v1292
  %v1421 = vmax.f32 %v1153, %v1297
  %v1422 = vmax.f32 %v1156, %v1300
  %v1423 = vmax.f32 %v1161, %v1305
  %v1424 = vmax.f32 %v1164, %v1308
  %v1425 = vmax.f32 %v1169, %v1313
  %v1426 = vmax.f32 %v1172, %v1316
  %v1427 = vmax.f32 %v1177, %v1321
  %v1428 = vmax.f32 %v1180, %v1324
  %v1429 = vmax.f32 %v1185, %v1329
  %v1430 = vmax.f32 %v1188, %v1332
  %v1431 = vmax.f32 %v1193, %v1337
  %v1432 = vmax.f32 %v1196, %v1340
  %v1433 = vmax.f32 %v1201, %v1345
  %v1434 = vmax.f32 %v1204, %v1348
  %v1435 = vmax.f32 %v1209, %v1353
  %v1436 = vmax.f32 %v1212, %v1356
  %v1437 = vmax.f32 %v1217, %v1361
  %v1438 = vmax.f32 %v1220, %v1364
  %v1439 = vmax.f32 %v1367, %v1403
  %v1440 = vmax.f32 %v1368, %v1404
  %v1441 = vmax.f32 %v1369, %v1405
  %v1442 = vmax.f32 %v1370, %v1406
  %v1443 = vmax.f32 %v1371, %v1407
  %v1444 = vmax.f32 %v1372, %v1408
  %v1445 = vmax.f32 %v1373, %v1409
  %v1446 = vmax.f32 %v1374, %v1410
  %v1447 = vmax.f32 %v1375, %v1411
  %v1448 = vmax.f32 %v1376, %v1412
  %v1449 = vmax.f32 %v1377, %v1413
  %v1450 = vmax.f32 %v1378, %v1414
  %v1451 = vmax.f32 %v1379, %v1415
  %v1452 = vmax.f32 %v1380, %v1416
  %v1453 = vmax.f32 %v1381, %v1417
  %v1454 = vmax.f32 %v1382, %v1418
  %v1455 = vmax.f32 %v1383, %v1419
  %v1456 = vmax.f32 %v1384, %v1420
  %v1457 = vmax.f32 %v1385, %v1421
  %v1458 = vmax.f32 %v1386, %v1422
  %v1459 = vmax.f32 %v1387, %v1423
  %v1460 = vmax.f32 %v1388, %v1424
  %v1461 = vmax.f32 %v1389, %v1425
  %v1462 = vmax.f32 %v1390, %v1426
  %v1463 = vmax.f32 %v1391, %v1427
  %v1464 = vmax.f32 %v1392, %v1428
  %v1465 = vmax.f32 %v1393, %v1429
  %v1466 = vmax.f32 %v1394, %v1430
  %v1467 = vmax.f32 %v1395, %v1431
  %v1468 = vmax.f32 %v1396, %v1432
  %v1469 = vmax.f32 %v1397, %v1433
  %v1470 = vmax.f32 %v1398, %v1434
  %v1471 = vmax.f32 %v1399, %v1435
  %v1472 = vmax.f32 %v1400, %v1436
  %v1473 = vmax.f32 %v1401, %v1437
  %v1474 = vmax.f32 %v1402, %v1438
  %v1475 = vld [vmem:[%s2] sm:$0x1]
  %v1477 = vlaneseq
  %v1478 = vshrl.u32 %v1477, 7
  %v1479 = vsub.s32 0, %v1478
  %v1480 = vrot.slane %v1475, %v1479
  %v1482 = vadd.f32 %v1439, %v1480
  %v1483 = vadd.f32 %v1440, %v1480
  %v1484 = vadd.f32 %v1441, %v1480
  %v1485 = vadd.f32 %v1442, %v1480
  %v1486 = vadd.f32 %v1443, %v1480
  %v1487 = vadd.f32 %v1444, %v1480
  %v1488 = vadd.f32 %v1445, %v1480
  %v1489 = vadd.f32 %v1446, %v1480
  %v1490 = vadd.f32 %v1447, %v1480
  %v1491 = vadd.f32 %v1448, %v1480
  %v1492 = vadd.f32 %v1449, %v1480
  %v1493 = vadd.f32 %v1450, %v1480
  %v1494 = vadd.f32 %v1451, %v1480
  %v1495 = vadd.f32 %v1452, %v1480
  %v1496 = vadd.f32 %v1453, %v1480
  %v1497 = vadd.f32 %v1454, %v1480
  %v1498 = vadd.f32 %v1455, %v1480
  %v1499 = vadd.f32 %v1456, %v1480
  %v1500 = vadd.f32 %v1457, %v1480
  %v1501 = vadd.f32 %v1458, %v1480
  %v1502 = vadd.f32 %v1459, %v1480
  %v1503 = vadd.f32 %v1460, %v1480
  %v1504 = vadd.f32 %v1461, %v1480
  %v1505 = vadd.f32 %v1462, %v1480
  %v1506 = vadd.f32 %v1463, %v1480
  %v1507 = vadd.f32 %v1464, %v1480
  %v1508 = vadd.f32 %v1465, %v1480
  %v1509 = vadd.f32 %v1466, %v1480
  %v1510 = vadd.f32 %v1467, %v1480
  %v1511 = vadd.f32 %v1468, %v1480
  %v1512 = vadd.f32 %v1469, %v1480
  %v1513 = vadd.f32 %v1470, %v1480
  %v1514 = vadd.f32 %v1471, %v1480
  %v1515 = vadd.f32 %v1472, %v1480
  %v1516 = vadd.f32 %v1473, %v1480
  %v1517 = vadd.f32 %v1474, %v1480
  %v1518 = vmax.f32 %v1482, 0.0
  %v1519 = vmax.f32 %v1483, 0.0
  %v1520 = vmax.f32 %v1484, 0.0
  %v1521 = vmax.f32 %v1485, 0.0
  %v1522 = vmax.f32 %v1486, 0.0
  %v1523 = vmax.f32 %v1487, 0.0
  %v1524 = vmax.f32 %v1488, 0.0
  %v1525 = vmax.f32 %v1489, 0.0
  %v1526 = vmax.f32 %v1490, 0.0
  %v1527 = vmax.f32 %v1491, 0.0
  %v1528 = vmax.f32 %v1492, 0.0
  %v1529 = vmax.f32 %v1493, 0.0
  %v1530 = vmax.f32 %v1494, 0.0
  %v1531 = vmax.f32 %v1495, 0.0
  %v1532 = vmax.f32 %v1496, 0.0
  %v1533 = vmax.f32 %v1497, 0.0
  %v1534 = vmax.f32 %v1498, 0.0
  %v1535 = vmax.f32 %v1499, 0.0
  %v1536 = vmax.f32 %v1500, 0.0
  %v1537 = vmax.f32 %v1501, 0.0
  %v1538 = vmax.f32 %v1502, 0.0
  %v1539 = vmax.f32 %v1503, 0.0
  %v1540 = vmax.f32 %v1504, 0.0
  %v1541 = vmax.f32 %v1505, 0.0
  %v1542 = vmax.f32 %v1506, 0.0
  %v1543 = vmax.f32 %v1507, 0.0
  %v1544 = vmax.f32 %v1508, 0.0
  %v1545 = vmax.f32 %v1509, 0.0
  %v1546 = vmax.f32 %v1510, 0.0
  %v1547 = vmax.f32 %v1511, 0.0
  %v1548 = vmax.f32 %v1512, 0.0
  %v1549 = vmax.f32 %v1513, 0.0
  %v1550 = vmax.f32 %v1514, 0.0
  %v1551 = vmax.f32 %v1515, 0.0
  %v1552 = vmax.f32 %v1516, 0.0
  %v1553 = vmax.f32 %v1517, 0.0
  %vm1554 = vcmask 162816
  %1555 = vst.msk [vmem:[%s3] sm:$0xff] %vm1554, %v1518
  %1556 = vst.msk [vmem:[%s3 + $0x8] sm:$0xff] %vm1554, %v1519
  %1557 = vst.msk [vmem:[%s3 + $0x10] sm:$0xff] %vm1554, %v1520
  %1558 = vst.msk [vmem:[%s3 + $0x18] sm:$0xff] %vm1554, %v1521
  %1559 = vst.msk [vmem:[%s3 + $0x20] sm:$0xff] %vm1554, %v1522
  %1560 = vst.msk [vmem:[%s3 + $0x28] sm:$0xff] %vm1554, %v1523
  %1561 = vst.msk [vmem:[%s3 + $0x30] sm:$0xff] %vm1554, %v1524
  %1562 = vst.msk [vmem:[%s3 + $0x38] sm:$0xff] %vm1554, %v1525
  %1563 = vst.msk [vmem:[%s3 + $0x40] sm:$0xff] %vm1554, %v1526
  %1564 = vst.msk [vmem:[%s3 + $0x48] sm:$0xff] %vm1554, %v1527
  %1565 = vst.msk [vmem:[%s3 + $0x50] sm:$0xff] %vm1554, %v1528
  %1566 = vst.msk [vmem:[%s3 + $0x58] sm:$0xff] %vm1554, %v1529
  %1567 = vst.msk [vmem:[%s3 + $0x60] sm:$0xff] %vm1554, %v1530
  %1568 = vst.msk [vmem:[%s3 + $0x68] sm:$0xff] %vm1554, %v1531
  %1569 = vst.msk [vmem:[%s3 + $0x70] sm:$0xff] %vm1554, %v1532
  %1570 = vst.msk [vmem:[%s3 + $0x78] sm:$0xff] %vm1554, %v1533
  %1571 = vst.msk [vmem:[%s3 + $0x80] sm:$0xff] %vm1554, %v1534
  %1572 = vst.msk [vmem:[%s3 + $0x88] sm:$0xff] %vm1554, %v1535
  %1573 = vst.msk [vmem:[%s3 + $0x90] sm:$0xff] %vm1554, %v1536
  %1574 = vst.msk [vmem:[%s3 + $0x98] sm:$0xff] %vm1554, %v1537
  %1575 = vst.msk [vmem:[%s3 + $0xa0] sm:$0xff] %vm1554, %v1538
  %1576 = vst.msk [vmem:[%s3 + $0xa8] sm:$0xff] %vm1554, %v1539
  %1577 = vst.msk [vmem:[%s3 + $0xb0] sm:$0xff] %vm1554, %v1540
  %1578 = vst.msk [vmem:[%s3 + $0xb8] sm:$0xff] %vm1554, %v1541
  %1579 = vst.msk [vmem:[%s3 + $0xc0] sm:$0xff] %vm1554, %v1542
  %1580 = vst.msk [vmem:[%s3 + $0xc8] sm:$0xff] %vm1554, %v1543
  %1581 = vst.msk [vmem:[%s3 + $0xd0] sm:$0xff] %vm1554, %v1544
  %1582 = vst.msk [vmem:[%s3 + $0xd8] sm:$0xff] %vm1554, %v1545
  %1583 = vst.msk [vmem:[%s3 + $0xe0] sm:$0xff] %vm1554, %v1546
  %1584 = vst.msk [vmem:[%s3 + $0xe8] sm:$0xff] %vm1554, %v1547
  %1585 = vst.msk [vmem:[%s3 + $0xf0] sm:$0xff] %vm1554, %v1548
  %1586 = vst.msk [vmem:[%s3 + $0xf8] sm:$0xff] %vm1554, %v1549
  %1587 = vst.msk [vmem:[%s3 + $0x100] sm:$0xff] %vm1554, %v1550
  %1588 = vst.msk [vmem:[%s3 + $0x108] sm:$0xff] %vm1554, %v1551
  %1589 = vst.msk [vmem:[%s3 + $0x110] sm:$0xff] %vm1554, %v1552
  %1590 = vst.msk [vmem:[%s3 + $0x118] sm:$0xff] %vm1554, %v1553
  // Predicated region
  $region14: #{a_call__.2} parent=0 // pred_check
    _
  $region15: #{a_call__.2} parent=0 // pred_check_branch
    %1592 = sbr.rel (0) target = $region17
  $region16: #{a_call__.2} parent=0 // pred_region
    _
  $region17: #{a_call__.2} parent=0 // pred_fallthru
    _
  // Predicated region
  $region18: #{a_call__.2} parent=0 // pred_check
    _
  $region19: #{a_call__.2} parent=0 // pred_check_branch
    %1594 = sbr.rel (0) target = $region21
  $region20: #{a_call__.2} parent=0 // pred_region
    _
  $region21: #{a_call__.2} parent=0 // pred_fallthru
    _

// kernel: a_call__.3
$region0: #{a_call__.3}
  #allocation0 [shape = 'u32[]', space=smem, size = 0x4, offset = 0x4, fixed_abs, tag = 'smem constant byte address 0x4 - core index']
  #allocation1 [shape = 'u32[144,128]{1,0:T(1,128)}', space=vmem, size = 0x12000, scoped, tag = 'internal scratch']
  #allocation2 [shape = 'f32[2,500]{1,0:T(2,128)}', space=vmem, size = 0x1000, scoped, tag = 'scratch operand']
  %s0 = inlined_call_operand.vmem [shape: bf16[4,2,720], index: 0, kind: input, shape index: {}]
  %s1 = inlined_call_operand.vmem [shape: bf16[2880,500], index: 1, kind: input, shape index: {}]
  %s2 = inlined_call_operand.vmem [shape: bf16[288,20], index: 2, kind: input, shape index: {}]
  %s3 = inlined_call_operand.vmem [shape: bf16[20,128], index: 3, kind: input, shape index: {}]
  %s4 = inlined_call_operand.vmem [shape: f32[1,128], index: 4, kind: input, shape index: {}]
  %s5 = inlined_call_operand.vmem [shape: bf16[128,4], index: 5, kind: input, shape index: {}]
  %s6 = inlined_call_operand.vmem [shape: f32[1,4], index: 6, kind: input, shape index: {}]
  %s7 = inlined_call_operand.vmem [shape: bf16[4,80], index: 7, kind: input, shape index: {}]
  %s8 = inlined_call_operand.vmem [shape: bf16[20,80], index: 8, kind: input, shape index: {}]
  %s9 = inlined_call_operand.vmem [shape: bf16[2,288], index: 9, kind: input, shape index: {}]
  %s10 = inlined_call_operand.vmem [shape: bf16[80,500], index: 10, kind: input, shape index: {}]
  %s11 = inlined_call_operand.vmem [shape: f32[1,500], index: 11, kind: input, shape index: {}, may-alias: {11,12,16}]
  %s12 = inlined_call_operand.vmem [shape: f32[1,500], index: 12, kind: input, shape index: {}, may-alias: {11,12,16}]
  %s13 = inlined_call_operand.vmem [shape: f32[500,4], index: 13, kind: input, shape index: {}]
  %s14 = inlined_call_operand.vmem [shape: f32[4,500], index: 14, kind: input, shape index: {}]
  %s15 = inlined_call_operand.vmem [shape: f32[1,500], index: 15, kind: input, shape index: {}]
  %s16 = inlined_call_operand.vmem [shape: f32[1,500], index: 16, kind: input, shape index: {}, may-alias: {11,12,16}]
  %s17 = inlined_call_operand.vmem [shape: bf16[500,10], index: 17, kind: input, shape index: {}]
  %s18 = inlined_call_operand.vmem [shape: f32[1,10], index: 18, kind: input, shape index: {}]
  %s19 = inlined_call_operand.hbm [shape: f32[2,10], index: 19, kind: output, shape index: {}]
  %s20 = sld [smem:[#allocation0]]
  $region117: #{a_call__.3} parent=0
    _
  %s22 = ssub.s32 1, %s20
  %s23 = scalar_select 0, %s22, %s20
  $region1: #{a_call__.3} parent=0
    #allocation3 [shape = 'u8[1024]{0}', space=vmem, size = 0x400, scoped, tag = 'output window, operand 0, single buffered']
    #allocation4 [shape = 's32[2]{0}', space=sflag, size = 0x8, scoped, tag = 'scoped memory for a_call__.3']
    %24 = vsyncpa [#allocation4], 0
    loop: start=0, step=1, limit=6
    $region2: #{a_call__.3} parent=1 // loop_pre_header
      _
    $region3: #{a_call__.3} parent=1 // loop_header
      %s26 = sphi 0, %s30
      %p27 = scmp.ge.s32.totalorder %s26, 6
      %s36 = sphi 0, %s38
      %s39 = sphi 0, %s36
      %s40 = sphi 0, %s39
      %s56 = sphi 0, %s40
      %s62 = sphi 0, %s64
      %s65 = sphi 0, %s62
      %s66 = sphi 0, %s65
      %s82 = sphi 0, %s66
      %s86 = sphi 0, %s86
      %s88 = sphi 0, %s86
      %s89 = sphi 0, %s88
      %s103 = sphi 0, %s89
      %s107 = sphi 0, %s107
      %s109 = sphi 0, %s107
      %s110 = sphi 0, %s109
      %s124 = sphi 0, %s110
      %s128 = sphi 0, %s128
      %s130 = sphi 0, %s128
      %s131 = sphi 0, %s130
      %s145 = sphi 0, %s131
      %s149 = sphi 0, %s149
      %s151 = sphi 0, %s149
      %s152 = sphi 0, %s151
      %s166 = sphi 0, %s152
      %s170 = sphi 0, %s170
      %s172 = sphi 0, %s170
      %s173 = sphi 0, %s172
      %s187 = sphi 0, %s173
      %s191 = sphi 0, %s191
      %s193 = sphi 0, %s191
      %s194 = sphi 0, %s193
      %s208 = sphi 0, %s194
      %s212 = sphi 0, %s212
      %s214 = sphi 0, %s212
      %s215 = sphi 0, %s214
      %s229 = sphi 0, %s215
      %s233 = sphi 0, %s233
      %s235 = sphi 0, %s233
      %s236 = sphi 0, %s235
      %s250 = sphi 0, %s236
      %s254 = sphi 0, %s254
      %s256 = sphi 0, %s254
      %s257 = sphi 0, %s256
      %s271 = sphi 0, %s257
      %s275 = sphi 0, %s275
      %s277 = sphi 0, %s275
      %s278 = sphi 0, %s277
      %s292 = sphi 0, %s278
      %s296 = sphi 0, %s296
      %s298 = sphi 0, %s296
      %s299 = sphi 0, %s298
      %s313 = sphi 0, %s299
      %s317 = sphi 0, %s317
      %s319 = sphi 0, %s317
      %s320 = sphi 0, %s319
      %s334 = sphi 0, %s320
      %s338 = sphi 0, %s338
      %s340 = sphi 0, %s338
      %s341 = sphi 0, %s340
      %s355 = sphi 0, %s341
      %s359 = sphi 0, %s359
      %s361 = sphi 0, %s359
      %s362 = sphi 0, %s361
      %s376 = sphi 0, %s362
      %s380 = sphi 0, %s380
      %s382 = sphi 0, %s380
      %s383 = sphi 0, %s382
      %s397 = sphi 0, %s383
      %s401 = sphi 0, %s401
      %s403 = sphi 0, %s401
      %s404 = sphi 0, %s403
      %s418 = sphi 0, %s404
      %s422 = sphi 0, %s422
      %s424 = sphi 0, %s422
      %s425 = sphi 0, %s424
      %s439 = sphi 0, %s425
      %s443 = sphi 0, %s443
      %s445 = sphi 0, %s443
      %s446 = sphi 0, %s445
      %s460 = sphi 0, %s446
    $region4: #{a_call__.3} parent=1 // loop_header_branch
      %29 = sbr.rel (%p27) target = $region8
    $region5: #{a_call__.3} parent=1 // loop_body
      %s31 = ssub.s32 %s26, 1
      %s32 = ssub.s32 %s26, 2
      %s33 = sadd.s32 %s26, 1
      %s34 = ssub.s32 %s26, %s33
      %p35 = scmp.eq.s32.totalorder %s34, 0
      %s37 = sadd.s32 %s36, 1
      %s38 = scalar_select %p35, %s36, %s37
      %p41 = pneg %p35
      %p42 = scmp.eq.s32.totalorder %s26, 3
      %p43 = por %p41, %p42
      %p44 = scmp.ne.s32.totalorder %s36, %s39
      %p45 = scmp.eq.s32.totalorder %s26, 0
      %p46 = por %p44, %p45
      %p47 = scmp.ne.s32.totalorder %s36, %s39
      %p48 = scmp.eq.s32.totalorder %s31, 3
      %p49 = por %p47, %p48
      %p50 = scmp.ne.s32.totalorder %s39, %s40
      %p51 = scmp.eq.s32.totalorder %s31, 0
      %p52 = por %p50, %p51
      %p53 = scmp.ne.s32.totalorder %s39, %s40
      %p54 = scmp.eq.s32.totalorder %s32, 3
      %p55 = por %p53, %p54
      %p57 = scmp.ne.s32.totalorder %s40, %s56
      %p58 = scmp.eq.s32.totalorder %s32, 0
      %p59 = por %p57, %p58
      %s60 = ssub.s32 %s26, %s33
      %p61 = scmp.eq.s32.totalorder %s60, 0
      %s63 = sadd.s32 %s62, 1
      %s64 = scalar_select %p61, %s62, %s63
      %p67 = pneg %p61
      %p68 = scmp.eq.s32.totalorder %s26, 3
      %p69 = por %p67, %p68
      %p70 = scmp.ne.s32.totalorder %s62, %s65
      %p71 = scmp.eq.s32.totalorder %s26, 0
      %p72 = por %p70, %p71
      %p73 = scmp.ne.s32.totalorder %s62, %s65
      %p74 = scmp.eq.s32.totalorder %s31, 3
      %p75 = por %p73, %p74
      %p76 = scmp.ne.s32.totalorder %s65, %s66
      %p77 = scmp.eq.s32.totalorder %s31, 0
      %p78 = por %p76, %p77
      %p79 = scmp.ne.s32.totalorder %s65, %s66
      %p80 = scmp.eq.s32.totalorder %s32, 3
      %p81 = por %p79, %p80
      %p83 = scmp.ne.s32.totalorder %s66, %s82
      %p84 = scmp.eq.s32.totalorder %s32, 0
      %p85 = por %p83, %p84
      %s87 = sadd.s32 %s86, 1
      %p90 = scmp.eq.s32.totalorder %s26, 3
      %p91 = scmp.ne.s32.totalorder %s86, %s88
      %p92 = scmp.eq.s32.totalorder %s26, 0
      %p93 = por %p91, %p92
      %p94 = scmp.ne.s32.totalorder %s86, %s88
      %p95 = scmp.eq.s32.totalorder %s31, 3
      %p96 = por %p94, %p95
      %p97 = scmp.ne.s32.totalorder %s88, %s89
      %p98 = scmp.eq.s32.totalorder %s31, 0
      %p99 = por %p97, %p98
      %p100 = scmp.ne.s32.totalorder %s88, %s89
      %p101 = scmp.eq.s32.totalorder %s32, 3
      %p102 = por %p100, %p101
      %p104 = scmp.ne.s32.totalorder %s89, %s103
      %p105 = scmp.eq.s32.totalorder %s32, 0
      %p106 = por %p104, %p105
      %s108 = sadd.s32 %s107, 1
      %p111 = scmp.eq.s32.totalorder %s26, 3
      %p112 = scmp.ne.s32.totalorder %s107, %s109
      %p113 = scmp.eq.s32.totalorder %s26, 0
      %p114 = por %p112, %p113
      %p115 = scmp.ne.s32.totalorder %s107, %s109
      %p116 = scmp.eq.s32.totalorder %s31, 3
      %p117 = por %p115, %p116
      %p118 = scmp.ne.s32.totalorder %s109, %s110
      %p119 = scmp.eq.s32.totalorder %s31, 0
      %p120 = por %p118, %p119
      %p121 = scmp.ne.s32.totalorder %s109, %s110
      %p122 = scmp.eq.s32.totalorder %s32, 3
      %p123 = por %p121, %p122
      %p125 = scmp.ne.s32.totalorder %s110, %s124
      %p126 = scmp.eq.s32.totalorder %s32, 0
      %p127 = por %p125, %p126
      %s129 = sadd.s32 %s128, 1
      %p132 = scmp.eq.s32.totalorder %s26, 3
      %p133 = scmp.ne.s32.totalorder %s128, %s130
      %p134 = scmp.eq.s32.totalorder %s26, 0
      %p135 = por %p133, %p134
      %p136 = scmp.ne.s32.totalorder %s128, %s130
      %p137 = scmp.eq.s32.totalorder %s31, 3
      %p138 = por %p136, %p137
      %p139 = scmp.ne.s32.totalorder %s130, %s131
      %p140 = scmp.eq.s32.totalorder %s31, 0
      %p141 = por %p139, %p140
      %p142 = scmp.ne.s32.totalorder %s130, %s131
      %p143 = scmp.eq.s32.totalorder %s32, 3
      %p144 = por %p142, %p143
      %p146 = scmp.ne.s32.totalorder %s131, %s145
      %p147 = scmp.eq.s32.totalorder %s32, 0
      %p148 = por %p146, %p147
      %s150 = sadd.s32 %s149, 1
      %p153 = scmp.eq.s32.totalorder %s26, 3
      %p154 = scmp.ne.s32.totalorder %s149, %s151
      %p155 = scmp.eq.s32.totalorder %s26, 0
      %p156 = por %p154, %p155
      %p157 = scmp.ne.s32.totalorder %s149, %s151
      %p158 = scmp.eq.s32.totalorder %s31, 3
      %p159 = por %p157, %p158
      %p160 = scmp.ne.s32.totalorder %s151, %s152
      %p161 = scmp.eq.s32.totalorder %s31, 0
      %p162 = por %p160, %p161
      %p163 = scmp.ne.s32.totalorder %s151, %s152
      %p164 = scmp.eq.s32.totalorder %s32, 3
      %p165 = por %p163, %p164
      %p167 = scmp.ne.s32.totalorder %s152, %s166
      %p168 = scmp.eq.s32.totalorder %s32, 0
      %p169 = por %p167, %p168
      %s171 = sadd.s32 %s170, 1
      %p174 = scmp.eq.s32.totalorder %s26, 3
      %p175 = scmp.ne.s32.totalorder %s170, %s172
      %p176 = scmp.eq.s32.totalorder %s26, 0
      %p177 = por %p175, %p176
      %p178 = scmp.ne.s32.totalorder %s170, %s172
      %p179 = scmp.eq.s32.totalorder %s31, 3
      %p180 = por %p178, %p179
      %p181 = scmp.ne.s32.totalorder %s172, %s173
      %p182 = scmp.eq.s32.totalorder %s31, 0
      %p183 = por %p181, %p182
      %p184 = scmp.ne.s32.totalorder %s172, %s173
      %p185 = scmp.eq.s32.totalorder %s32, 3
      %p186 = por %p184, %p185
      %p188 = scmp.ne.s32.totalorder %s173, %s187
      %p189 = scmp.eq.s32.totalorder %s32, 0
      %p190 = por %p188, %p189
      %s192 = sadd.s32 %s191, 1
      %p195 = scmp.eq.s32.totalorder %s26, 3
      %p196 = scmp.ne.s32.totalorder %s191, %s193
      %p197 = scmp.eq.s32.totalorder %s26, 0
      %p198 = por %p196, %p197
      %p199 = scmp.ne.s32.totalorder %s191, %s193
      %p200 = scmp.eq.s32.totalorder %s31, 3
      %p201 = por %p199, %p200
      %p202 = scmp.ne.s32.totalorder %s193, %s194
      %p203 = scmp.eq.s32.totalorder %s31, 0
      %p204 = por %p202, %p203
      %p205 = scmp.ne.s32.totalorder %s193, %s194
      %p206 = scmp.eq.s32.totalorder %s32, 3
      %p207 = por %p205, %p206
      %p209 = scmp.ne.s32.totalorder %s194, %s208
      %p210 = scmp.eq.s32.totalorder %s32, 0
      %p211 = por %p209, %p210
      %s213 = sadd.s32 %s212, 1
      %p216 = scmp.eq.s32.totalorder %s26, 3
      %p217 = scmp.ne.s32.totalorder %s212, %s214
      %p218 = scmp.eq.s32.totalorder %s26, 0
      %p219 = por %p217, %p218
      %p220 = scmp.ne.s32.totalorder %s212, %s214
      %p221 = scmp.eq.s32.totalorder %s31, 3
      %p222 = por %p220, %p221
      %p223 = scmp.ne.s32.totalorder %s214, %s215
      %p224 = scmp.eq.s32.totalorder %s31, 0
      %p225 = por %p223, %p224
      %p226 = scmp.ne.s32.totalorder %s214, %s215
      %p227 = scmp.eq.s32.totalorder %s32, 3
      %p228 = por %p226, %p227
      %p230 = scmp.ne.s32.totalorder %s215, %s229
      %p231 = scmp.eq.s32.totalorder %s32, 0
      %p232 = por %p230, %p231
      %s234 = sadd.s32 %s233, 1
      %p237 = scmp.eq.s32.totalorder %s26, 3
      %p238 = scmp.ne.s32.totalorder %s233, %s235
      %p239 = scmp.eq.s32.totalorder %s26, 0
      %p240 = por %p238, %p239
      %p241 = scmp.ne.s32.totalorder %s233, %s235
      %p242 = scmp.eq.s32.totalorder %s31, 3
      %p243 = por %p241, %p242
      %p244 = scmp.ne.s32.totalorder %s235, %s236
      %p245 = scmp.eq.s32.totalorder %s31, 0
      %p246 = por %p244, %p245
      %p247 = scmp.ne.s32.totalorder %s235, %s236
      %p248 = scmp.eq.s32.totalorder %s32, 3
      %p249 = por %p247, %p248
      %p251 = scmp.ne.s32.totalorder %s236, %s250
      %p252 = scmp.eq.s32.totalorder %s32, 0
      %p253 = por %p251, %p252
      %s255 = sadd.s32 %s254, 1
      %p258 = scmp.eq.s32.totalorder %s26, 3
      %p259 = scmp.ne.s32.totalorder %s254, %s256
      %p260 = scmp.eq.s32.totalorder %s26, 0
      %p261 = por %p259, %p260
      %p262 = scmp.ne.s32.totalorder %s254, %s256
      %p263 = scmp.eq.s32.totalorder %s31, 3
      %p264 = por %p262, %p263
      %p265 = scmp.ne.s32.totalorder %s256, %s257
      %p266 = scmp.eq.s32.totalorder %s31, 0
      %p267 = por %p265, %p266
      %p268 = scmp.ne.s32.totalorder %s256, %s257
      %p269 = scmp.eq.s32.totalorder %s32, 3
      %p270 = por %p268, %p269
      %p272 = scmp.ne.s32.totalorder %s257, %s271
      %p273 = scmp.eq.s32.totalorder %s32, 0
      %p274 = por %p272, %p273
      %s276 = sadd.s32 %s275, 1
      %p279 = scmp.eq.s32.totalorder %s26, 3
      %p280 = scmp.ne.s32.totalorder %s275, %s277
      %p281 = scmp.eq.s32.totalorder %s26, 0
      %p282 = por %p280, %p281
      %p283 = scmp.ne.s32.totalorder %s275, %s277
      %p284 = scmp.eq.s32.totalorder %s31, 3
      %p285 = por %p283, %p284
      %p286 = scmp.ne.s32.totalorder %s277, %s278
      %p287 = scmp.eq.s32.totalorder %s31, 0
      %p288 = por %p286, %p287
      %p289 = scmp.ne.s32.totalorder %s277, %s278
      %p290 = scmp.eq.s32.totalorder %s32, 3
      %p291 = por %p289, %p290
      %p293 = scmp.ne.s32.totalorder %s278, %s292
      %p294 = scmp.eq.s32.totalorder %s32, 0
      %p295 = por %p293, %p294
      %s297 = sadd.s32 %s296, 1
      %p300 = scmp.eq.s32.totalorder %s26, 3
      %p301 = scmp.ne.s32.totalorder %s296, %s298
      %p302 = scmp.eq.s32.totalorder %s26, 0
      %p303 = por %p301, %p302
      %p304 = scmp.ne.s32.totalorder %s296, %s298
      %p305 = scmp.eq.s32.totalorder %s31, 3
      %p306 = por %p304, %p305
      %p307 = scmp.ne.s32.totalorder %s298, %s299
      %p308 = scmp.eq.s32.totalorder %s31, 0
      %p309 = por %p307, %p308
      %p310 = scmp.ne.s32.totalorder %s298, %s299
      %p311 = scmp.eq.s32.totalorder %s32, 3
      %p312 = por %p310, %p311
      %p314 = scmp.ne.s32.totalorder %s299, %s313
      %p315 = scmp.eq.s32.totalorder %s32, 0
      %p316 = por %p314, %p315
      %s318 = sadd.s32 %s317, 1
      %p321 = scmp.eq.s32.totalorder %s26, 3
      %p322 = scmp.ne.s32.totalorder %s317, %s319
      %p323 = scmp.eq.s32.totalorder %s26, 0
      %p324 = por %p322, %p323
      %p325 = scmp.ne.s32.totalorder %s317, %s319
      %p326 = scmp.eq.s32.totalorder %s31, 3
      %p327 = por %p325, %p326
      %p328 = scmp.ne.s32.totalorder %s319, %s320
      %p329 = scmp.eq.s32.totalorder %s31, 0
      %p330 = por %p328, %p329
      %p331 = scmp.ne.s32.totalorder %s319, %s320
      %p332 = scmp.eq.s32.totalorder %s32, 3
      %p333 = por %p331, %p332
      %p335 = scmp.ne.s32.totalorder %s320, %s334
      %p336 = scmp.eq.s32.totalorder %s32, 0
      %p337 = por %p335, %p336
      %s339 = sadd.s32 %s338, 1
      %p342 = scmp.eq.s32.totalorder %s26, 3
      %p343 = scmp.ne.s32.totalorder %s338, %s340
      %p344 = scmp.eq.s32.totalorder %s26, 0
      %p345 = por %p343, %p344
      %p346 = scmp.ne.s32.totalorder %s338, %s340
      %p347 = scmp.eq.s32.totalorder %s31, 3
      %p348 = por %p346, %p347
      %p349 = scmp.ne.s32.totalorder %s340, %s341
      %p350 = scmp.eq.s32.totalorder %s31, 0
      %p351 = por %p349, %p350
      %p352 = scmp.ne.s32.totalorder %s340, %s341
      %p353 = scmp.eq.s32.totalorder %s32, 3
      %p354 = por %p352, %p353
      %p356 = scmp.ne.s32.totalorder %s341, %s355
      %p357 = scmp.eq.s32.totalorder %s32, 0
      %p358 = por %p356, %p357
      %s360 = sadd.s32 %s359, 1
      %p363 = scmp.eq.s32.totalorder %s26, 3
      %p364 = scmp.ne.s32.totalorder %s359, %s361
      %p365 = scmp.eq.s32.totalorder %s26, 0
      %p366 = por %p364, %p365
      %p367 = scmp.ne.s32.totalorder %s359, %s361
      %p368 = scmp.eq.s32.totalorder %s31, 3
      %p369 = por %p367, %p368
      %p370 = scmp.ne.s32.totalorder %s361, %s362
      %p371 = scmp.eq.s32.totalorder %s31, 0
      %p372 = por %p370, %p371
      %p373 = scmp.ne.s32.totalorder %s361, %s362
      %p374 = scmp.eq.s32.totalorder %s32, 3
      %p375 = por %p373, %p374
      %p377 = scmp.ne.s32.totalorder %s362, %s376
      %p378 = scmp.eq.s32.totalorder %s32, 0
      %p379 = por %p377, %p378
      %s381 = sadd.s32 %s380, 1
      %p384 = scmp.eq.s32.totalorder %s26, 3
      %p385 = scmp.ne.s32.totalorder %s380, %s382
      %p386 = scmp.eq.s32.totalorder %s26, 0
      %p387 = por %p385, %p386
      %p388 = scmp.ne.s32.totalorder %s380, %s382
      %p389 = scmp.eq.s32.totalorder %s31, 3
      %p390 = por %p388, %p389
      %p391 = scmp.ne.s32.totalorder %s382, %s383
      %p392 = scmp.eq.s32.totalorder %s31, 0
      %p393 = por %p391, %p392
      %p394 = scmp.ne.s32.totalorder %s382, %s383
      %p395 = scmp.eq.s32.totalorder %s32, 3
      %p396 = por %p394, %p395
      %p398 = scmp.ne.s32.totalorder %s383, %s397
      %p399 = scmp.eq.s32.totalorder %s32, 0
      %p400 = por %p398, %p399
      %s402 = sadd.s32 %s401, 1
      %p405 = scmp.eq.s32.totalorder %s26, 3
      %p406 = scmp.ne.s32.totalorder %s401, %s403
      %p407 = scmp.eq.s32.totalorder %s26, 0
      %p408 = por %p406, %p407
      %p409 = scmp.ne.s32.totalorder %s401, %s403
      %p410 = scmp.eq.s32.totalorder %s31, 3
      %p411 = por %p409, %p410
      %p412 = scmp.ne.s32.totalorder %s403, %s404
      %p413 = scmp.eq.s32.totalorder %s31, 0
      %p414 = por %p412, %p413
      %p415 = scmp.ne.s32.totalorder %s403, %s404
      %p416 = scmp.eq.s32.totalorder %s32, 3
      %p417 = por %p415, %p416
      %p419 = scmp.ne.s32.totalorder %s404, %s418
      %p420 = scmp.eq.s32.totalorder %s32, 0
      %p421 = por %p419, %p420
      %s423 = sadd.s32 %s422, 1
      %p426 = scmp.eq.s32.totalorder %s26, 3
      %p427 = scmp.ne.s32.totalorder %s422, %s424
      %p428 = scmp.eq.s32.totalorder %s26, 0
      %p429 = por %p427, %p428
      %p430 = scmp.ne.s32.totalorder %s422, %s424
      %p431 = scmp.eq.s32.totalorder %s31, 3
      %p432 = por %p430, %p431
      %p433 = scmp.ne.s32.totalorder %s424, %s425
      %p434 = scmp.eq.s32.totalorder %s31, 0
      %p435 = por %p433, %p434
      %p436 = scmp.ne.s32.totalorder %s424, %s425
      %p437 = scmp.eq.s32.totalorder %s32, 3
      %p438 = por %p436, %p437
      %p440 = scmp.ne.s32.totalorder %s425, %s439
      %p441 = scmp.eq.s32.totalorder %s32, 0
      %p442 = por %p440, %p441
      %s444 = sadd.s32 %s443, 1
      %p447 = scmp.eq.s32.totalorder %s26, 3
      %p448 = scmp.ne.s32.totalorder %s443, %s445
      %p449 = scmp.eq.s32.totalorder %s26, 0
      %p450 = por %p448, %p449
      %p451 = scmp.ne.s32.totalorder %s443, %s445
      %p452 = scmp.eq.s32.totalorder %s31, 3
      %p453 = por %p451, %p452
      %p454 = scmp.ne.s32.totalorder %s445, %s446
      %p455 = scmp.eq.s32.totalorder %s31, 0
      %p456 = por %p454, %p455
      %p457 = scmp.ne.s32.totalorder %s445, %s446
      %p458 = scmp.eq.s32.totalorder %s32, 3
      %p459 = por %p457, %p458
      %p461 = scmp.ne.s32.totalorder %s446, %s460
      %p462 = scmp.eq.s32.totalorder %s32, 0
      %p463 = por %p461, %p462
      %p464 = scmp.le.s32.totalorder 1, %s26
      %p465 = scmp.lt.s32.totalorder %s26, 5
      %p466 = pnand %p464, %p465
      %p467 = pneg %p466
      // Predicated region
      $region9: #{a_call__.3} parent=5 // pred_check
        _
      $region10: #{a_call__.3} parent=5 // pred_check_branch
        %469 = sbr.rel (%p466) target = $region12
      $region11: #{a_call__.3} parent=5 // pred_region
        %s470 = ssub.s32 %s26, 1
        // Predicated region
        $region13: #{a_call__.3} parent=11 // pred_check
          %p471 = pneg %p99
        $region14: #{a_call__.3} parent=11 // pred_check_branch
          %473 = sbr.rel (%p471) target = $region16
        $region15: #{a_call__.3} parent=11 // pred_region
          _
        $region16: #{a_call__.3} parent=11 // pred_fallthru
          _
        // Predicated region
        $region17: #{a_call__.3} parent=11 // pred_check
          %p474 = pneg %p120
        $region18: #{a_call__.3} parent=11 // pred_check_branch
          %476 = sbr.rel (%p474) target = $region20
        $region19: #{a_call__.3} parent=11 // pred_region
          _
        $region20: #{a_call__.3} parent=11 // pred_fallthru
          _
        // Predicated region
        $region21: #{a_call__.3} parent=11 // pred_check
          %p477 = pneg %p141
        $region22: #{a_call__.3} parent=11 // pred_check_branch
          %479 = sbr.rel (%p477) target = $region24
        $region23: #{a_call__.3} parent=11 // pred_region
          _
        $region24: #{a_call__.3} parent=11 // pred_fallthru
          _
        // Predicated region
        $region25: #{a_call__.3} parent=11 // pred_check
          %p480 = pneg %p162
        $region26: #{a_call__.3} parent=11 // pred_check_branch
          %482 = sbr.rel (%p480) target = $region28
        $region27: #{a_call__.3} parent=11 // pred_region
          _
        $region28: #{a_call__.3} parent=11 // pred_fallthru
          _
        // Predicated region
        $region29: #{a_call__.3} parent=11 // pred_check
          %p483 = pneg %p183
        $region30: #{a_call__.3} parent=11 // pred_check_branch
          %485 = sbr.rel (%p483) target = $region32
        $region31: #{a_call__.3} parent=11 // pred_region
          _
        $region32: #{a_call__.3} parent=11 // pred_fallthru
          _
        // Predicated region
        $region33: #{a_call__.3} parent=11 // pred_check
          %p486 = pneg %p204
        $region34: #{a_call__.3} parent=11 // pred_check_branch
          %488 = sbr.rel (%p486) target = $region36
        $region35: #{a_call__.3} parent=11 // pred_region
          _
        $region36: #{a_call__.3} parent=11 // pred_fallthru
          _
        // Predicated region
        $region37: #{a_call__.3} parent=11 // pred_check
          %p489 = pneg %p225
        $region38: #{a_call__.3} parent=11 // pred_check_branch
          %491 = sbr.rel (%p489) target = $region40
        $region39: #{a_call__.3} parent=11 // pred_region
          _
        $region40: #{a_call__.3} parent=11 // pred_fallthru
          _
        // Predicated region
        $region41: #{a_call__.3} parent=11 // pred_check
          %p492 = pneg %p246
        $region42: #{a_call__.3} parent=11 // pred_check_branch
          %494 = sbr.rel (%p492) target = $region44
        $region43: #{a_call__.3} parent=11 // pred_region
          _
        $region44: #{a_call__.3} parent=11 // pred_fallthru
          _
        // Predicated region
        $region45: #{a_call__.3} parent=11 // pred_check
          %p495 = pneg %p267
        $region46: #{a_call__.3} parent=11 // pred_check_branch
          %497 = sbr.rel (%p495) target = $region48
        $region47: #{a_call__.3} parent=11 // pred_region
          _
        $region48: #{a_call__.3} parent=11 // pred_fallthru
          _
        // Predicated region
        $region49: #{a_call__.3} parent=11 // pred_check
          %p498 = pneg %p288
        $region50: #{a_call__.3} parent=11 // pred_check_branch
          %500 = sbr.rel (%p498) target = $region52
        $region51: #{a_call__.3} parent=11 // pred_region
          _
        $region52: #{a_call__.3} parent=11 // pred_fallthru
          _
        // Predicated region
        $region53: #{a_call__.3} parent=11 // pred_check
          %p501 = pneg %p309
        $region54: #{a_call__.3} parent=11 // pred_check_branch
          %503 = sbr.rel (%p501) target = $region56
        $region55: #{a_call__.3} parent=11 // pred_region
          _
        $region56: #{a_call__.3} parent=11 // pred_fallthru
          _
        // Predicated region
        $region57: #{a_call__.3} parent=11 // pred_check
          %p504 = pneg %p330
        $region58: #{a_call__.3} parent=11 // pred_check_branch
          %506 = sbr.rel (%p504) target = $region60
        $region59: #{a_call__.3} parent=11 // pred_region
          _
        $region60: #{a_call__.3} parent=11 // pred_fallthru
          _
        // Predicated region
        $region61: #{a_call__.3} parent=11 // pred_check
          %p507 = pneg %p351
        $region62: #{a_call__.3} parent=11 // pred_check_branch
          %509 = sbr.rel (%p507) target = $region64
        $region63: #{a_call__.3} parent=11 // pred_region
          _
        $region64: #{a_call__.3} parent=11 // pred_fallthru
          _
        // Predicated region
        $region65: #{a_call__.3} parent=11 // pred_check
          %p510 = pneg %p372
        $region66: #{a_call__.3} parent=11 // pred_check_branch
          %512 = sbr.rel (%p510) target = $region68
        $region67: #{a_call__.3} parent=11 // pred_region
          _
        $region68: #{a_call__.3} parent=11 // pred_fallthru
          _
        // Predicated region
        $region69: #{a_call__.3} parent=11 // pred_check
          %p513 = pneg %p393
        $region70: #{a_call__.3} parent=11 // pred_check_branch
          %515 = sbr.rel (%p513) target = $region72
        $region71: #{a_call__.3} parent=11 // pred_region
          _
        $region72: #{a_call__.3} parent=11 // pred_fallthru
          _
        // Predicated region
        $region73: #{a_call__.3} parent=11 // pred_check
          %p516 = pneg %p414
        $region74: #{a_call__.3} parent=11 // pred_check_branch
          %518 = sbr.rel (%p516) target = $region76
        $region75: #{a_call__.3} parent=11 // pred_region
          _
        $region76: #{a_call__.3} parent=11 // pred_fallthru
          _
        // Predicated region
        $region77: #{a_call__.3} parent=11 // pred_check
          %p519 = pneg %p435
        $region78: #{a_call__.3} parent=11 // pred_check_branch
          %521 = sbr.rel (%p519) target = $region80
        $region79: #{a_call__.3} parent=11 // pred_region
          _
        $region80: #{a_call__.3} parent=11 // pred_fallthru
          _
      $region12: #{a_call__.3} parent=5 // pred_fallthru
        _
      %p522 = scmp.lt.s32.totalorder %s26, 4
      // Predicated region
      $region81: #{a_call__.3} parent=5 // pred_check
        %p523 = pneg %p522
      $region82: #{a_call__.3} parent=5 // pred_check_branch
        %525 = sbr.rel (%p523) target = $region84
      $region83: #{a_call__.3} parent=5 // pred_region
        // Predicated region
        $region85: #{a_call__.3} parent=83 // pred_check
          %p526 = pneg %p46
        $region86: #{a_call__.3} parent=83 // pred_check_branch
          %528 = sbr.rel (%p526) target = $region88
        $region87: #{a_call__.3} parent=83 // pred_region
          %p529 = scmp.lt.s32.totalorder %s26, 3
          %s530 = scalar_select %p529, %s26, 3
          %s531 = smul.addr %s530, 6
          %s532 = scalar_lea.vmem %s0, %s531
        $region88: #{a_call__.3} parent=83 // pred_fallthru
          _
        // Predicated region
        $region89: #{a_call__.3} parent=83 // pred_check
          %p533 = pneg %p72
        $region90: #{a_call__.3} parent=83 // pred_check_branch
          %535 = sbr.rel (%p533) target = $region92
        $region91: #{a_call__.3} parent=83 // pred_region
          %s536 = smul.u32 90, %s26
          %p537 = scmp.lt.s32.totalorder %s536, 359
          %s538 = scalar_select %p537, %s536, 359
          %s539 = smul.addr %s538, 4
          %s540 = smul.addr %s539, 4
          %s541 = scalar_lea.vmem %s1, %s540
          %s542 = smul.u32 90, %s26
        $region92: #{a_call__.3} parent=83 // pred_fallthru
          _
      $region84: #{a_call__.3} parent=5 // pred_fallthru
        _
      %p543 = scmp.le.s32.totalorder 1, %s26
      %p544 = scmp.lt.s32.totalorder %s26, 5
      %p545 = pnand %p543, %p544
      %p546 = pneg %p545
      // Predicated region
      $region93: #{a_call__.3} parent=5 // pred_check
        _
      $region94: #{a_call__.3} parent=5 // pred_check_branch
        %548 = sbr.rel (%p545) target = $region96
      $region95: #{a_call__.3} parent=5 // pred_region
        %s549 = ssub.s32 %s26, 1
        %p550 = scmp.lt.s32.totalorder %s31, 3
        %s551 = scalar_select %p550, %s31, 3
        %s552 = smul.addr %s551, 6
        %s553 = scalar_lea.vmem %s0, %s552
        %p554 = pneg %p52
        %p555 = pneg %p49
        %s556 = smul.u32 90, %s31
        %p557 = scmp.lt.s32.totalorder %s556, 359
        %s558 = scalar_select %p557, %s556, 359
        %s559 = smul.addr %s558, 4
        %s560 = smul.addr %s559, 4
        %s561 = scalar_lea.vmem %s1, %s560
        %p562 = pneg %p78
        %p563 = pneg %p75
        %p564 = pneg %p99
        %p565 = pneg %p96
        %p566 = pneg %p120
        %p567 = pneg %p117
        %p568 = pneg %p141
        %p569 = pneg %p138
        %p570 = pneg %p162
        %p571 = pneg %p159
        %p572 = pneg %p183
        %p573 = pneg %p180
        %p574 = pneg %p204
        %p575 = pneg %p201
        %p576 = pneg %p225
        %p577 = pneg %p222
        %p578 = pneg %p246
        %p579 = pneg %p243
        %p580 = pneg %p267
        %p581 = pneg %p264
        %p582 = pneg %p288
        %p583 = pneg %p285
        %p584 = pneg %p309
        %p585 = pneg %p306
        %p586 = pneg %p330
        %p587 = pneg %p327
        %p588 = pneg %p351
        %p589 = pneg %p348
        %p590 = pneg %p372
        %p591 = pneg %p369
        %p592 = pneg %p393
        %p593 = pneg %p390
        %p594 = pneg %p414
        %p595 = pneg %p411
        %p596 = pneg %p435
        %p597 = pneg %p432
        %p598 = pneg %p456
        %p599 = pneg %p453
        %p600 = scmp.lt.s32.totalorder %s31, 3
        %s601 = scalar_select %p600, %s31, 3
        %s602 = smul.addr %s601, 6
        %s603 = scalar_lea.vmem %s0, %s602
        %s604 = smul.u32 90, %s31
        %p605 = scmp.lt.s32.totalorder %s604, 359
        %s606 = scalar_select %p605, %s604, 359
        %s607 = smul.addr %s606, 4
        %s608 = smul.addr %s607, 4
        %s609 = scalar_lea.vmem %s1, %s608
        %s610 = smul.u32 90, %s31
        %p612 = scmp.eq.s32.totalorder %s31, 0
        // Predicated region
        $region97: #{a_call__.3} parent=95 // pred_check
          %p613 = pneg %p612
        $region98: #{a_call__.3} parent=95 // pred_check_branch
          %615 = sbr.rel (%p613) target = $region100
        $region99: #{a_call__.3} parent=95 // pred_region
          %v616 = vld [vmem:[%s2] sm:$0xf]
          %v617 = vld [vmem:[%s2 + $0x4] sm:$0xf]
          %v618 = vld [vmem:[%s2 + $0x8] sm:$0xf]
          %v619 = vld [vmem:[%s2 + $0xc] sm:$0xf]
          %v620 = vld [vmem:[%s2 + $0x10] sm:$0xf]
          %v621 = vld [vmem:[%s2 + $0x14] sm:$0xf]
          %v622 = vld [vmem:[%s2 + $0x18] sm:$0xf]
          %v623 = vld [vmem:[%s2 + $0x1c] sm:$0xf]
          %v624 = vld [vmem:[%s2 + $0x20] sm:$0xf]
          %v625 = vld [vmem:[%s2 + $0x24] sm:$0xf]
          %v626 = vld [vmem:[%s2 + $0x28] sm:$0xf]
          %v627 = vld [vmem:[%s2 + $0x2c] sm:$0xf]
          %v628 = vld [vmem:[%s2 + $0x30] sm:$0xf]
          %v629 = vld [vmem:[%s2 + $0x34] sm:$0xf]
          %v630 = vld [vmem:[%s2 + $0x38] sm:$0xf]
          %v631 = vld [vmem:[%s2 + $0x3c] sm:$0xf]
          %v632 = vld [vmem:[%s2 + $0x40] sm:$0xf]
          %v633 = vld [vmem:[%s2 + $0x44] sm:$0xf]
          %v634 = vld [vmem:[%s2 + $0x48] sm:$0xf]
          %v635 = vld [vmem:[%s2 + $0x4c] sm:$0xf]
          %v636 = vld [vmem:[%s2 + $0x50] sm:$0xf]
          %v637 = vld [vmem:[%s2 + $0x54] sm:$0xf]
          %v638 = vld [vmem:[%s2 + $0x58] sm:$0xf]
          %v639 = vld [vmem:[%s2 + $0x5c] sm:$0xf]
          %v640 = vld [vmem:[%s2 + $0x60] sm:$0xf]
          %v641 = vld [vmem:[%s2 + $0x64] sm:$0xf]
          %v642 = vld [vmem:[%s2 + $0x68] sm:$0xf]
          %v643 = vld [vmem:[%s2 + $0x6c] sm:$0xf]
          %v644 = vld [vmem:[%s2 + $0x70] sm:$0xf]
          %v645 = vld [vmem:[%s2 + $0x74] sm:$0xf]
          %v646 = vld [vmem:[%s2 + $0x78] sm:$0xf]
          %v647 = vld [vmem:[%s2 + $0x7c] sm:$0xf]
          %v648 = vld [vmem:[%s2 + $0x80] sm:$0xf]
          %v649 = vld [vmem:[%s2 + $0x84] sm:$0xf]
          %v650 = vld [vmem:[%s2 + $0x88] sm:$0xf]
          %v651 = vld [vmem:[%s2 + $0x8c] sm:$0xf]
          %v652 = vld [vmem:[%s3] sm:$0xf]
          %v653 = vld [vmem:[%s3 + $0x4] sm:$0xf]
          %v654 = vld [vmem:[%s3 + $0x8] sm:$0x3]
          %v655 = vld [vmem:[%s4] sm:$0x1]
          %v657 = vlaneseq
          %v658 = vshrl.u32 %v657, 7
          %v659 = vsub.s32 0, %v658
          %v660 = vrot.slane %v655, %v659
          %v698 = vunpack.c.l.b16 %v616
          %v699 = vunpack.c.l.b16 %v617
          %v700 = vunpack.c.l.b16 %v618
          %v701 = vunpack.c.l.b16 %v619
          %v702 = vunpack.c.l.b16 %v620
          %v703 = vunpack.c.l.b16 %v621
          %v704 = vunpack.c.l.b16 %v622
          %v705 = vunpack.c.l.b16 %v623
          %v706 = vunpack.c.l.b16 %v624
          %v707 = vunpack.c.l.b16 %v625
          %v708 = vunpack.c.l.b16 %v626
          %v709 = vunpack.c.l.b16 %v627
          %v710 = vunpack.c.l.b16 %v628
          %v711 = vunpack.c.l.b16 %v629
          %v712 = vunpack.c.l.b16 %v630
          %v713 = vunpack.c.l.b16 %v631
          %v714 = vunpack.c.l.b16 %v632
          %v715 = vunpack.c.l.b16 %v633
          %v716 = vunpack.c.l.b16 %v634
          %v717 = vunpack.c.l.b16 %v635
          %v718 = vunpack.c.l.b16 %v636
          %v719 = vunpack.c.l.b16 %v637
          %v720 = vunpack.c.l.b16 %v638
          %v721 = vunpack.c.l.b16 %v639
          %v722 = vunpack.c.l.b16 %v640
          %v723 = vunpack.c.l.b16 %v641
          %v724 = vunpack.c.l.b16 %v642
          %v725 = vunpack.c.l.b16 %v643
          %v726 = vunpack.c.l.b16 %v644
          %v727 = vunpack.c.l.b16 %v645
          %v728 = vunpack.c.l.b16 %v646
          %v729 = vunpack.c.l.b16 %v647
          %v730 = vunpack.c.l.b16 %v648
          %v731 = vunpack.c.l.b16 %v649
          %v732 = vunpack.c.l.b16 %v650
          %v733 = vunpack.c.l.b16 %v651
          %v734 = vpack.c.b16 %v699, %v698
          %v735 = vpack.c.b16 %v701, %v700
          %v736 = vpack.c.b16 %v703, %v702
          %v737 = vpack.c.b16 %v705, %v704
          %v738 = vpack.c.b16 %v707, %v706
          %v739 = vpack.c.b16 %v709, %v708
          %v740 = vpack.c.b16 %v711, %v710
          %v741 = vpack.c.b16 %v713, %v712
          %v742 = vpack.c.b16 %v715, %v714
          %v743 = vpack.c.b16 %v717, %v716
          %v744 = vpack.c.b16 %v719, %v718
          %v745 = vpack.c.b16 %v721, %v720
          %v746 = vpack.c.b16 %v723, %v722
          %v747 = vpack.c.b16 %v725, %v724
          %v748 = vpack.c.b16 %v727, %v726
          %v749 = vpack.c.b16 %v729, %v728
          %v750 = vpack.c.b16 %v731, %v730
          %v751 = vpack.c.b16 %v733, %v732
          %v755 = vunpack.c.l.b16 %v652
          %v756 = vunpack.c.l.b16 %v653
          %v757 = vunpack.c.l.b16 %v654
          %v758 = vpack.c.b16 %v756, %v755
          %v759 = vpack.c.b16 %v757, %v757
          %vm761 = vcmask 162816
          %v763 = vsel %vm761, %v734, 0
          %v766 = vsel %vm761, %v735, 0
          %v769 = vsel %vm761, %v736, 0
          %v772 = vsel %vm761, %v737, 0
          %v775 = vsel %vm761, %v738, 0
          %v778 = vsel %vm761, %v739, 0
          %v781 = vsel %vm761, %v740, 0
          %v784 = vsel %vm761, %v741, 0
          %v787 = vsel %vm761, %v742, 0
          %v790 = vsel %vm761, %v743, 0
          %v793 = vsel %vm761, %v744, 0
          %v796 = vsel %vm761, %v745, 0
          %v799 = vsel %vm761, %v746, 0
          %v802 = vsel %vm761, %v747, 0
          %v805 = vsel %vm761, %v748, 0
          %v808 = vsel %vm761, %v749, 0
          %v811 = vsel %vm761, %v750, 0
          %v814 = vsel %vm761, %v751, 0
          %vm816 = vcmask 1041408
          %v818 = vsel %vm816, %v759, 0
          %820 = vmatprep.subr.bf16.mxu0 0
          %821 = vmatpush1.bf16.msra.mxu0 0
          %822 = vmatprep.subr.bf16.mxu0 0
          %823 = vmatpush1.bf16.msra.mxu0 0
          %824 = vmatprep.subr.bf16.mxu0 0
          %825 = vmatpush1.bf16.msra.mxu0 0
          %826 = vmatprep.subr.bf16.mxu0 0
          %827 = vmatpush1.bf16.msra.mxu0 0
          %828 = vmatprep.subr.bf16.mxu0 0
          %829 = vmatpush1.bf16.msra.mxu0 0
          %830 = vmatprep.subr.bf16.mxu0 0
          %831 = vmatpush1.bf16.msra.mxu0 0
          %832 = vmatprep.subr.bf16.mxu0 0
          %833 = vmatpush1.bf16.msra.mxu0 %v818
          %834 = vmatprep.subr.bf16.mxu0 0
          %835 = vmatpush1.bf16.msra.mxu0 %v758
          %836 = vmatprep.subr.bf16.mxu0 0
          %837 = vmatpush2.bf16.msra.mxu0 0
          %838 = vmatprep.subr.bf16.mxu0 0
          %839 = vmatpush2.bf16.msra.mxu0 0
          %840 = vmatprep.subr.bf16.mxu0 0
          %841 = vmatpush2.bf16.msra.mxu0 0
          %842 = vmatprep.subr.bf16.mxu0 0
          %843 = vmatpush2.bf16.msra.mxu0 0
          %844 = vmatprep.subr.bf16.mxu0 0
          %845 = vmatpush2.bf16.msra.mxu0 0
          %846 = vmatprep.subr.bf16.mxu0 0
          %847 = vmatpush2.bf16.msra.mxu0 0
          %848 = vmatprep.subr.bf16.mxu0 0
          %849 = vmatpush2.bf16.msra.mxu0 0
          %850 = vmatprep.subr.bf16.mxu0 0
          %851 = vmatpush2.bf16.msra.mxu0 0
          %852 = vmatprep.mubr.bf16.mxu0 0
          %853 = vmatmul.mubr.bf16.gmra.mxu0 %v763
          %v854 = vpop.f32.mrf.mxu0
          %v855 = vadd.f32 %v660, %v854
          %v856 = vpop.f32.mrf.mxu0
          %v857 = vpop.f32.mrf.mxu0
          %v858 = vadd.f32 %v660, %v857
          %v859 = vpop.f32.mrf.mxu0
          %860 = vmatprep.mubr.bf16.mxu0 0
          %861 = vmatmul.mubr.bf16.gmra.mxu0 %v766
          %v862 = vpop.f32.mrf.mxu0
          %v863 = vadd.f32 %v660, %v862
          %v864 = vpop.f32.mrf.mxu0
          %v865 = vpop.f32.mrf.mxu0
          %v866 = vadd.f32 %v660, %v865
          %v867 = vpop.f32.mrf.mxu0
          %868 = vmatprep.mubr.bf16.mxu0 0
          %869 = vmatmul.mubr.bf16.gmra.mxu0 %v769
          %v870 = vpop.f32.mrf.mxu0
          %v871 = vadd.f32 %v660, %v870
          %v872 = vpop.f32.mrf.mxu0
          %v873 = vpop.f32.mrf.mxu0
          %v874 = vadd.f32 %v660, %v873
          %v875 = vpop.f32.mrf.mxu0
          %876 = vmatprep.mubr.bf16.mxu0 0
          %877 = vmatmul.mubr.bf16.gmra.mxu0 %v772
          %v878 = vpop.f32.mrf.mxu0
          %v879 = vadd.f32 %v660, %v878
          %v880 = vpop.f32.mrf.mxu0
          %v881 = vpop.f32.mrf.mxu0
          %v882 = vadd.f32 %v660, %v881
          %v883 = vpop.f32.mrf.mxu0
          %884 = vmatprep.mubr.bf16.mxu0 0
          %885 = vmatmul.mubr.bf16.gmra.mxu0 %v775
          %v886 = vpop.f32.mrf.mxu0
          %v887 = vadd.f32 %v660, %v886
          %v888 = vpop.f32.mrf.mxu0
          %v889 = vpop.f32.mrf.mxu0
          %v890 = vadd.f32 %v660, %v889
          %v891 = vpop.f32.mrf.mxu0
          %892 = vmatprep.mubr.bf16.mxu0 0
          %893 = vmatmul.mubr.bf16.gmra.mxu0 %v778
          %v894 = vpop.f32.mrf.mxu0
          %v895 = vadd.f32 %v660, %v894
          %v896 = vpop.f32.mrf.mxu0
          %v897 = vpop.f32.mrf.mxu0
          %v898 = vadd.f32 %v660, %v897
          %v899 = vpop.f32.mrf.mxu0
          %900 = vmatprep.mubr.bf16.mxu0 0
          %901 = vmatmul.mubr.bf16.gmra.mxu0 %v781
          %v902 = vpop.f32.mrf.mxu0
          %v903 = vadd.f32 %v660, %v902
          %v904 = vpop.f32.mrf.mxu0
          %v905 = vpop.f32.mrf.mxu0
          %v906 = vadd.f32 %v660, %v905
          %v907 = vpop.f32.mrf.mxu0
          %908 = vmatprep.mubr.bf16.mxu0 0
          %909 = vmatmul.mubr.bf16.gmra.mxu0 %v784
          %v910 = vpop.f32.mrf.mxu0
          %v911 = vadd.f32 %v660, %v910
          %v912 = vpop.f32.mrf.mxu0
          %v913 = vpop.f32.mrf.mxu0
          %v914 = vadd.f32 %v660, %v913
          %v915 = vpop.f32.mrf.mxu0
          %916 = vmatprep.mubr.bf16.mxu0 0
          %917 = vmatmul.mubr.bf16.gmra.mxu0 %v787
          %v918 = vpop.f32.mrf.mxu0
          %v919 = vadd.f32 %v660, %v918
          %v920 = vpop.f32.mrf.mxu0
          %v921 = vpop.f32.mrf.mxu0
          %v922 = vadd.f32 %v660, %v921
          %v923 = vpop.f32.mrf.mxu0
          %924 = vmatprep.mubr.bf16.mxu0 0
          %925 = vmatmul.mubr.bf16.gmra.mxu0 %v790
          %v926 = vpop.f32.mrf.mxu0
          %v927 = vadd.f32 %v660, %v926
          %v928 = vpop.f32.mrf.mxu0
          %v929 = vpop.f32.mrf.mxu0
          %v930 = vadd.f32 %v660, %v929
          %v931 = vpop.f32.mrf.mxu0
          %932 = vmatprep.mubr.bf16.mxu0 0
          %933 = vmatmul.mubr.bf16.gmra.mxu0 %v793
          %v934 = vpop.f32.mrf.mxu0
          %v935 = vadd.f32 %v660, %v934
          %v936 = vpop.f32.mrf.mxu0
          %v937 = vpop.f32.mrf.mxu0
          %v938 = vadd.f32 %v660, %v937
          %v939 = vpop.f32.mrf.mxu0
          %940 = vmatprep.mubr.bf16.mxu0 0
          %941 = vmatmul.mubr.bf16.gmra.mxu0 %v796
          %v942 = vpop.f32.mrf.mxu0
          %v943 = vadd.f32 %v660, %v942
          %v944 = vpop.f32.mrf.mxu0
          %v945 = vpop.f32.mrf.mxu0
          %v946 = vadd.f32 %v660, %v945
          %v947 = vpop.f32.mrf.mxu0
          %948 = vmatprep.mubr.bf16.mxu0 0
          %949 = vmatmul.mubr.bf16.gmra.mxu0 %v799
          %v950 = vpop.f32.mrf.mxu0
          %v951 = vadd.f32 %v660, %v950
          %v952 = vpop.f32.mrf.mxu0
          %v953 = vpop.f32.mrf.mxu0
          %v954 = vadd.f32 %v660, %v953
          %v955 = vpop.f32.mrf.mxu0
          %956 = vmatprep.mubr.bf16.mxu0 0
          %957 = vmatmul.mubr.bf16.gmra.mxu0 %v802
          %v958 = vpop.f32.mrf.mxu0
          %v959 = vadd.f32 %v660, %v958
          %v960 = vpop.f32.mrf.mxu0
          %v961 = vpop.f32.mrf.mxu0
          %v962 = vadd.f32 %v660, %v961
          %v963 = vpop.f32.mrf.mxu0
          %964 = vmatprep.mubr.bf16.mxu0 0
          %965 = vmatmul.mubr.bf16.gmra.mxu0 %v805
          %v966 = vpop.f32.mrf.mxu0
          %v967 = vadd.f32 %v660, %v966
          %v968 = vpop.f32.mrf.mxu0
          %v969 = vpop.f32.mrf.mxu0
          %v970 = vadd.f32 %v660, %v969
          %v971 = vpop.f32.mrf.mxu0
          %972 = vmatprep.mubr.bf16.mxu0 0
          %973 = vmatmul.mubr.bf16.gmra.mxu0 %v808
          %v974 = vpop.f32.mrf.mxu0
          %v975 = vadd.f32 %v660, %v974
          %v976 = vpop.f32.mrf.mxu0
          %v977 = vpop.f32.mrf.mxu0
          %v978 = vadd.f32 %v660, %v977
          %v979 = vpop.f32.mrf.mxu0
          %980 = vmatprep.mubr.bf16.mxu0 0
          %981 = vmatmul.mubr.bf16.gmra.mxu0 %v811
          %v982 = vpop.f32.mrf.mxu0
          %v983 = vadd.f32 %v660, %v982
          %v984 = vpop.f32.mrf.mxu0
          %v985 = vpop.f32.mrf.mxu0
          %v986 = vadd.f32 %v660, %v985
          %v987 = vpop.f32.mrf.mxu0
          %988 = vmatprep.mubr.bf16.mxu0 0
          %989 = vmatmul.mubr.bf16.gmra.mxu0 %v814
          %v990 = vpop.f32.mrf.mxu0
          %v991 = vadd.f32 %v660, %v990
          %v992 = vpop.f32.mrf.mxu0
          %v993 = vpop.f32.mrf.mxu0
          %v994 = vadd.f32 %v660, %v993
          %v995 = vpop.f32.mrf.mxu0
          %996 = vdwg.mxu0
          %v997 = vtanh.pop %v855
          %v998 = vtanh.pop %v858
          %v999 = vtanh.pop %v863
          %v1000 = vtanh.pop %v866
          %v1001 = vtanh.pop %v871
          %v1002 = vtanh.pop %v874
          %v1003 = vtanh.pop %v879
          %v1004 = vtanh.pop %v882
          %v1005 = vtanh.pop %v887
          %v1006 = vtanh.pop %v890
          %v1007 = vtanh.pop %v895
          %v1008 = vtanh.pop %v898
          %v1009 = vtanh.pop %v903
          %v1010 = vtanh.pop %v906
          %v1011 = vtanh.pop %v911
          %v1012 = vtanh.pop %v914
          %v1013 = vtanh.pop %v919
          %v1014 = vtanh.pop %v922
          %v1015 = vtanh.pop %v927
          %v1016 = vtanh.pop %v930
          %v1017 = vtanh.pop %v935
          %v1018 = vtanh.pop %v938
          %v1019 = vtanh.pop %v943
          %v1020 = vtanh.pop %v946
          %v1021 = vtanh.pop %v951
          %v1022 = vtanh.pop %v954
          %v1023 = vtanh.pop %v959
          %v1024 = vtanh.pop %v962
          %v1025 = vtanh.pop %v967
          %v1026 = vtanh.pop %v970
          %v1027 = vtanh.pop %v975
          %v1028 = vtanh.pop %v978
          %v1029 = vtanh.pop %v983
          %v1030 = vtanh.pop %v986
          %v1031 = vtanh.pop %v991
          %v1032 = vtanh.pop %v994
          %v1033 = vpack.c.bf16 %v998, %v997
          %v1034 = vpack.c.bf16 %v1000, %v999
          %v1035 = vpack.c.bf16 %v1002, %v1001
          %v1036 = vpack.c.bf16 %v1004, %v1003
          %v1037 = vpack.c.bf16 %v1006, %v1005
          %v1038 = vpack.c.bf16 %v1008, %v1007
          %v1039 = vpack.c.bf16 %v1010, %v1009
          %v1040 = vpack.c.bf16 %v1012, %v1011
          %v1041 = vpack.c.bf16 %v1014, %v1013
          %v1042 = vpack.c.bf16 %v1016, %v1015
          %v1043 = vpack.c.bf16 %v1018, %v1017
          %v1044 = vpack.c.bf16 %v1020, %v1019
          %v1045 = vpack.c.bf16 %v1022, %v1021
          %v1046 = vpack.c.bf16 %v1024, %v1023
          %v1047 = vpack.c.bf16 %v1026, %v1025
          %v1048 = vpack.c.bf16 %v1028, %v1027
          %v1049 = vpack.c.bf16 %v1030, %v1029
          %v1050 = vpack.c.bf16 %v1032, %v1031
          %v1051 = vld [vmem:[%s5] sm:$0xf]
          %v1052 = vld [vmem:[%s5 + $0x4] sm:$0xf]
          %v1053 = vld [vmem:[%s5 + $0x8] sm:$0xf]
          %v1054 = vld [vmem:[%s5 + $0xc] sm:$0xf]
          %v1055 = vld [vmem:[%s5 + $0x10] sm:$0xf]
          %v1056 = vld [vmem:[%s5 + $0x14] sm:$0xf]
          %v1057 = vld [vmem:[%s5 + $0x18] sm:$0xf]
          %v1058 = vld [vmem:[%s5 + $0x1c] sm:$0xf]
          %v1059 = vld [vmem:[%s5 + $0x20] sm:$0xf]
          %v1060 = vld [vmem:[%s5 + $0x24] sm:$0xf]
          %v1061 = vld [vmem:[%s5 + $0x28] sm:$0xf]
          %v1062 = vld [vmem:[%s5 + $0x2c] sm:$0xf]
          %v1063 = vld [vmem:[%s5 + $0x30] sm:$0xf]
          %v1064 = vld [vmem:[%s5 + $0x34] sm:$0xf]
          %v1065 = vld [vmem:[%s5 + $0x38] sm:$0xf]
          %v1066 = vld [vmem:[%s5 + $0x3c] sm:$0xf]
          %v1067 = vld [vmem:[%s6] sm:$0x1]
          %v1069 = vlaneseq
          %v1070 = vshrl.u32 %v1069, 7
          %v1071 = vsub.s32 0, %v1070
          %v1072 = vrot.slane %v1067, %v1071
          %v1090 = vunpack.c.l.b16 %v1051
          %v1091 = vunpack.c.l.b16 %v1052
          %v1092 = vunpack.c.l.b16 %v1053
          %v1093 = vunpack.c.l.b16 %v1054
          %v1094 = vunpack.c.l.b16 %v1055
          %v1095 = vunpack.c.l.b16 %v1056
          %v1096 = vunpack.c.l.b16 %v1057
          %v1097 = vunpack.c.l.b16 %v1058
          %v1098 = vunpack.c.l.b16 %v1059
          %v1099 = vunpack.c.l.b16 %v1060
          %v1100 = vunpack.c.l.b16 %v1061
          %v1101 = vunpack.c.l.b16 %v1062
          %v1102 = vunpack.c.l.b16 %v1063
          %v1103 = vunpack.c.l.b16 %v1064
          %v1104 = vunpack.c.l.b16 %v1065
          %v1105 = vunpack.c.l.b16 %v1066
          %v1106 = vpack.c.b16 %v1091, %v1090
          %v1107 = vpack.c.b16 %v1093, %v1092
          %v1108 = vpack.c.b16 %v1095, %v1094
          %v1109 = vpack.c.b16 %v1097, %v1096
          %v1110 = vpack.c.b16 %v1099, %v1098
          %v1111 = vpack.c.b16 %v1101, %v1100
          %v1112 = vpack.c.b16 %v1103, %v1102
          %v1113 = vpack.c.b16 %v1105, %v1104
          %1122 = vmatprep.subr.bf16.mxu0 0
          %1123 = vmatpush1.bf16.msra.mxu0 %v1113
          %1124 = vmatprep.subr.bf16.mxu0 0
          %1125 = vmatpush1.bf16.msra.mxu0 %v1112
          %1126 = vmatprep.subr.bf16.mxu0 0
          %1127 = vmatpush1.bf16.msra.mxu0 %v1111
          %1128 = vmatprep.subr.bf16.mxu0 0
          %1129 = vmatpush1.bf16.msra.mxu0 %v1110
          %1130 = vmatprep.subr.bf16.mxu0 0
          %1131 = vmatpush1.bf16.msra.mxu0 %v1109
          %1132 = vmatprep.subr.bf16.mxu0 0
          %1133 = vmatpush1.bf16.msra.mxu0 %v1108
          %1134 = vmatprep.subr.bf16.mxu0 0
          %1135 = vmatpush1.bf16.msra.mxu0 %v1107
          %1136 = vmatprep.subr.bf16.mxu0 0
          %1137 = vmatpush1.bf16.msra.mxu0 %v1106
          %1138 = vmatprep.subr.bf16.mxu0 0
          %1139 = vmatpush2.bf16.msra.mxu0 0
          %1140 = vmatprep.subr.bf16.mxu0 0
          %1141 = vmatpush2.bf16.msra.mxu0 0
          %1142 = vmatprep.subr.bf16.mxu0 0
          %1143 = vmatpush2.bf16.msra.mxu0 0
          %1144 = vmatprep.subr.bf16.mxu0 0
          %1145 = vmatpush2.bf16.msra.mxu0 0
          %1146 = vmatprep.subr.bf16.mxu0 0
          %1147 = vmatpush2.bf16.msra.mxu0 0
          %1148 = vmatprep.subr.bf16.mxu0 0
          %1149 = vmatpush2.bf16.msra.mxu0 0
          %1150 = vmatprep.subr.bf16.mxu0 0
          %1151 = vmatpush2.bf16.msra.mxu0 0
          %1152 = vmatprep.subr.bf16.mxu0 0
          %1153 = vmatpush2.bf16.msra.mxu0 0
          %1154 = vmatprep.mubr.bf16.mxu0 0
          %1155 = vmatmul.mubr.bf16.gmra.mxu0 %v1033
          %v1156 = vpop.f32.mrf.mxu0
          %v1157 = vadd.f32 %v1072, %v1156
          %v1158 = vpop.f32.mrf.mxu0
          %v1159 = vpop.f32.mrf.mxu0
          %v1160 = vadd.f32 %v1072, %v1159
          %v1161 = vpop.f32.mrf.mxu0
          %1162 = vmatprep.mubr.bf16.mxu0 0
          %1163 = vmatmul.mubr.bf16.gmra.mxu0 %v1034
          %v1164 = vpop.f32.mrf.mxu0
          %v1165 = vadd.f32 %v1072, %v1164
          %v1166 = vpop.f32.mrf.mxu0
          %v1167 = vpop.f32.mrf.mxu0
          %v1168 = vadd.f32 %v1072, %v1167
          %v1169 = vpop.f32.mrf.mxu0
          %1170 = vmatprep.mubr.bf16.mxu0 0
          %1171 = vmatmul.mubr.bf16.gmra.mxu0 %v1035
          %v1172 = vpop.f32.mrf.mxu0
          %v1173 = vadd.f32 %v1072, %v1172
          %v1174 = vpop.f32.mrf.mxu0
          %v1175 = vpop.f32.mrf.mxu0
          %v1176 = vadd.f32 %v1072, %v1175
          %v1177 = vpop.f32.mrf.mxu0
          %1178 = vmatprep.mubr.bf16.mxu0 0
          %1179 = vmatmul.mubr.bf16.gmra.mxu0 %v1036
          %v1180 = vpop.f32.mrf.mxu0
          %v1181 = vadd.f32 %v1072, %v1180
          %v1182 = vpop.f32.mrf.mxu0
          %v1183 = vpop.f32.mrf.mxu0
          %v1184 = vadd.f32 %v1072, %v1183
          %v1185 = vpop.f32.mrf.mxu0
          %1186 = vmatprep.mubr.bf16.mxu0 0
          %1187 = vmatmul.mubr.bf16.gmra.mxu0 %v1037
          %v1188 = vpop.f32.mrf.mxu0
          %v1189 = vadd.f32 %v1072, %v1188
          %v1190 = vpop.f32.mrf.mxu0
          %v1191 = vpop.f32.mrf.mxu0
          %v1192 = vadd.f32 %v1072, %v1191
          %v1193 = vpop.f32.mrf.mxu0
          %1194 = vmatprep.mubr.bf16.mxu0 0
          %1195 = vmatmul.mubr.bf16.gmra.mxu0 %v1038
          %v1196 = vpop.f32.mrf.mxu0
          %v1197 = vadd.f32 %v1072, %v1196
          %v1198 = vpop.f32.mrf.mxu0
          %v1199 = vpop.f32.mrf.mxu0
          %v1200 = vadd.f32 %v1072, %v1199
          %v1201 = vpop.f32.mrf.mxu0
          %1202 = vmatprep.mubr.bf16.mxu0 0
          %1203 = vmatmul.mubr.bf16.gmra.mxu0 %v1039
          %v1204 = vpop.f32.mrf.mxu0
          %v1205 = vadd.f32 %v1072, %v1204
          %v1206 = vpop.f32.mrf.mxu0
          %v1207 = vpop.f32.mrf.mxu0
          %v1208 = vadd.f32 %v1072, %v1207
          %v1209 = vpop.f32.mrf.mxu0
          %1210 = vmatprep.mubr.bf16.mxu0 0
          %1211 = vmatmul.mubr.bf16.gmra.mxu0 %v1040
          %v1212 = vpop.f32.mrf.mxu0
          %v1213 = vadd.f32 %v1072, %v1212
          %v1214 = vpop.f32.mrf.mxu0
          %v1215 = vpop.f32.mrf.mxu0
          %v1216 = vadd.f32 %v1072, %v1215
          %v1217 = vpop.f32.mrf.mxu0
          %1218 = vmatprep.mubr.bf16.mxu0 0
          %1219 = vmatmul.mubr.bf16.gmra.mxu0 %v1041
          %v1220 = vpop.f32.mrf.mxu0
          %v1221 = vadd.f32 %v1072, %v1220
          %v1222 = vpop.f32.mrf.mxu0
          %v1223 = vpop.f32.mrf.mxu0
          %v1224 = vadd.f32 %v1072, %v1223
          %v1225 = vpop.f32.mrf.mxu0
          %1226 = vmatprep.mubr.bf16.mxu0 0
          %1227 = vmatmul.mubr.bf16.gmra.mxu0 %v1042
          %v1228 = vpop.f32.mrf.mxu0
          %v1229 = vadd.f32 %v1072, %v1228
          %v1230 = vpop.f32.mrf.mxu0
          %v1231 = vpop.f32.mrf.mxu0
          %v1232 = vadd.f32 %v1072, %v1231
          %v1233 = vpop.f32.mrf.mxu0
          %1234 = vmatprep.mubr.bf16.mxu0 0
          %1235 = vmatmul.mubr.bf16.gmra.mxu0 %v1043
          %v1236 = vpop.f32.mrf.mxu0
          %v1237 = vadd.f32 %v1072, %v1236
          %v1238 = vpop.f32.mrf.mxu0
          %v1239 = vpop.f32.mrf.mxu0
          %v1240 = vadd.f32 %v1072, %v1239
          %v1241 = vpop.f32.mrf.mxu0
          %1242 = vmatprep.mubr.bf16.mxu0 0
          %1243 = vmatmul.mubr.bf16.gmra.mxu0 %v1044
          %v1244 = vpop.f32.mrf.mxu0
          %v1245 = vadd.f32 %v1072, %v1244
          %v1246 = vpop.f32.mrf.mxu0
          %v1247 = vpop.f32.mrf.mxu0
          %v1248 = vadd.f32 %v1072, %v1247
          %v1249 = vpop.f32.mrf.mxu0
          %1250 = vmatprep.mubr.bf16.mxu0 0
          %1251 = vmatmul.mubr.bf16.gmra.mxu0 %v1045
          %v1252 = vpop.f32.mrf.mxu0
          %v1253 = vadd.f32 %v1072, %v1252
          %v1254 = vpop.f32.mrf.mxu0
          %v1255 = vpop.f32.mrf.mxu0
          %v1256 = vadd.f32 %v1072, %v1255
          %v1257 = vpop.f32.mrf.mxu0
          %1258 = vmatprep.mubr.bf16.mxu0 0
          %1259 = vmatmul.mubr.bf16.gmra.mxu0 %v1046
          %v1260 = vpop.f32.mrf.mxu0
          %v1261 = vadd.f32 %v1072, %v1260
          %v1262 = vpop.f32.mrf.mxu0
          %v1263 = vpop.f32.mrf.mxu0
          %v1264 = vadd.f32 %v1072, %v1263
          %v1265 = vpop.f32.mrf.mxu0
          %1266 = vmatprep.mubr.bf16.mxu0 0
          %1267 = vmatmul.mubr.bf16.gmra.mxu0 %v1047
          %v1268 = vpop.f32.mrf.mxu0
          %v1269 = vadd.f32 %v1072, %v1268
          %v1270 = vpop.f32.mrf.mxu0
          %v1271 = vpop.f32.mrf.mxu0
          %v1272 = vadd.f32 %v1072, %v1271
          %v1273 = vpop.f32.mrf.mxu0
          %1274 = vmatprep.mubr.bf16.mxu0 0
          %1275 = vmatmul.mubr.bf16.gmra.mxu0 %v1048
          %v1276 = vpop.f32.mrf.mxu0
          %v1277 = vadd.f32 %v1072, %v1276
          %v1278 = vpop.f32.mrf.mxu0
          %v1279 = vpop.f32.mrf.mxu0
          %v1280 = vadd.f32 %v1072, %v1279
          %v1281 = vpop.f32.mrf.mxu0
          %1282 = vmatprep.mubr.bf16.mxu0 0
          %1283 = vmatmul.mubr.bf16.gmra.mxu0 %v1049
          %v1284 = vpop.f32.mrf.mxu0
          %v1285 = vadd.f32 %v1072, %v1284
          %v1286 = vpop.f32.mrf.mxu0
          %v1287 = vpop.f32.mrf.mxu0
          %v1288 = vadd.f32 %v1072, %v1287
          %v1289 = vpop.f32.mrf.mxu0
          %1290 = vmatprep.mubr.bf16.mxu0 0
          %1291 = vmatmul.mubr.bf16.gmra.mxu0 %v1050
          %v1292 = vpop.f32.mrf.mxu0
          %v1293 = vadd.f32 %v1072, %v1292
          %v1294 = vpop.f32.mrf.mxu0
          %v1295 = vpop.f32.mrf.mxu0
          %v1296 = vadd.f32 %v1072, %v1295
          %v1297 = vpop.f32.mrf.mxu0
          %1298 = vdwg.mxu0
          %vm1299 = vcmask 31744
          %v1300 = vsel %vm1299, %v1157, -inf
          %v1301 = vsel %vm1299, %v1160, -inf
          %v1302 = vsel %vm1299, %v1165, -inf
          %v1303 = vsel %vm1299, %v1168, -inf
          %v1304 = vsel %vm1299, %v1173, -inf
          %v1305 = vmax.f32 %v1300, %v1304
          %v1306 = vsel %vm1299, %v1176, -inf
          %v1307 = vmax.f32 %v1301, %v1306
          %v1308 = vsel %vm1299, %v1181, -inf
          %v1309 = vmax.f32 %v1302, %v1308
          %v1310 = vsel %vm1299, %v1184, -inf
          %v1311 = vmax.f32 %v1303, %v1310
          %v1312 = vsel %vm1299, %v1189, -inf
          %v1313 = vmax.f32 %v1305, %v1312
          %v1314 = vsel %vm1299, %v1192, -inf
          %v1315 = vmax.f32 %v1307, %v1314
          %v1316 = vsel %vm1299, %v1197, -inf
          %v1317 = vmax.f32 %v1309, %v1316
          %v1318 = vsel %vm1299, %v1200, -inf
          %v1319 = vmax.f32 %v1311, %v1318
          %v1320 = vsel %vm1299, %v1205, -inf
          %v1321 = vmax.f32 %v1313, %v1320
          %v1322 = vsel %vm1299, %v1208, -inf
          %v1323 = vmax.f32 %v1315, %v1322
          %v1324 = vsel %vm1299, %v1213, -inf
          %v1325 = vmax.f32 %v1317, %v1324
          %v1326 = vsel %vm1299, %v1216, -inf
          %v1327 = vmax.f32 %v1319, %v1326
          %v1328 = vsel %vm1299, %v1221, -inf
          %v1329 = vmax.f32 %v1321, %v1328
          %v1330 = vsel %vm1299, %v1224, -inf
          %v1331 = vmax.f32 %v1323, %v1330
          %v1332 = vmax.f32 %v1329, %v1331
          %v1333 = vmax.f32 %v1325, %v1327
          %v1334 = vmax.f32 %v1332, %v1333
          %v1335 = vrot.slane %v1334, 4
          %v1336 = vmax.f32 %v1334, %v1335
          %v1337 = vrot.slane %v1336, 2
          %v1338 = vmax.f32 %v1336, %v1337
          %v1339 = vrot.slane %v1338, 1
          %v1340 = vmax.f32 %v1338, %v1339
          %v1341 = vsub.f32 %v1157, %v1340
          %v1342 = vsub.f32 %v1160, %v1340
          %v1343 = vsub.f32 %v1165, %v1340
          %v1344 = vsub.f32 %v1168, %v1340
          %v1345 = vsub.f32 %v1173, %v1340
          %v1346 = vsub.f32 %v1176, %v1340
          %v1347 = vsub.f32 %v1181, %v1340
          %v1348 = vsub.f32 %v1184, %v1340
          %v1349 = vsub.f32 %v1189, %v1340
          %v1350 = vsub.f32 %v1192, %v1340
          %v1351 = vsub.f32 %v1197, %v1340
          %v1352 = vsub.f32 %v1200, %v1340
          %v1353 = vsub.f32 %v1205, %v1340
          %v1354 = vsub.f32 %v1208, %v1340
          %v1355 = vsub.f32 %v1213, %v1340
          %v1356 = vsub.f32 %v1216, %v1340
          %v1357 = vsub.f32 %v1221, %v1340
          %v1358 = vsub.f32 %v1224, %v1340
          %v1359 = vmul.f32 %v1341, 1.442695
          %v1360 = vpow.pop %v1359
          %v1361 = vmul.f32 %v1342, 1.442695
          %v1362 = vpow.pop %v1361
          %v1363 = vmul.f32 %v1343, 1.442695
          %v1364 = vpow.pop %v1363
          %v1365 = vmul.f32 %v1344, 1.442695
          %v1366 = vpow.pop %v1365
          %v1367 = vmul.f32 %v1345, 1.442695
          %v1368 = vpow.pop %v1367
          %v1369 = vmul.f32 %v1346, 1.442695
          %v1370 = vpow.pop %v1369
          %v1371 = vmul.f32 %v1347, 1.442695
          %v1372 = vpow.pop %v1371
          %v1373 = vmul.f32 %v1348, 1.442695
          %v1374 = vpow.pop %v1373
          %v1375 = vmul.f32 %v1349, 1.442695
          %v1376 = vpow.pop %v1375
          %v1377 = vmul.f32 %v1350, 1.442695
          %v1378 = vpow.pop %v1377
          %v1379 = vmul.f32 %v1351, 1.442695
          %v1380 = vpow.pop %v1379
          %v1381 = vmul.f32 %v1352, 1.442695
          %v1382 = vpow.pop %v1381
          %v1383 = vmul.f32 %v1353, 1.442695
          %v1384 = vpow.pop %v1383
          %v1385 = vmul.f32 %v1354, 1.442695
          %v1386 = vpow.pop %v1385
          %v1387 = vmul.f32 %v1355, 1.442695
          %v1388 = vpow.pop %v1387
          %v1389 = vmul.f32 %v1356, 1.442695
          %v1390 = vpow.pop %v1389
          %v1391 = vmul.f32 %v1357, 1.442695
          %v1392 = vpow.pop %v1391
          %v1393 = vmul.f32 %v1358, 1.442695
          %v1394 = vpow.pop %v1393
          %v1395 = vsel %vm1299, %v1360, 0.0
          %v1396 = vsel %vm1299, %v1362, 0.0
          %v1397 = vadd.f32 %v1395, %v1396
          %v1398 = vsel %vm1299, %v1364, 0.0
          %v1399 = vadd.f32 %v1397, %v1398
          %v1400 = vsel %vm1299, %v1366, 0.0
          %v1401 = vadd.f32 %v1399, %v1400
          %v1402 = vsel %vm1299, %v1368, 0.0
          %v1403 = vadd.f32 %v1401, %v1402
          %v1404 = vsel %vm1299, %v1370, 0.0
          %v1405 = vadd.f32 %v1403, %v1404
          %v1406 = vsel %vm1299, %v1372, 0.0
          %v1407 = vadd.f32 %v1405, %v1406
          %v1408 = vsel %vm1299, %v1374, 0.0
          %v1409 = vadd.f32 %v1407, %v1408
          %v1410 = vsel %vm1299, %v1376, 0.0
          %v1411 = vadd.f32 %v1409, %v1410
          %v1412 = vsel %vm1299, %v1378, 0.0
          %v1413 = vadd.f32 %v1411, %v1412
          %v1414 = vsel %vm1299, %v1380, 0.0
          %v1415 = vadd.f32 %v1413, %v1414
          %v1416 = vsel %vm1299, %v1382, 0.0
          %v1417 = vadd.f32 %v1415, %v1416
          %v1418 = vsel %vm1299, %v1384, 0.0
          %v1419 = vadd.f32 %v1417, %v1418
          %v1420 = vsel %vm1299, %v1386, 0.0
          %v1421 = vadd.f32 %v1419, %v1420
          %v1422 = vsel %vm1299, %v1388, 0.0
          %v1423 = vadd.f32 %v1421, %v1422
          %v1424 = vsel %vm1299, %v1390, 0.0
          %v1425 = vadd.f32 %v1423, %v1424
          %v1426 = vsel %vm1299, %v1392, 0.0
          %v1427 = vadd.f32 %v1425, %v1426
          %v1428 = vsel %vm1299, %v1394, 0.0
          %v1429 = vadd.f32 %v1427, %v1428
          %v1430 = vrot.slane %v1429, 4
          %v1431 = vadd.f32 %v1429, %v1430
          %v1432 = vrot.slane %v1431, 2
          %v1433 = vadd.f32 %v1431, %v1432
          %v1434 = vrot.slane %v1433, 1
          %v1435 = vadd.f32 %v1433, %v1434
          %v1436 = vrcp.pop %v1435
          %v1437 = vmul.f32 %v1360, %v1436
          %v1438 = vmul.f32 %v1362, %v1436
          %v1439 = vmul.f32 %v1364, %v1436
          %v1440 = vmul.f32 %v1366, %v1436
          %v1441 = vmul.f32 %v1368, %v1436
          %v1442 = vmul.f32 %v1370, %v1436
          %v1443 = vmul.f32 %v1372, %v1436
          %v1444 = vmul.f32 %v1374, %v1436
          %v1445 = vmul.f32 %v1376, %v1436
          %v1446 = vmul.f32 %v1378, %v1436
          %v1447 = vmul.f32 %v1380, %v1436
          %v1448 = vmul.f32 %v1382, %v1436
          %v1449 = vmul.f32 %v1384, %v1436
          %v1450 = vmul.f32 %v1386, %v1436
          %v1451 = vmul.f32 %v1388, %v1436
          %v1452 = vmul.f32 %v1390, %v1436
          %v1453 = vmul.f32 %v1392, %v1436
          %v1454 = vmul.f32 %v1394, %v1436
          %v1455 = vsel %vm1299, %v1229, -inf
          %v1456 = vsel %vm1299, %v1232, -inf
          %v1457 = vsel %vm1299, %v1237, -inf
          %v1458 = vsel %vm1299, %v1240, -inf
          %v1459 = vsel %vm1299, %v1245, -inf
          %v1460 = vmax.f32 %v1455, %v1459
          %v1461 = vsel %vm1299, %v1248, -inf
          %v1462 = vmax.f32 %v1456, %v1461
          %v1463 = vsel %vm1299, %v1253, -inf
          %v1464 = vmax.f32 %v1457, %v1463
          %v1465 = vsel %vm1299, %v1256, -inf
          %v1466 = vmax.f32 %v1458, %v1465
          %v1467 = vsel %vm1299, %v1261, -inf
          %v1468 = vmax.f32 %v1460, %v1467
          %v1469 = vsel %vm1299, %v1264, -inf
          %v1470 = vmax.f32 %v1462, %v1469
          %v1471 = vsel %vm1299, %v1269, -inf
          %v1472 = vmax.f32 %v1464, %v1471
          %v1473 = vsel %vm1299, %v1272, -inf
          %v1474 = vmax.f32 %v1466, %v1473
          %v1475 = vsel %vm1299, %v1277, -inf
          %v1476 = vmax.f32 %v1468, %v1475
          %v1477 = vsel %vm1299, %v1280, -inf
          %v1478 = vmax.f32 %v1470, %v1477
          %v1479 = vsel %vm1299, %v1285, -inf
          %v1480 = vmax.f32 %v1472, %v1479
          %v1481 = vsel %vm1299, %v1288, -inf
          %v1482 = vmax.f32 %v1474, %v1481
          %v1483 = vsel %vm1299, %v1293, -inf
          %v1484 = vmax.f32 %v1476, %v1483
          %v1485 = vsel %vm1299, %v1296, -inf
          %v1486 = vmax.f32 %v1478, %v1485
          %v1487 = vmax.f32 %v1484, %v1486
          %v1488 = vmax.f32 %v1480, %v1482
          %v1489 = vmax.f32 %v1487, %v1488
          %v1490 = vrot.slane %v1489, 4
          %v1491 = vmax.f32 %v1489, %v1490
          %v1492 = vrot.slane %v1491, 2
          %v1493 = vmax.f32 %v1491, %v1492
          %v1494 = vrot.slane %v1493, 1
          %v1495 = vmax.f32 %v1493, %v1494
          %v1496 = vsub.f32 %v1229, %v1495
          %v1497 = vsub.f32 %v1232, %v1495
          %v1498 = vsub.f32 %v1237, %v1495
          %v1499 = vsub.f32 %v1240, %v1495
          %v1500 = vsub.f32 %v1245, %v1495
          %v1501 = vsub.f32 %v1248, %v1495
          %v1502 = vsub.f32 %v1253, %v1495
          %v1503 = vsub.f32 %v1256, %v1495
          %v1504 = vsub.f32 %v1261, %v1495
          %v1505 = vsub.f32 %v1264, %v1495
          %v1506 = vsub.f32 %v1269, %v1495
          %v1507 = vsub.f32 %v1272, %v1495
          %v1508 = vsub.f32 %v1277, %v1495
          %v1509 = vsub.f32 %v1280, %v1495
          %v1510 = vsub.f32 %v1285, %v1495
          %v1511 = vsub.f32 %v1288, %v1495
          %v1512 = vsub.f32 %v1293, %v1495
          %v1513 = vsub.f32 %v1296, %v1495
          %v1514 = vmul.f32 %v1496, 1.442695
          %v1515 = vpow.pop %v1514
          %v1516 = vmul.f32 %v1497, 1.442695
          %v1517 = vpow.pop %v1516
          %v1518 = vmul.f32 %v1498, 1.442695
          %v1519 = vpow.pop %v1518
          %v1520 = vmul.f32 %v1499, 1.442695
          %v1521 = vpow.pop %v1520
          %v1522 = vmul.f32 %v1500, 1.442695
          %v1523 = vpow.pop %v1522
          %v1524 = vmul.f32 %v1501, 1.442695
          %v1525 = vpow.pop %v1524
          %v1526 = vmul.f32 %v1502, 1.442695
          %v1527 = vpow.pop %v1526
          %v1528 = vmul.f32 %v1503, 1.442695
          %v1529 = vpow.pop %v1528
          %v1530 = vmul.f32 %v1504, 1.442695
          %v1531 = vpow.pop %v1530
          %v1532 = vmul.f32 %v1505, 1.442695
          %v1533 = vpow.pop %v1532
          %v1534 = vmul.f32 %v1506, 1.442695
          %v1535 = vpow.pop %v1534
          %v1536 = vmul.f32 %v1507, 1.442695
          %v1537 = vpow.pop %v1536
          %v1538 = vmul.f32 %v1508, 1.442695
          %v1539 = vpow.pop %v1538
          %v1540 = vmul.f32 %v1509, 1.442695
          %v1541 = vpow.pop %v1540
          %v1542 = vmul.f32 %v1510, 1.442695
          %v1543 = vpow.pop %v1542
          %v1544 = vmul.f32 %v1511, 1.442695
          %v1545 = vpow.pop %v1544
          %v1546 = vmul.f32 %v1512, 1.442695
          %v1547 = vpow.pop %v1546
          %v1548 = vmul.f32 %v1513, 1.442695
          %v1549 = vpow.pop %v1548
          %v1550 = vsel %vm1299, %v1515, 0.0
          %v1551 = vsel %vm1299, %v1517, 0.0
          %v1552 = vadd.f32 %v1550, %v1551
          %v1553 = vsel %vm1299, %v1519, 0.0
          %v1554 = vadd.f32 %v1552, %v1553
          %v1555 = vsel %vm1299, %v1521, 0.0
          %v1556 = vadd.f32 %v1554, %v1555
          %v1557 = vsel %vm1299, %v1523, 0.0
          %v1558 = vadd.f32 %v1556, %v1557
          %v1559 = vsel %vm1299, %v1525, 0.0
          %v1560 = vadd.f32 %v1558, %v1559
          %v1561 = vsel %vm1299, %v1527, 0.0
          %v1562 = vadd.f32 %v1560, %v1561
          %v1563 = vsel %vm1299, %v1529, 0.0
          %v1564 = vadd.f32 %v1562, %v1563
          %v1565 = vsel %vm1299, %v1531, 0.0
          %v1566 = vadd.f32 %v1564, %v1565
          %v1567 = vsel %vm1299, %v1533, 0.0
          %v1568 = vadd.f32 %v1566, %v1567
          %v1569 = vsel %vm1299, %v1535, 0.0
          %v1570 = vadd.f32 %v1568, %v1569
          %v1571 = vsel %vm1299, %v1537, 0.0
          %v1572 = vadd.f32 %v1570, %v1571
          %v1573 = vsel %vm1299, %v1539, 0.0
          %v1574 = vadd.f32 %v1572, %v1573
          %v1575 = vsel %vm1299, %v1541, 0.0
          %v1576 = vadd.f32 %v1574, %v1575
          %v1577 = vsel %vm1299, %v1543, 0.0
          %v1578 = vadd.f32 %v1576, %v1577
          %v1579 = vsel %vm1299, %v1545, 0.0
          %v1580 = vadd.f32 %v1578, %v1579
          %v1581 = vsel %vm1299, %v1547, 0.0
          %v1582 = vadd.f32 %v1580, %v1581
          %v1583 = vsel %vm1299, %v1549, 0.0
          %v1584 = vadd.f32 %v1582, %v1583
          %v1585 = vrot.slane %v1584, 4
          %v1586 = vadd.f32 %v1584, %v1585
          %v1587 = vrot.slane %v1586, 2
          %v1588 = vadd.f32 %v1586, %v1587
          %v1589 = vrot.slane %v1588, 1
          %v1590 = vadd.f32 %v1588, %v1589
          %v1591 = vrcp.pop %v1590
          %v1592 = vmul.f32 %v1515, %v1591
          %v1593 = vmul.f32 %v1517, %v1591
          %v1594 = vmul.f32 %v1519, %v1591
          %v1595 = vmul.f32 %v1521, %v1591
          %v1596 = vmul.f32 %v1523, %v1591
          %v1597 = vmul.f32 %v1525, %v1591
          %v1598 = vmul.f32 %v1527, %v1591
          %v1599 = vmul.f32 %v1529, %v1591
          %v1600 = vmul.f32 %v1531, %v1591
          %v1601 = vmul.f32 %v1533, %v1591
          %v1602 = vmul.f32 %v1535, %v1591
          %v1603 = vmul.f32 %v1537, %v1591
          %v1604 = vmul.f32 %v1539, %v1591
          %v1605 = vmul.f32 %v1541, %v1591
          %v1606 = vmul.f32 %v1543, %v1591
          %v1607 = vmul.f32 %v1545, %v1591
          %v1608 = vmul.f32 %v1547, %v1591
          %v1609 = vmul.f32 %v1549, %v1591
          %v1610 = vpack.c.bf16 %v1438, %v1437
          %v1611 = vpack.c.bf16 %v1440, %v1439
          %v1612 = vpack.c.bf16 %v1442, %v1441
          %v1613 = vpack.c.bf16 %v1444, %v1443
          %v1614 = vpack.c.bf16 %v1446, %v1445
          %v1615 = vpack.c.bf16 %v1448, %v1447
          %v1616 = vpack.c.bf16 %v1450, %v1449
          %v1617 = vpack.c.bf16 %v1452, %v1451
          %v1618 = vpack.c.bf16 %v1454, %v1453
          %v1619 = vpack.c.bf16 %v1593, %v1592
          %v1620 = vpack.c.bf16 %v1595, %v1594
          %v1621 = vpack.c.bf16 %v1597, %v1596
          %v1622 = vpack.c.bf16 %v1599, %v1598
          %v1623 = vpack.c.bf16 %v1601, %v1600
          %v1624 = vpack.c.bf16 %v1603, %v1602
          %v1625 = vpack.c.bf16 %v1605, %v1604
          %v1626 = vpack.c.bf16 %v1607, %v1606
          %v1627 = vpack.c.bf16 %v1609, %v1608
          %v1628 = vld [vmem:[%s7] sm:$0x3]
          %v1630 = vsel %vm1299, %v1610, 0
          %v1633 = vsel %vm1299, %v1611, 0
          %v1636 = vsel %vm1299, %v1612, 0
          %v1639 = vsel %vm1299, %v1613, 0
          %v1642 = vsel %vm1299, %v1614, 0
          %v1645 = vsel %vm1299, %v1615, 0
          %v1648 = vsel %vm1299, %v1616, 0
          %v1651 = vsel %vm1299, %v1617, 0
          %v1654 = vsel %vm1299, %v1618, 0
          %v1657 = vsel %vm1299, %v1619, 0
          %v1660 = vsel %vm1299, %v1620, 0
          %v1663 = vsel %vm1299, %v1621, 0
          %v1666 = vsel %vm1299, %v1622, 0
          %v1669 = vsel %vm1299, %v1623, 0
          %v1672 = vsel %vm1299, %v1624, 0
          %v1675 = vsel %vm1299, %v1625, 0
          %v1678 = vsel %vm1299, %v1626, 0
          %v1681 = vsel %vm1299, %v1627, 0
          %v1684 = vsel %vm816, %v1628, 0
          %1686 = vmatprep.subr.bf16.mxu0 0
          %1687 = vmatpush1.bf16.msra.mxu0 0
          %1688 = vmatprep.subr.bf16.mxu0 0
          %1689 = vmatpush1.bf16.msra.mxu0 0
          %1690 = vmatprep.subr.bf16.mxu0 0
          %1691 = vmatpush1.bf16.msra.mxu0 0
          %1692 = vmatprep.subr.bf16.mxu0 0
          %1693 = vmatpush1.bf16.msra.mxu0 0
          %1694 = vmatprep.subr.bf16.mxu0 0
          %1695 = vmatpush1.bf16.msra.mxu0 0
          %1696 = vmatprep.subr.bf16.mxu0 0
          %1697 = vmatpush1.bf16.msra.mxu0 0
          %1698 = vmatprep.subr.bf16.mxu0 0
          %1699 = vmatpush1.bf16.msra.mxu0 0
          %1700 = vmatprep.subr.bf16.mxu0 0
          %1701 = vmatpush1.bf16.msra.mxu0 %v1684
          %1702 = vmatprep.subr.bf16.mxu0 0
          %1703 = vmatpush2.bf16.msra.mxu0 0
          %1704 = vmatprep.subr.bf16.mxu0 0
          %1705 = vmatpush2.bf16.msra.mxu0 0
          %1706 = vmatprep.subr.bf16.mxu0 0
          %1707 = vmatpush2.bf16.msra.mxu0 0
          %1708 = vmatprep.subr.bf16.mxu0 0
          %1709 = vmatpush2.bf16.msra.mxu0 0
          %1710 = vmatprep.subr.bf16.mxu0 0
          %1711 = vmatpush2.bf16.msra.mxu0 0
          %1712 = vmatprep.subr.bf16.mxu0 0
          %1713 = vmatpush2.bf16.msra.mxu0 0
          %1714 = vmatprep.subr.bf16.mxu0 0
          %1715 = vmatpush2.bf16.msra.mxu0 0
          %1716 = vmatprep.subr.bf16.mxu0 0
          %1717 = vmatpush2.bf16.msra.mxu0 0
          %1718 = vmatprep.mubr.bf16.mxu0 0
          %1719 = vmatmul.mubr.bf16.gmra.mxu0 %v1630
          %v1720 = vpop.f32.mrf.mxu0
          %v1721 = vadd.f32 0.0, %v1720
          %v1722 = vpop.f32.mrf.mxu0
          %v1723 = vpop.f32.mrf.mxu0
          %v1724 = vadd.f32 0.0, %v1723
          %v1725 = vpop.f32.mrf.mxu0
          %1726 = vmatprep.mubr.bf16.mxu0 0
          %1727 = vmatmul.mubr.bf16.gmra.mxu0 %v1633
          %v1728 = vpop.f32.mrf.mxu0
          %v1729 = vadd.f32 0.0, %v1728
          %v1730 = vpop.f32.mrf.mxu0
          %v1731 = vpop.f32.mrf.mxu0
          %v1732 = vadd.f32 0.0, %v1731
          %v1733 = vpop.f32.mrf.mxu0
          %1734 = vmatprep.mubr.bf16.mxu0 0
          %1735 = vmatmul.mubr.bf16.gmra.mxu0 %v1636
          %v1736 = vpop.f32.mrf.mxu0
          %v1737 = vadd.f32 0.0, %v1736
          %v1738 = vpop.f32.mrf.mxu0
          %v1739 = vpop.f32.mrf.mxu0
          %v1740 = vadd.f32 0.0, %v1739
          %v1741 = vpop.f32.mrf.mxu0
          %1742 = vmatprep.mubr.bf16.mxu0 0
          %1743 = vmatmul.mubr.bf16.gmra.mxu0 %v1639
          %v1744 = vpop.f32.mrf.mxu0
          %v1745 = vadd.f32 0.0, %v1744
          %v1746 = vpop.f32.mrf.mxu0
          %v1747 = vpop.f32.mrf.mxu0
          %v1748 = vadd.f32 0.0, %v1747
          %v1749 = vpop.f32.mrf.mxu0
          %1750 = vmatprep.mubr.bf16.mxu0 0
          %1751 = vmatmul.mubr.bf16.gmra.mxu0 %v1642
          %v1752 = vpop.f32.mrf.mxu0
          %v1753 = vadd.f32 0.0, %v1752
          %v1754 = vpop.f32.mrf.mxu0
          %v1755 = vpop.f32.mrf.mxu0
          %v1756 = vadd.f32 0.0, %v1755
          %v1757 = vpop.f32.mrf.mxu0
          %1758 = vmatprep.mubr.bf16.mxu0 0
          %1759 = vmatmul.mubr.bf16.gmra.mxu0 %v1645
          %v1760 = vpop.f32.mrf.mxu0
          %v1761 = vadd.f32 0.0, %v1760
          %v1762 = vpop.f32.mrf.mxu0
          %v1763 = vpop.f32.mrf.mxu0
          %v1764 = vadd.f32 0.0, %v1763
          %v1765 = vpop.f32.mrf.mxu0
          %1766 = vmatprep.mubr.bf16.mxu0 0
          %1767 = vmatmul.mubr.bf16.gmra.mxu0 %v1648
          %v1768 = vpop.f32.mrf.mxu0
          %v1769 = vadd.f32 0.0, %v1768
          %v1770 = vpop.f32.mrf.mxu0
          %v1771 = vpop.f32.mrf.mxu0
          %v1772 = vadd.f32 0.0, %v1771
          %v1773 = vpop.f32.mrf.mxu0
          %1774 = vmatprep.mubr.bf16.mxu0 0
          %1775 = vmatmul.mubr.bf16.gmra.mxu0 %v1651
          %v1776 = vpop.f32.mrf.mxu0
          %v1777 = vadd.f32 0.0, %v1776
          %v1778 = vpop.f32.mrf.mxu0
          %v1779 = vpop.f32.mrf.mxu0
          %v1780 = vadd.f32 0.0, %v1779
          %v1781 = vpop.f32.mrf.mxu0
          %1782 = vmatprep.mubr.bf16.mxu0 0
          %1783 = vmatmul.mubr.bf16.gmra.mxu0 %v1654
          %v1784 = vpop.f32.mrf.mxu0
          %v1785 = vadd.f32 0.0, %v1784
          %v1786 = vpop.f32.mrf.mxu0
          %v1787 = vpop.f32.mrf.mxu0
          %v1788 = vadd.f32 0.0, %v1787
          %v1789 = vpop.f32.mrf.mxu0
          %1790 = vmatprep.mubr.bf16.mxu0 0
          %1791 = vmatmul.mubr.bf16.gmra.mxu0 %v1657
          %v1792 = vpop.f32.mrf.mxu0
          %v1793 = vadd.f32 0.0, %v1792
          %v1794 = vpop.f32.mrf.mxu0
          %v1795 = vpop.f32.mrf.mxu0
          %v1796 = vadd.f32 0.0, %v1795
          %v1797 = vpop.f32.mrf.mxu0
          %1798 = vmatprep.mubr.bf16.mxu0 0
          %1799 = vmatmul.mubr.bf16.gmra.mxu0 %v1660
          %v1800 = vpop.f32.mrf.mxu0
          %v1801 = vadd.f32 0.0, %v1800
          %v1802 = vpop.f32.mrf.mxu0
          %v1803 = vpop.f32.mrf.mxu0
          %v1804 = vadd.f32 0.0, %v1803
          %v1805 = vpop.f32.mrf.mxu0
          %1806 = vmatprep.mubr.bf16.mxu0 0
          %1807 = vmatmul.mubr.bf16.gmra.mxu0 %v1663
          %v1808 = vpop.f32.mrf.mxu0
          %v1809 = vadd.f32 0.0, %v1808
          %v1810 = vpop.f32.mrf.mxu0
          %v1811 = vpop.f32.mrf.mxu0
          %v1812 = vadd.f32 0.0, %v1811
          %v1813 = vpop.f32.mrf.mxu0
          %1814 = vmatprep.mubr.bf16.mxu0 0
          %1815 = vmatmul.mubr.bf16.gmra.mxu0 %v1666
          %v1816 = vpop.f32.mrf.mxu0
          %v1817 = vadd.f32 0.0, %v1816
          %v1818 = vpop.f32.mrf.mxu0
          %v1819 = vpop.f32.mrf.mxu0
          %v1820 = vadd.f32 0.0, %v1819
          %v1821 = vpop.f32.mrf.mxu0
          %1822 = vmatprep.mubr.bf16.mxu0 0
          %1823 = vmatmul.mubr.bf16.gmra.mxu0 %v1669
          %v1824 = vpop.f32.mrf.mxu0
          %v1825 = vadd.f32 0.0, %v1824
          %v1826 = vpop.f32.mrf.mxu0
          %v1827 = vpop.f32.mrf.mxu0
          %v1828 = vadd.f32 0.0, %v1827
          %v1829 = vpop.f32.mrf.mxu0
          %1830 = vmatprep.mubr.bf16.mxu0 0
          %1831 = vmatmul.mubr.bf16.gmra.mxu0 %v1672
          %v1832 = vpop.f32.mrf.mxu0
          %v1833 = vadd.f32 0.0, %v1832
          %v1834 = vpop.f32.mrf.mxu0
          %v1835 = vpop.f32.mrf.mxu0
          %v1836 = vadd.f32 0.0, %v1835
          %v1837 = vpop.f32.mrf.mxu0
          %1838 = vmatprep.mubr.bf16.mxu0 0
          %1839 = vmatmul.mubr.bf16.gmra.mxu0 %v1675
          %v1840 = vpop.f32.mrf.mxu0
          %v1841 = vadd.f32 0.0, %v1840
          %v1842 = vpop.f32.mrf.mxu0
          %v1843 = vpop.f32.mrf.mxu0
          %v1844 = vadd.f32 0.0, %v1843
          %v1845 = vpop.f32.mrf.mxu0
          %1846 = vmatprep.mubr.bf16.mxu0 0
          %1847 = vmatmul.mubr.bf16.gmra.mxu0 %v1678
          %v1848 = vpop.f32.mrf.mxu0
          %v1849 = vadd.f32 0.0, %v1848
          %v1850 = vpop.f32.mrf.mxu0
          %v1851 = vpop.f32.mrf.mxu0
          %v1852 = vadd.f32 0.0, %v1851
          %v1853 = vpop.f32.mrf.mxu0
          %1854 = vmatprep.mubr.bf16.mxu0 0
          %1855 = vmatmul.mubr.bf16.gmra.mxu0 %v1681
          %v1856 = vpop.f32.mrf.mxu0
          %v1857 = vadd.f32 0.0, %v1856
          %v1858 = vpop.f32.mrf.mxu0
          %v1859 = vpop.f32.mrf.mxu0
          %v1860 = vadd.f32 0.0, %v1859
          %v1861 = vpop.f32.mrf.mxu0
          %1862 = vdwg.mxu0
          %v1863 = vld [vmem:[%s8] sm:$0xf]
          %v1864 = vld [vmem:[%s8 + $0x4] sm:$0xf]
          %v1865 = vld [vmem:[%s8 + $0x8] sm:$0x3]
          %v1869 = vunpack.c.l.b16 %v1863
          %v1870 = vunpack.c.l.b16 %v1864
          %v1871 = vunpack.c.l.b16 %v1865
          %v1872 = vpack.c.b16 %v1870, %v1869
          %v1873 = vpack.c.b16 %v1871, %v1871
          %v1876 = vsel %vm816, %v1873, 0
          %1878 = vmatprep.subr.bf16.mxu0 0
          %1879 = vmatpush1.bf16.msra.mxu0 0
          %1880 = vmatprep.subr.bf16.mxu0 0
          %1881 = vmatpush1.bf16.msra.mxu0 0
          %1882 = vmatprep.subr.bf16.mxu0 0
          %1883 = vmatpush1.bf16.msra.mxu0 0
          %1884 = vmatprep.subr.bf16.mxu0 0
          %1885 = vmatpush1.bf16.msra.mxu0 0
          %1886 = vmatprep.subr.bf16.mxu0 0
          %1887 = vmatpush1.bf16.msra.mxu0 0
          %1888 = vmatprep.subr.bf16.mxu0 0
          %1889 = vmatpush1.bf16.msra.mxu0 0
          %1890 = vmatprep.subr.bf16.mxu0 0
          %1891 = vmatpush1.bf16.msra.mxu0 %v1876
          %1892 = vmatprep.subr.bf16.mxu0 0
          %1893 = vmatpush1.bf16.msra.mxu0 %v1872
          %1894 = vmatprep.subr.bf16.mxu0 0
          %1895 = vmatpush2.bf16.msra.mxu0 0
          %1896 = vmatprep.subr.bf16.mxu0 0
          %1897 = vmatpush2.bf16.msra.mxu0 0
          %1898 = vmatprep.subr.bf16.mxu0 0
          %1899 = vmatpush2.bf16.msra.mxu0 0
          %1900 = vmatprep.subr.bf16.mxu0 0
          %1901 = vmatpush2.bf16.msra.mxu0 0
          %1902 = vmatprep.subr.bf16.mxu0 0
          %1903 = vmatpush2.bf16.msra.mxu0 0
          %1904 = vmatprep.subr.bf16.mxu0 0
          %1905 = vmatpush2.bf16.msra.mxu0 0
          %1906 = vmatprep.subr.bf16.mxu0 0
          %1907 = vmatpush2.bf16.msra.mxu0 0
          %1908 = vmatprep.subr.bf16.mxu0 0
          %1909 = vmatpush2.bf16.msra.mxu0 0
          %1910 = vmatprep.mubr.bf16.mxu0 0
          %1911 = vmatmul.mubr.bf16.gmra.mxu0 %v763
          %v1912 = vpop.f32.mrf.mxu0
          %v1913 = vadd.f32 0.0, %v1912
          %v1914 = vpop.f32.mrf.mxu0
          %v1915 = vpop.f32.mrf.mxu0
          %v1916 = vadd.f32 0.0, %v1915
          %v1917 = vpop.f32.mrf.mxu0
          %1918 = vmatprep.mubr.bf16.mxu0 0
          %1919 = vmatmul.mubr.bf16.gmra.mxu0 %v766
          %v1920 = vpop.f32.mrf.mxu0
          %v1921 = vadd.f32 0.0, %v1920
          %v1922 = vpop.f32.mrf.mxu0
          %v1923 = vpop.f32.mrf.mxu0
          %v1924 = vadd.f32 0.0, %v1923
          %v1925 = vpop.f32.mrf.mxu0
          %1926 = vmatprep.mubr.bf16.mxu0 0
          %1927 = vmatmul.mubr.bf16.gmra.mxu0 %v769
          %v1928 = vpop.f32.mrf.mxu0
          %v1929 = vadd.f32 0.0, %v1928
          %v1930 = vpop.f32.mrf.mxu0
          %v1931 = vpop.f32.mrf.mxu0
          %v1932 = vadd.f32 0.0, %v1931
          %v1933 = vpop.f32.mrf.mxu0
          %1934 = vmatprep.mubr.bf16.mxu0 0
          %1935 = vmatmul.mubr.bf16.gmra.mxu0 %v772
          %v1936 = vpop.f32.mrf.mxu0
          %v1937 = vadd.f32 0.0, %v1936
          %v1938 = vpop.f32.mrf.mxu0
          %v1939 = vpop.f32.mrf.mxu0
          %v1940 = vadd.f32 0.0, %v1939
          %v1941 = vpop.f32.mrf.mxu0
          %1942 = vmatprep.mubr.bf16.mxu0 0
          %1943 = vmatmul.mubr.bf16.gmra.mxu0 %v775
          %v1944 = vpop.f32.mrf.mxu0
          %v1945 = vadd.f32 0.0, %v1944
          %v1946 = vpop.f32.mrf.mxu0
          %v1947 = vpop.f32.mrf.mxu0
          %v1948 = vadd.f32 0.0, %v1947
          %v1949 = vpop.f32.mrf.mxu0
          %1950 = vmatprep.mubr.bf16.mxu0 0
          %1951 = vmatmul.mubr.bf16.gmra.mxu0 %v778
          %v1952 = vpop.f32.mrf.mxu0
          %v1953 = vadd.f32 0.0, %v1952
          %v1954 = vpop.f32.mrf.mxu0
          %v1955 = vpop.f32.mrf.mxu0
          %v1956 = vadd.f32 0.0, %v1955
          %v1957 = vpop.f32.mrf.mxu0
          %1958 = vmatprep.mubr.bf16.mxu0 0
          %1959 = vmatmul.mubr.bf16.gmra.mxu0 %v781
          %v1960 = vpop.f32.mrf.mxu0
          %v1961 = vadd.f32 0.0, %v1960
          %v1962 = vpop.f32.mrf.mxu0
          %v1963 = vpop.f32.mrf.mxu0
          %v1964 = vadd.f32 0.0, %v1963
          %v1965 = vpop.f32.mrf.mxu0
          %1966 = vmatprep.mubr.bf16.mxu0 0
          %1967 = vmatmul.mubr.bf16.gmra.mxu0 %v784
          %v1968 = vpop.f32.mrf.mxu0
          %v1969 = vadd.f32 0.0, %v1968
          %v1970 = vpop.f32.mrf.mxu0
          %v1971 = vpop.f32.mrf.mxu0
          %v1972 = vadd.f32 0.0, %v1971
          %v1973 = vpop.f32.mrf.mxu0
          %1974 = vmatprep.mubr.bf16.mxu0 0
          %1975 = vmatmul.mubr.bf16.gmra.mxu0 %v787
          %v1976 = vpop.f32.mrf.mxu0
          %v1977 = vadd.f32 0.0, %v1976
          %v1978 = vpop.f32.mrf.mxu0
          %v1979 = vpop.f32.mrf.mxu0
          %v1980 = vadd.f32 0.0, %v1979
          %v1981 = vpop.f32.mrf.mxu0
          %1982 = vmatprep.mubr.bf16.mxu0 0
          %1983 = vmatmul.mubr.bf16.gmra.mxu0 %v790
          %v1984 = vpop.f32.mrf.mxu0
          %v1985 = vadd.f32 0.0, %v1984
          %v1986 = vpop.f32.mrf.mxu0
          %v1987 = vpop.f32.mrf.mxu0
          %v1988 = vadd.f32 0.0, %v1987
          %v1989 = vpop.f32.mrf.mxu0
          %1990 = vmatprep.mubr.bf16.mxu0 0
          %1991 = vmatmul.mubr.bf16.gmra.mxu0 %v793
          %v1992 = vpop.f32.mrf.mxu0
          %v1993 = vadd.f32 0.0, %v1992
          %v1994 = vpop.f32.mrf.mxu0
          %v1995 = vpop.f32.mrf.mxu0
          %v1996 = vadd.f32 0.0, %v1995
          %v1997 = vpop.f32.mrf.mxu0
          %1998 = vmatprep.mubr.bf16.mxu0 0
          %1999 = vmatmul.mubr.bf16.gmra.mxu0 %v796
          %v2000 = vpop.f32.mrf.mxu0
          %v2001 = vadd.f32 0.0, %v2000
          %v2002 = vpop.f32.mrf.mxu0
          %v2003 = vpop.f32.mrf.mxu0
          %v2004 = vadd.f32 0.0, %v2003
          %v2005 = vpop.f32.mrf.mxu0
          %2006 = vmatprep.mubr.bf16.mxu0 0
          %2007 = vmatmul.mubr.bf16.gmra.mxu0 %v799
          %v2008 = vpop.f32.mrf.mxu0
          %v2009 = vadd.f32 0.0, %v2008
          %v2010 = vpop.f32.mrf.mxu0
          %v2011 = vpop.f32.mrf.mxu0
          %v2012 = vadd.f32 0.0, %v2011
          %v2013 = vpop.f32.mrf.mxu0
          %2014 = vmatprep.mubr.bf16.mxu0 0
          %2015 = vmatmul.mubr.bf16.gmra.mxu0 %v802
          %v2016 = vpop.f32.mrf.mxu0
          %v2017 = vadd.f32 0.0, %v2016
          %v2018 = vpop.f32.mrf.mxu0
          %v2019 = vpop.f32.mrf.mxu0
          %v2020 = vadd.f32 0.0, %v2019
          %v2021 = vpop.f32.mrf.mxu0
          %2022 = vmatprep.mubr.bf16.mxu0 0
          %2023 = vmatmul.mubr.bf16.gmra.mxu0 %v805
          %v2024 = vpop.f32.mrf.mxu0
          %v2025 = vadd.f32 0.0, %v2024
          %v2026 = vpop.f32.mrf.mxu0
          %v2027 = vpop.f32.mrf.mxu0
          %v2028 = vadd.f32 0.0, %v2027
          %v2029 = vpop.f32.mrf.mxu0
          %2030 = vmatprep.mubr.bf16.mxu0 0
          %2031 = vmatmul.mubr.bf16.gmra.mxu0 %v808
          %v2032 = vpop.f32.mrf.mxu0
          %v2033 = vadd.f32 0.0, %v2032
          %v2034 = vpop.f32.mrf.mxu0
          %v2035 = vpop.f32.mrf.mxu0
          %v2036 = vadd.f32 0.0, %v2035
          %v2037 = vpop.f32.mrf.mxu0
          %2038 = vmatprep.mubr.bf16.mxu0 0
          %2039 = vmatmul.mubr.bf16.gmra.mxu0 %v811
          %v2040 = vpop.f32.mrf.mxu0
          %v2041 = vadd.f32 0.0, %v2040
          %v2042 = vpop.f32.mrf.mxu0
          %v2043 = vpop.f32.mrf.mxu0
          %v2044 = vadd.f32 0.0, %v2043
          %v2045 = vpop.f32.mrf.mxu0
          %2046 = vmatprep.mubr.bf16.mxu0 0
          %2047 = vmatmul.mubr.bf16.gmra.mxu0 %v814
          %v2048 = vpop.f32.mrf.mxu0
          %v2049 = vadd.f32 0.0, %v2048
          %v2050 = vpop.f32.mrf.mxu0
          %v2051 = vpop.f32.mrf.mxu0
          %v2052 = vadd.f32 0.0, %v2051
          %v2053 = vpop.f32.mrf.mxu0
          %2054 = vdwg.mxu0
          %v2055 = vld [vmem:[%s9] sm:$0x7]
          %v2056 = vmul.f32 %v1721, %v1913
          %v2057 = vmul.f32 %v1724, %v1916
          %v2058 = vmul.f32 %v1729, %v1921
          %v2059 = vmul.f32 %v1732, %v1924
          %v2060 = vmul.f32 %v1737, %v1929
          %v2061 = vmul.f32 %v1740, %v1932
          %v2062 = vmul.f32 %v1745, %v1937
          %v2063 = vmul.f32 %v1748, %v1940
          %v2064 = vmul.f32 %v1753, %v1945
          %v2065 = vmul.f32 %v1756, %v1948
          %v2066 = vmul.f32 %v1761, %v1953
          %v2067 = vmul.f32 %v1764, %v1956
          %v2068 = vmul.f32 %v1769, %v1961
          %v2069 = vmul.f32 %v1772, %v1964
          %v2070 = vmul.f32 %v1777, %v1969
          %v2071 = vmul.f32 %v1780, %v1972
          %v2072 = vmul.f32 %v1785, %v1977
          %v2073 = vmul.f32 %v1788, %v1980
          %v2074 = vmul.f32 %v1793, %v1985
          %v2075 = vmul.f32 %v1796, %v1988
          %v2076 = vmul.f32 %v1801, %v1993
          %v2077 = vmul.f32 %v1804, %v1996
          %v2078 = vmul.f32 %v1809, %v2001
          %v2079 = vmul.f32 %v1812, %v2004
          %v2080 = vmul.f32 %v1817, %v2009
          %v2081 = vmul.f32 %v1820, %v2012
          %v2082 = vmul.f32 %v1825, %v2017
          %v2083 = vmul.f32 %v1828, %v2020
          %v2084 = vmul.f32 %v1833, %v2025
          %v2085 = vmul.f32 %v1836, %v2028
          %v2086 = vmul.f32 %v1841, %v2033
          %v2087 = vmul.f32 %v1844, %v2036
          %v2088 = vmul.f32 %v1849, %v2041
          %v2089 = vmul.f32 %v1852, %v2044
          %v2090 = vmul.f32 %v1857, %v2049
          %v2091 = vmul.f32 %v1860, %v2052
          %v2092 = vpack.c.bf16 %v2057, %v2056
          %v2093 = vpack.c.bf16 %v2059, %v2058
          %v2094 = vpack.c.bf16 %v2061, %v2060
          %v2095 = vpack.c.bf16 %v2063, %v2062
          %v2096 = vpack.c.bf16 %v2065, %v2064
          %v2097 = vpack.c.bf16 %v2067, %v2066
          %v2098 = vpack.c.bf16 %v2069, %v2068
          %v2099 = vpack.c.bf16 %v2071, %v2070
          %v2100 = vpack.c.bf16 %v2073, %v2072
          %v2101 = vpack.c.bf16 %v2075, %v2074
          %v2102 = vpack.c.bf16 %v2077, %v2076
          %v2103 = vpack.c.bf16 %v2079, %v2078
          %v2104 = vpack.c.bf16 %v2081, %v2080
          %v2105 = vpack.c.bf16 %v2083, %v2082
          %v2106 = vpack.c.bf16 %v2085, %v2084
          %v2107 = vpack.c.bf16 %v2087, %v2086
          %v2108 = vpack.c.bf16 %v2089, %v2088
          %v2109 = vpack.c.bf16 %v2091, %v2090
          %v2112 = vunpack.c.l.s4 1966171168
          %v2113 = vunpack.c.0.s8 %v2112
          %v2114 = vlaneseq
          %v2115 = vshrl.u32 %v2114, 7
          %v2116 = vsub.s32 %v2113, %v2115
          %v2117 = vrot.slane %v2055, %v2116
          %v2118 = vcombine.high %v2117, %v2117
          %v2120 = vunpack.c.l.s4 1966171168
          %v2121 = vunpack.c.0.s8 %v2120
          %v2122 = vlaneseq
          %v2123 = vshrl.u32 %v2122, 7
          %v2124 = vsub.s32 %v2121, %v2123
          %v2125 = vrot.slane %v2117, %v2124
          %v2127 = vunpack.c.l.s4 1966171168
          %v2128 = vunpack.c.0.s8 %v2127
          %v2129 = vlaneseq
          %v2130 = vshrl.u32 %v2129, 7
          %v2131 = vsub.s32 %v2128, %v2130
          %v2132 = vrot.slane %v2118, %v2131
          %v2133 = vcombine.high %v2125, %v2125
          %vm2136 = vcmask 261120
          %v2138 = vsel %vm2136, %v2133, 0
          %2140 = vmatprep.subr.bf16.mxu0 0
          %2141 = vmatpush1.bf16.msra.mxu0 %v2099
          %2142 = vmatprep.subr.bf16.mxu0 0
          %2143 = vmatpush1.bf16.msra.mxu0 %v2098
          %2144 = vmatprep.subr.bf16.mxu0 0
          %2145 = vmatpush1.bf16.msra.mxu0 %v2097
          %2146 = vmatprep.subr.bf16.mxu0 0
          %2147 = vmatpush1.bf16.msra.mxu0 %v2096
          %2148 = vmatprep.subr.bf16.mxu0 0
          %2149 = vmatpush1.bf16.msra.mxu0 %v2095
          %2150 = vmatprep.subr.bf16.mxu0 0
          %2151 = vmatpush1.bf16.msra.mxu0 %v2094
          %2152 = vmatprep.subr.bf16.mxu0 0
          %2153 = vmatpush1.bf16.msra.mxu0 %v2093
          %2154 = vmatprep.subr.bf16.mxu0 0
          %2155 = vmatpush1.bf16.msra.mxu0 %v2092
          %2156 = vmatprep.subr.bf16.mxu0 0
          %2157 = vmatpush2.bf16.msra.mxu0 %v2107
          %2158 = vmatprep.subr.bf16.mxu0 0
          %2159 = vmatpush2.bf16.msra.mxu0 %v2106
          %2160 = vmatprep.subr.bf16.mxu0 0
          %2161 = vmatpush2.bf16.msra.mxu0 %v2105
          %2162 = vmatprep.subr.bf16.mxu0 0
          %2163 = vmatpush2.bf16.msra.mxu0 %v2104
          %2164 = vmatprep.subr.bf16.mxu0 0
          %2165 = vmatpush2.bf16.msra.mxu0 %v2103
          %2166 = vmatprep.subr.bf16.mxu0 0
          %2167 = vmatpush2.bf16.msra.mxu0 %v2102
          %2168 = vmatprep.subr.bf16.mxu0 0
          %2169 = vmatpush2.bf16.msra.mxu0 %v2101
          %2170 = vmatprep.subr.bf16.mxu0 0
          %2171 = vmatpush2.bf16.msra.mxu0 %v2100
          %2172 = vmatprep.mubr.bf16.mxu0 %v2132
          %2173 = vmatmul.mubr.bf16.gmra.mxu0 %v2125
          %v2174 = vpop.f32.mrf.mxu0
          %v2175 = vadd.f32 0.0, %v2174
          %v2176 = vpop.f32.mrf.mxu0
          %v2177 = vpop.f32.mrf.mxu0
          %v2178 = vpop.f32.mrf.mxu0
          %2179 = vdwg.mxu0
          %2180 = vmatprep.subr.bf16.mxu0 0
          %2181 = vmatpush1.bf16.msra.mxu0 0
          %2182 = vmatprep.subr.bf16.mxu0 0
          %2183 = vmatpush1.bf16.msra.mxu0 0
          %2184 = vmatprep.subr.bf16.mxu0 0
          %2185 = vmatpush1.bf16.msra.mxu0 0
          %2186 = vmatprep.subr.bf16.mxu0 0
          %2187 = vmatpush1.bf16.msra.mxu0 0
          %2188 = vmatprep.subr.bf16.mxu0 0
          %2189 = vmatpush1.bf16.msra.mxu0 0
          %2190 = vmatprep.subr.bf16.mxu0 0
          %2191 = vmatpush1.bf16.msra.mxu0 0
          %2192 = vmatprep.subr.bf16.mxu0 0
          %2193 = vmatpush1.bf16.msra.mxu0 %v2109
          %2194 = vmatprep.subr.bf16.mxu0 0
          %2195 = vmatpush1.bf16.msra.mxu0 %v2108
          %2196 = vmatprep.subr.bf16.mxu0 0
          %2197 = vmatpush2.bf16.msra.mxu0 0
          %2198 = vmatprep.subr.bf16.mxu0 0
          %2199 = vmatpush2.bf16.msra.mxu0 0
          %2200 = vmatprep.subr.bf16.mxu0 0
          %2201 = vmatpush2.bf16.msra.mxu0 0
          %2202 = vmatprep.subr.bf16.mxu0 0
          %2203 = vmatpush2.bf16.msra.mxu0 0
          %2204 = vmatprep.subr.bf16.mxu0 0
          %2205 = vmatpush2.bf16.msra.mxu0 0
          %2206 = vmatprep.subr.bf16.mxu0 0
          %2207 = vmatpush2.bf16.msra.mxu0 0
          %2208 = vmatprep.subr.bf16.mxu0 0
          %2209 = vmatpush2.bf16.msra.mxu0 0
          %2210 = vmatprep.subr.bf16.mxu0 0
          %2211 = vmatpush2.bf16.msra.mxu0 0
          %2212 = vmatprep.mubr.bf16.mxu0 0
          %2213 = vmatmul.mubr.bf16.gmra.mxu0 %v2138
          %v2214 = vpop.f32.mrf.mxu0
          %v2215 = vadd.f32 %v2175, %v2214
          %v2216 = vpop.f32.mrf.mxu0
          %v2217 = vpop.f32.mrf.mxu0
          %v2218 = vpop.f32.mrf.mxu0
          %2219 = vdwg.mxu0
          %v2220 = vpack.c.bf16 %v2215, %v2215
          %v2221 = vld [vmem:[%s10] sm:$0xff]
          %v2222 = vld [vmem:[%s10 + $0x8] sm:$0xff]
          %v2223 = vld [vmem:[%s10 + $0x10] sm:$0xff]
          %v2224 = vld [vmem:[%s10 + $0x18] sm:$0xff]
          %v2225 = vld [vmem:[%s10 + $0x20] sm:$0xff]
          %v2226 = vld [vmem:[%s10 + $0x28] sm:$0xff]
          %v2227 = vld [vmem:[%s10 + $0x30] sm:$0xff]
          %v2228 = vld [vmem:[%s10 + $0x38] sm:$0xff]
          %v2229 = vld [vmem:[%s10 + $0x40] sm:$0xff]
          %v2230 = vld [vmem:[%s10 + $0x48] sm:$0xff]
          %v2231 = vld [vmem:[%s10 + $0x50] sm:$0xff]
          %v2232 = vld [vmem:[%s10 + $0x58] sm:$0xff]
          %v2233 = vld [vmem:[%s10 + $0x60] sm:$0xff]
          %v2234 = vld [vmem:[%s10 + $0x68] sm:$0xff]
          %v2235 = vld [vmem:[%s10 + $0x70] sm:$0xff]
          %v2236 = vld [vmem:[%s10 + $0x78] sm:$0xff]
          %v2237 = vld [vmem:[%s10 + $0x80] sm:$0xff]
          %v2238 = vld [vmem:[%s10 + $0x88] sm:$0xff]
          %v2239 = vld [vmem:[%s10 + $0x90] sm:$0xff]
          %v2240 = vld [vmem:[%s10 + $0x98] sm:$0xff]
          %v2241 = vld [vmem:[%s12] sm:$0xf]
          %v2242 = vld [vmem:[%s11] sm:$0xf]
          %v2244 = vlaneseq
          %v2245 = vshrl.u32 %v2244, 7
          %v2246 = vsub.s32 0, %v2245
          %v2247 = vrot.slane %v2242, %v2246
          %v2248 = vlaneseq
          %v2249 = vshrl.u32 %v2248, 7
          %v2250 = vsub.s32 1, %v2249
          %v2251 = vrot.slane %v2242, %v2250
          %v2252 = vlaneseq
          %v2253 = vshrl.u32 %v2252, 7
          %v2254 = vsub.s32 2, %v2253
          %v2255 = vrot.slane %v2242, %v2254
          %v2256 = vlaneseq
          %v2257 = vshrl.u32 %v2256, 7
          %v2258 = vsub.s32 3, %v2257
          %v2259 = vrot.slane %v2242, %v2258
          %v2284 = vunpack.c.l.b16 %v2221
          %v2285 = vunpack.c.h.b16 %v2221
          %v2286 = vunpack.c.l.b16 %v2222
          %v2287 = vunpack.c.h.b16 %v2222
          %v2288 = vunpack.c.l.b16 %v2223
          %v2289 = vunpack.c.h.b16 %v2223
          %v2290 = vunpack.c.l.b16 %v2224
          %v2291 = vunpack.c.h.b16 %v2224
          %v2292 = vunpack.c.l.b16 %v2225
          %v2293 = vunpack.c.h.b16 %v2225
          %v2294 = vunpack.c.l.b16 %v2226
          %v2295 = vunpack.c.h.b16 %v2226
          %v2296 = vunpack.c.l.b16 %v2227
          %v2297 = vunpack.c.h.b16 %v2227
          %v2298 = vunpack.c.l.b16 %v2228
          %v2299 = vunpack.c.h.b16 %v2228
          %v2300 = vunpack.c.l.b16 %v2229
          %v2301 = vunpack.c.h.b16 %v2229
          %v2302 = vunpack.c.l.b16 %v2230
          %v2303 = vunpack.c.h.b16 %v2230
          %v2304 = vunpack.c.l.b16 %v2231
          %v2305 = vunpack.c.h.b16 %v2231
          %v2306 = vunpack.c.l.b16 %v2232
          %v2307 = vunpack.c.h.b16 %v2232
          %v2308 = vunpack.c.l.b16 %v2233
          %v2309 = vunpack.c.h.b16 %v2233
          %v2310 = vunpack.c.l.b16 %v2234
          %v2311 = vunpack.c.h.b16 %v2234
          %v2312 = vunpack.c.l.b16 %v2235
          %v2313 = vunpack.c.h.b16 %v2235
          %v2314 = vunpack.c.l.b16 %v2236
          %v2315 = vunpack.c.h.b16 %v2236
          %v2316 = vunpack.c.l.b16 %v2237
          %v2317 = vunpack.c.h.b16 %v2237
          %v2318 = vunpack.c.l.b16 %v2238
          %v2319 = vunpack.c.h.b16 %v2238
          %v2320 = vunpack.c.l.b16 %v2239
          %v2321 = vunpack.c.h.b16 %v2239
          %v2322 = vunpack.c.l.b16 %v2240
          %v2323 = vunpack.c.h.b16 %v2240
          %v2324 = vpack.c.b16 %v2288, %v2284
          %v2325 = vpack.c.b16 %v2289, %v2285
          %v2326 = vpack.c.b16 %v2290, %v2286
          %v2327 = vpack.c.b16 %v2291, %v2287
          %v2328 = vpack.c.b16 %v2296, %v2292
          %v2329 = vpack.c.b16 %v2297, %v2293
          %v2330 = vpack.c.b16 %v2298, %v2294
          %v2331 = vpack.c.b16 %v2299, %v2295
          %v2332 = vpack.c.b16 %v2304, %v2300
          %v2333 = vpack.c.b16 %v2305, %v2301
          %v2334 = vpack.c.b16 %v2306, %v2302
          %v2335 = vpack.c.b16 %v2307, %v2303
          %v2336 = vpack.c.b16 %v2312, %v2308
          %v2337 = vpack.c.b16 %v2313, %v2309
          %v2338 = vpack.c.b16 %v2314, %v2310
          %v2339 = vpack.c.b16 %v2315, %v2311
          %v2340 = vpack.c.b16 %v2320, %v2316
          %v2341 = vpack.c.b16 %v2321, %v2317
          %v2342 = vpack.c.b16 %v2322, %v2318
          %v2343 = vpack.c.b16 %v2323, %v2319
          %vm2364 = vcmask 654336
          %v2366 = vsel %vm2364, %v2220, 0
          %2368 = vmatprep.subr.bf16.mxu0 0
          %2369 = vmatpush1.bf16.msra.mxu0 0
          %2370 = vmatprep.subr.bf16.mxu0 0
          %2371 = vmatpush1.bf16.msra.mxu0 0
          %2372 = vmatprep.subr.bf16.mxu0 0
          %2373 = vmatpush1.bf16.msra.mxu0 0
          %2374 = vmatprep.subr.bf16.mxu0 %v2341
          %2375 = vmatpush1.bf16.msra.mxu0 %v2340
          %2376 = vmatprep.subr.bf16.mxu0 %v2337
          %2377 = vmatpush1.bf16.msra.mxu0 %v2336
          %2378 = vmatprep.subr.bf16.mxu0 %v2333
          %2379 = vmatpush1.bf16.msra.mxu0 %v2332
          %2380 = vmatprep.subr.bf16.mxu0 %v2329
          %2381 = vmatpush1.bf16.msra.mxu0 %v2328
          %2382 = vmatprep.subr.bf16.mxu0 %v2325
          %2383 = vmatpush1.bf16.msra.mxu0 %v2324
          %2384 = vmatprep.subr.bf16.mxu0 0
          %2385 = vmatpush2.bf16.msra.mxu0 0
          %2386 = vmatprep.subr.bf16.mxu0 0
          %2387 = vmatpush2.bf16.msra.mxu0 0
          %2388 = vmatprep.subr.bf16.mxu0 0
          %2389 = vmatpush2.bf16.msra.mxu0 0
          %2390 = vmatprep.subr.bf16.mxu0 0
          %2391 = vmatpush2.bf16.msra.mxu0 0
          %2392 = vmatprep.subr.bf16.mxu0 0
          %2393 = vmatpush2.bf16.msra.mxu0 0
          %2394 = vmatprep.subr.bf16.mxu0 0
          %2395 = vmatpush2.bf16.msra.mxu0 0
          %2396 = vmatprep.subr.bf16.mxu0 0
          %2397 = vmatpush2.bf16.msra.mxu0 0
          %2398 = vmatprep.subr.bf16.mxu0 0
          %2399 = vmatpush2.bf16.msra.mxu0 0
          %2400 = vmatprep.mubr.bf16.mxu0 0
          %2401 = vmatmul.mubr.bf16.gmra.mxu0 %v2366
          %v2402 = vpop.f32.mrf.mxu0
          %v2403 = vadd.f32 %v2247, %v2402
          %v2404 = vpop.f32.mrf.mxu0
          %v2405 = vadd.f32 %v2251, %v2404
          %v2406 = vpop.f32.mrf.mxu0
          %v2407 = vpop.f32.mrf.mxu0
          %2408 = vdwg.mxu0
          %2409 = vmatprep.subr.bf16.mxu0 0
          %2410 = vmatpush1.bf16.msra.mxu0 0
          %2411 = vmatprep.subr.bf16.mxu0 0
          %2412 = vmatpush1.bf16.msra.mxu0 0
          %2413 = vmatprep.subr.bf16.mxu0 0
          %2414 = vmatpush1.bf16.msra.mxu0 0
          %2415 = vmatprep.subr.bf16.mxu0 %v2343
          %2416 = vmatpush1.bf16.msra.mxu0 %v2342
          %2417 = vmatprep.subr.bf16.mxu0 %v2339
          %2418 = vmatpush1.bf16.msra.mxu0 %v2338
          %2419 = vmatprep.subr.bf16.mxu0 %v2335
          %2420 = vmatpush1.bf16.msra.mxu0 %v2334
          %2421 = vmatprep.subr.bf16.mxu0 %v2331
          %2422 = vmatpush1.bf16.msra.mxu0 %v2330
          %2423 = vmatprep.subr.bf16.mxu0 %v2327
          %2424 = vmatpush1.bf16.msra.mxu0 %v2326
          %2425 = vmatprep.subr.bf16.mxu0 0
          %2426 = vmatpush2.bf16.msra.mxu0 0
          %2427 = vmatprep.subr.bf16.mxu0 0
          %2428 = vmatpush2.bf16.msra.mxu0 0
          %2429 = vmatprep.subr.bf16.mxu0 0
          %2430 = vmatpush2.bf16.msra.mxu0 0
          %2431 = vmatprep.subr.bf16.mxu0 0
          %2432 = vmatpush2.bf16.msra.mxu0 0
          %2433 = vmatprep.subr.bf16.mxu0 0
          %2434 = vmatpush2.bf16.msra.mxu0 0
          %2435 = vmatprep.subr.bf16.mxu0 0
          %2436 = vmatpush2.bf16.msra.mxu0 0
          %2437 = vmatprep.subr.bf16.mxu0 0
          %2438 = vmatpush2.bf16.msra.mxu0 0
          %2439 = vmatprep.subr.bf16.mxu0 0
          %2440 = vmatpush2.bf16.msra.mxu0 0
          %2441 = vmatprep.mubr.bf16.mxu0 0
          %2442 = vmatmul.mubr.bf16.gmra.mxu0 %v2366
          %v2443 = vpop.f32.mrf.mxu0
          %v2444 = vadd.f32 %v2255, %v2443
          %v2445 = vpop.f32.mrf.mxu0
          %v2446 = vadd.f32 %v2259, %v2445
          %v2447 = vpop.f32.mrf.mxu0
          %v2448 = vpop.f32.mrf.mxu0
          %2449 = vdwg.mxu0
          %v2451 = vlaneseq
          %v2452 = vshrl.u32 %v2451, 7
          %v2453 = vsub.s32 0, %v2452
          %v2454 = vrot.slane %v2241, %v2453
          %v2455 = vlaneseq
          %v2456 = vshrl.u32 %v2455, 7
          %v2457 = vsub.s32 1, %v2456
          %v2458 = vrot.slane %v2241, %v2457
          %v2459 = vlaneseq
          %v2460 = vshrl.u32 %v2459, 7
          %v2461 = vsub.s32 2, %v2460
          %v2462 = vrot.slane %v2241, %v2461
          %v2463 = vlaneseq
          %v2464 = vshrl.u32 %v2463, 7
          %v2465 = vsub.s32 3, %v2464
          %v2466 = vrot.slane %v2241, %v2465
          %v2471 = vadd.f32 %v2454, %v2403
          %v2472 = vadd.f32 %v2458, %v2405
          %v2473 = vadd.f32 %v2462, %v2444
          %v2474 = vadd.f32 %v2466, %v2446
          %v2479 = vcombine.low %v2471, %v2472
          %v2480 = vcombine.low %v2473, %v2474
          %v2482 = vunpack.c.l.s4 1983009808
          %v2483 = vunpack.c.0.s8 %v2482
          %v2484 = vlaneseq
          %v2485 = vshrl.u32 %v2484, 7
          %v2486 = vsub.s32 %v2483, %v2485
          %v2487 = vrot.slane %v2479, %v2486
          %v2489 = vunpack.c.l.s4 1983009808
          %v2490 = vunpack.c.0.s8 %v2489
          %v2491 = vlaneseq
          %v2492 = vshrl.u32 %v2491, 7
          %v2493 = vsub.s32 %v2490, %v2492
          %v2494 = vrot.slane %v2480, %v2493
          %v2495 = vcombine.low %v2487, %v2494
          %vm2497 = vcmask 1043458
          %vm2498 = vmor %vm2497, %vm816
          %vm2499 = vcmask 1045508
          %vm2500 = vmor %vm2499, %vm2498
          %vm2501 = vcmask 949254
          %vm2502 = vmor %vm2501, %vm2500
          %2503 = vst.msk [vmem:[#allocation2] sm:$0xff] %vm2502, %v2495
        $region100: #{a_call__.3} parent=95 // pred_fallthru
          _
        %v2504 = vld [vmem:[#allocation2] sm:$0xff]
        %v2505 = vld [vmem:[%s603] sm:$0x3f]
        %v2506 = vld [vmem:[%s609] sm:$0xff]
        %v2507 = vld [vmem:[%s609 + $0x8] sm:$0xff]
        %v2508 = vld [vmem:[%s609 + $0x10] sm:$0xff]
        %v2509 = vld [vmem:[%s609 + $0x18] sm:$0xff]
        %v2510 = vld [vmem:[%s609 + $0x20] sm:$0xff]
        %v2511 = vld [vmem:[%s609 + $0x28] sm:$0xff]
        %v2512 = vld [vmem:[%s609 + $0x30] sm:$0xff]
        %v2513 = vld [vmem:[%s609 + $0x38] sm:$0xff]
        %v2514 = vld [vmem:[%s609 + $0x40] sm:$0xff]
        %v2515 = vld [vmem:[%s609 + $0x48] sm:$0xff]
        %v2516 = vld [vmem:[%s609 + $0x50] sm:$0xff]
        %v2517 = vld [vmem:[%s609 + $0x58] sm:$0xff]
        %v2518 = vld [vmem:[%s609 + $0x60] sm:$0xff]
        %v2519 = vld [vmem:[%s609 + $0x68] sm:$0xff]
        %v2520 = vld [vmem:[%s609 + $0x70] sm:$0xff]
        %v2521 = vld [vmem:[%s609 + $0x78] sm:$0xff]
        %v2522 = vld [vmem:[%s609 + $0x80] sm:$0xff]
        %v2523 = vld [vmem:[%s609 + $0x88] sm:$0xff]
        %v2524 = vld [vmem:[%s609 + $0x90] sm:$0xff]
        %v2525 = vld [vmem:[%s609 + $0x98] sm:$0xff]
        %v2526 = vld [vmem:[%s609 + $0xa0] sm:$0xff]
        %v2527 = vld [vmem:[%s609 + $0xa8] sm:$0xff]
        %v2528 = vld [vmem:[%s609 + $0xb0] sm:$0xff]
        %v2529 = vld [vmem:[%s609 + $0xb8] sm:$0xff]
        %v2530 = vld [vmem:[%s609 + $0xc0] sm:$0xff]
        %v2531 = vld [vmem:[%s609 + $0xc8] sm:$0xff]
        %v2532 = vld [vmem:[%s609 + $0xd0] sm:$0xff]
        %v2533 = vld [vmem:[%s609 + $0xd8] sm:$0xff]
        %v2534 = vld [vmem:[%s609 + $0xe0] sm:$0xff]
        %v2535 = vld [vmem:[%s609 + $0xe8] sm:$0xff]
        %v2536 = vld [vmem:[%s609 + $0xf0] sm:$0xff]
        %v2537 = vld [vmem:[%s609 + $0xf8] sm:$0xff]
        %v2538 = vld [vmem:[%s609 + $0x100] sm:$0xff]
        %v2539 = vld [vmem:[%s609 + $0x108] sm:$0xff]
        %v2540 = vld [vmem:[%s609 + $0x110] sm:$0xff]
        %v2541 = vld [vmem:[%s609 + $0x118] sm:$0xff]
        %v2542 = vld [vmem:[%s609 + $0x120] sm:$0xff]
        %v2543 = vld [vmem:[%s609 + $0x128] sm:$0xff]
        %v2544 = vld [vmem:[%s609 + $0x130] sm:$0xff]
        %v2545 = vld [vmem:[%s609 + $0x138] sm:$0xff]
        %v2546 = vld [vmem:[%s609 + $0x140] sm:$0xff]
        %v2547 = vld [vmem:[%s609 + $0x148] sm:$0xff]
        %v2548 = vld [vmem:[%s609 + $0x150] sm:$0xff]
        %v2549 = vld [vmem:[%s609 + $0x158] sm:$0xff]
        %v2550 = vld [vmem:[%s609 + $0x160] sm:$0xff]
        %v2551 = vld [vmem:[%s609 + $0x168] sm:$0xff]
        %v2552 = vld [vmem:[%s609 + $0x170] sm:$0xff]
        %v2553 = vld [vmem:[%s609 + $0x178] sm:$0xff]
        %v2554 = vld [vmem:[%s609 + $0x180] sm:$0xff]
        %v2555 = vld [vmem:[%s609 + $0x188] sm:$0xff]
        %v2556 = vld [vmem:[%s609 + $0x190] sm:$0xff]
        %v2557 = vld [vmem:[%s609 + $0x198] sm:$0xff]
        %v2558 = vld [vmem:[%s609 + $0x1a0] sm:$0xff]
        %v2559 = vld [vmem:[%s609 + $0x1a8] sm:$0xff]
        %v2560 = vld [vmem:[%s609 + $0x1b0] sm:$0xff]
        %v2561 = vld [vmem:[%s609 + $0x1b8] sm:$0xff]
        %v2562 = vld [vmem:[%s609 + $0x1c0] sm:$0xff]
        %v2563 = vld [vmem:[%s609 + $0x1c8] sm:$0xff]
        %v2564 = vld [vmem:[%s609 + $0x1d0] sm:$0xff]
        %v2565 = vld [vmem:[%s609 + $0x1d8] sm:$0xff]
        %v2566 = vld [vmem:[%s609 + $0x1e0] sm:$0xff]
        %v2567 = vld [vmem:[%s609 + $0x1e8] sm:$0xff]
        %v2568 = vld [vmem:[%s609 + $0x1f0] sm:$0xff]
        %v2569 = vld [vmem:[%s609 + $0x1f8] sm:$0xff]
        %v2570 = vld [vmem:[%s609 + $0x200] sm:$0xff]
        %v2571 = vld [vmem:[%s609 + $0x208] sm:$0xff]
        %v2572 = vld [vmem:[%s609 + $0x210] sm:$0xff]
        %v2573 = vld [vmem:[%s609 + $0x218] sm:$0xff]
        %v2574 = vld [vmem:[%s609 + $0x220] sm:$0xff]
        %v2575 = vld [vmem:[%s609 + $0x228] sm:$0xff]
        %v2576 = vld [vmem:[%s609 + $0x230] sm:$0xff]
        %v2577 = vld [vmem:[%s609 + $0x238] sm:$0xff]
        %v2578 = vld [vmem:[%s609 + $0x240] sm:$0xff]
        %v2579 = vld [vmem:[%s609 + $0x248] sm:$0xff]
        %v2580 = vld [vmem:[%s609 + $0x250] sm:$0xff]
        %v2581 = vld [vmem:[%s609 + $0x258] sm:$0xff]
        %v2582 = vld [vmem:[%s609 + $0x260] sm:$0xff]
        %v2583 = vld [vmem:[%s609 + $0x268] sm:$0xff]
        %v2584 = vld [vmem:[%s609 + $0x270] sm:$0xff]
        %v2585 = vld [vmem:[%s609 + $0x278] sm:$0xff]
        %v2586 = vld [vmem:[%s609 + $0x280] sm:$0xff]
        %v2587 = vld [vmem:[%s609 + $0x288] sm:$0xff]
        %v2588 = vld [vmem:[%s609 + $0x290] sm:$0xff]
        %v2589 = vld [vmem:[%s609 + $0x298] sm:$0xff]
        %v2590 = vld [vmem:[%s609 + $0x2a0] sm:$0xff]
        %v2591 = vld [vmem:[%s609 + $0x2a8] sm:$0xff]
        %v2592 = vld [vmem:[%s609 + $0x2b0] sm:$0xff]
        %v2593 = vld [vmem:[%s609 + $0x2b8] sm:$0xff]
        %v2594 = vld [vmem:[%s609 + $0x2c0] sm:$0xff]
        %v2595 = vld [vmem:[%s609 + $0x2c8] sm:$0xff]
        %v2596 = vld [vmem:[%s609 + $0x2d0] sm:$0xff]
        %v2597 = vld [vmem:[%s609 + $0x2d8] sm:$0xff]
        %v2598 = vld [vmem:[%s609 + $0x2e0] sm:$0xff]
        %v2599 = vld [vmem:[%s609 + $0x2e8] sm:$0xff]
        %v2600 = vld [vmem:[%s609 + $0x2f0] sm:$0xff]
        %v2601 = vld [vmem:[%s609 + $0x2f8] sm:$0xff]
        %v2602 = vld [vmem:[%s609 + $0x300] sm:$0xff]
        %v2603 = vld [vmem:[%s609 + $0x308] sm:$0xff]
        %v2604 = vld [vmem:[%s609 + $0x310] sm:$0xff]
        %v2605 = vld [vmem:[%s609 + $0x318] sm:$0xff]
        %v2606 = vld [vmem:[%s609 + $0x320] sm:$0xff]
        %v2607 = vld [vmem:[%s609 + $0x328] sm:$0xff]
        %v2608 = vld [vmem:[%s609 + $0x330] sm:$0xff]
        %v2609 = vld [vmem:[%s609 + $0x338] sm:$0xff]
        %v2610 = vld [vmem:[%s609 + $0x340] sm:$0xff]
        %v2611 = vld [vmem:[%s609 + $0x348] sm:$0xff]
        %v2612 = vld [vmem:[%s609 + $0x350] sm:$0xff]
        %v2613 = vld [vmem:[%s609 + $0x358] sm:$0xff]
        %v2614 = vld [vmem:[%s609 + $0x360] sm:$0xff]
        %v2615 = vld [vmem:[%s609 + $0x368] sm:$0xff]
        %v2616 = vld [vmem:[%s609 + $0x370] sm:$0xff]
        %v2617 = vld [vmem:[%s609 + $0x378] sm:$0xff]
        %v2618 = vld [vmem:[%s609 + $0x380] sm:$0xff]
        %v2619 = vld [vmem:[%s609 + $0x388] sm:$0xff]
        %v2620 = vld [vmem:[%s609 + $0x390] sm:$0xff]
        %v2621 = vld [vmem:[%s609 + $0x398] sm:$0xff]
        %v2622 = vld [vmem:[%s609 + $0x3a0] sm:$0xff]
        %v2623 = vld [vmem:[%s609 + $0x3a8] sm:$0xff]
        %v2624 = vld [vmem:[%s609 + $0x3b0] sm:$0xff]
        %v2625 = vld [vmem:[%s609 + $0x3b8] sm:$0xff]
        %v2626 = vld [vmem:[%s609 + $0x3c0] sm:$0xff]
        %v2627 = vld [vmem:[%s609 + $0x3c8] sm:$0xff]
        %v2628 = vld [vmem:[%s609 + $0x3d0] sm:$0xff]
        %v2629 = vld [vmem:[%s609 + $0x3d8] sm:$0xff]
        %v2630 = vld [vmem:[%s609 + $0x3e0] sm:$0xff]
        %v2631 = vld [vmem:[%s609 + $0x3e8] sm:$0xff]
        %v2632 = vld [vmem:[%s609 + $0x3f0] sm:$0xff]
        %v2633 = vld [vmem:[%s609 + $0x3f8] sm:$0xff]
        %v2634 = vld [vmem:[%s609 + $0x400] sm:$0xff]
        %v2635 = vld [vmem:[%s609 + $0x408] sm:$0xff]
        %v2636 = vld [vmem:[%s609 + $0x410] sm:$0xff]
        %v2637 = vld [vmem:[%s609 + $0x418] sm:$0xff]
        %v2638 = vld [vmem:[%s609 + $0x420] sm:$0xff]
        %v2639 = vld [vmem:[%s609 + $0x428] sm:$0xff]
        %v2640 = vld [vmem:[%s609 + $0x430] sm:$0xff]
        %v2641 = vld [vmem:[%s609 + $0x438] sm:$0xff]
        %v2642 = vld [vmem:[%s609 + $0x440] sm:$0xff]
        %v2643 = vld [vmem:[%s609 + $0x448] sm:$0xff]
        %v2644 = vld [vmem:[%s609 + $0x450] sm:$0xff]
        %v2645 = vld [vmem:[%s609 + $0x458] sm:$0xff]
        %v2646 = vld [vmem:[%s609 + $0x460] sm:$0xff]
        %v2647 = vld [vmem:[%s609 + $0x468] sm:$0xff]
        %v2648 = vld [vmem:[%s609 + $0x470] sm:$0xff]
        %v2649 = vld [vmem:[%s609 + $0x478] sm:$0xff]
        %v2650 = vld [vmem:[%s609 + $0x480] sm:$0xff]
        %v2651 = vld [vmem:[%s609 + $0x488] sm:$0xff]
        %v2652 = vld [vmem:[%s609 + $0x490] sm:$0xff]
        %v2653 = vld [vmem:[%s609 + $0x498] sm:$0xff]
        %v2654 = vld [vmem:[%s609 + $0x4a0] sm:$0xff]
        %v2655 = vld [vmem:[%s609 + $0x4a8] sm:$0xff]
        %v2656 = vld [vmem:[%s609 + $0x4b0] sm:$0xff]
        %v2657 = vld [vmem:[%s609 + $0x4b8] sm:$0xff]
        %v2658 = vld [vmem:[%s609 + $0x4c0] sm:$0xff]
        %v2659 = vld [vmem:[%s609 + $0x4c8] sm:$0xff]
        %v2660 = vld [vmem:[%s609 + $0x4d0] sm:$0xff]
        %v2661 = vld [vmem:[%s609 + $0x4d8] sm:$0xff]
        %v2662 = vld [vmem:[%s609 + $0x4e0] sm:$0xff]
        %v2663 = vld [vmem:[%s609 + $0x4e8] sm:$0xff]
        %v2664 = vld [vmem:[%s609 + $0x4f0] sm:$0xff]
        %v2665 = vld [vmem:[%s609 + $0x4f8] sm:$0xff]
        %v2666 = vld [vmem:[%s609 + $0x500] sm:$0xff]
        %v2667 = vld [vmem:[%s609 + $0x508] sm:$0xff]
        %v2668 = vld [vmem:[%s609 + $0x510] sm:$0xff]
        %v2669 = vld [vmem:[%s609 + $0x518] sm:$0xff]
        %v2670 = vld [vmem:[%s609 + $0x520] sm:$0xff]
        %v2671 = vld [vmem:[%s609 + $0x528] sm:$0xff]
        %v2672 = vld [vmem:[%s609 + $0x530] sm:$0xff]
        %v2673 = vld [vmem:[%s609 + $0x538] sm:$0xff]
        %v2674 = vld [vmem:[%s609 + $0x540] sm:$0xff]
        %v2675 = vld [vmem:[%s609 + $0x548] sm:$0xff]
        %v2676 = vld [vmem:[%s609 + $0x550] sm:$0xff]
        %v2677 = vld [vmem:[%s609 + $0x558] sm:$0xff]
        %v2678 = vld [vmem:[%s609 + $0x560] sm:$0xff]
        %v2679 = vld [vmem:[%s609 + $0x568] sm:$0xff]
        %v2680 = vld [vmem:[%s609 + $0x570] sm:$0xff]
        %v2681 = vld [vmem:[%s609 + $0x578] sm:$0xff]
        %v2682 = vld [vmem:[%s609 + $0x580] sm:$0xff]
        %v2683 = vld [vmem:[%s609 + $0x588] sm:$0xff]
        %v2684 = vld [vmem:[%s609 + $0x590] sm:$0xff]
        %v2685 = vld [vmem:[%s609 + $0x598] sm:$0xff]
        %v2687 = vcombine.high %v2505, %v2505
        %v2689 = vunpack.c.l.s4 1966171168
        %v2690 = vunpack.c.0.s8 %v2689
        %v2691 = vlaneseq
        %v2692 = vshrl.u32 %v2691, 7
        %v2693 = vsub.s32 %v2690, %v2692
        %v2694 = vrot.slane %v2505, %v2693
        %v2696 = vunpack.c.l.s4 1966171168
        %v2697 = vunpack.c.0.s8 %v2696
        %v2698 = vlaneseq
        %v2699 = vshrl.u32 %v2698, 7
        %v2700 = vsub.s32 %v2697, %v2699
        %v2701 = vrot.slane %v2687, %v2700
        %v2702 = vcombine.high %v2694, %v2694
        %v2703 = vcombine.high %v2701, %v2701
        %v2705 = vunpack.c.l.s4 1966171168
        %v2706 = vunpack.c.0.s8 %v2705
        %v2707 = vlaneseq
        %v2708 = vshrl.u32 %v2707, 7
        %v2709 = vsub.s32 %v2706, %v2708
        %v2710 = vrot.slane %v2694, %v2709
        %v2712 = vunpack.c.l.s4 1966171168
        %v2713 = vunpack.c.0.s8 %v2712
        %v2714 = vlaneseq
        %v2715 = vshrl.u32 %v2714, 7
        %v2716 = vsub.s32 %v2713, %v2715
        %v2717 = vrot.slane %v2701, %v2716
        %v2719 = vunpack.c.l.s4 1966171168
        %v2720 = vunpack.c.0.s8 %v2719
        %v2721 = vlaneseq
        %v2722 = vshrl.u32 %v2721, 7
        %v2723 = vsub.s32 %v2720, %v2722
        %v2724 = vrot.slane %v2702, %v2723
        %v2726 = vunpack.c.l.s4 1966171168
        %v2727 = vunpack.c.0.s8 %v2726
        %v2728 = vlaneseq
        %v2729 = vshrl.u32 %v2728, 7
        %v2730 = vsub.s32 %v2727, %v2729
        %v2731 = vrot.slane %v2703, %v2730
        %v2732 = vcombine.high %v2710, %v2710
        %v2733 = vcombine.high %v2724, %v2724
        %v2919 = vunpack.c.l.b16 %v2506
        %v2920 = vunpack.c.h.b16 %v2506
        %v2921 = vunpack.c.l.b16 %v2507
        %v2922 = vunpack.c.h.b16 %v2507
        %v2923 = vunpack.c.l.b16 %v2508
        %v2924 = vunpack.c.h.b16 %v2508
        %v2925 = vunpack.c.l.b16 %v2509
        %v2926 = vunpack.c.h.b16 %v2509
        %v2927 = vunpack.c.l.b16 %v2510
        %v2928 = vunpack.c.h.b16 %v2510
        %v2929 = vunpack.c.l.b16 %v2511
        %v2930 = vunpack.c.h.b16 %v2511
        %v2931 = vunpack.c.l.b16 %v2512
        %v2932 = vunpack.c.h.b16 %v2512
        %v2933 = vunpack.c.l.b16 %v2513
        %v2934 = vunpack.c.h.b16 %v2513
        %v2935 = vunpack.c.l.b16 %v2514
        %v2936 = vunpack.c.h.b16 %v2514
        %v2937 = vunpack.c.l.b16 %v2515
        %v2938 = vunpack.c.h.b16 %v2515
        %v2939 = vunpack.c.l.b16 %v2516
        %v2940 = vunpack.c.h.b16 %v2516
        %v2941 = vunpack.c.l.b16 %v2517
        %v2942 = vunpack.c.h.b16 %v2517
        %v2943 = vunpack.c.l.b16 %v2518
        %v2944 = vunpack.c.h.b16 %v2518
        %v2945 = vunpack.c.l.b16 %v2519
        %v2946 = vunpack.c.h.b16 %v2519
        %v2947 = vunpack.c.l.b16 %v2520
        %v2948 = vunpack.c.h.b16 %v2520
        %v2949 = vunpack.c.l.b16 %v2521
        %v2950 = vunpack.c.h.b16 %v2521
        %v2951 = vunpack.c.l.b16 %v2522
        %v2952 = vunpack.c.h.b16 %v2522
        %v2953 = vunpack.c.l.b16 %v2523
        %v2954 = vunpack.c.h.b16 %v2523
        %v2955 = vunpack.c.l.b16 %v2524
        %v2956 = vunpack.c.h.b16 %v2524
        %v2957 = vunpack.c.l.b16 %v2525
        %v2958 = vunpack.c.h.b16 %v2525
        %v2959 = vunpack.c.l.b16 %v2526
        %v2960 = vunpack.c.h.b16 %v2526
        %v2961 = vunpack.c.l.b16 %v2527
        %v2962 = vunpack.c.h.b16 %v2527
        %v2963 = vunpack.c.l.b16 %v2528
        %v2964 = vunpack.c.h.b16 %v2528
        %v2965 = vunpack.c.l.b16 %v2529
        %v2966 = vunpack.c.h.b16 %v2529
        %v2967 = vunpack.c.l.b16 %v2530
        %v2968 = vunpack.c.h.b16 %v2530
        %v2969 = vunpack.c.l.b16 %v2531
        %v2970 = vunpack.c.h.b16 %v2531
        %v2971 = vunpack.c.l.b16 %v2532
        %v2972 = vunpack.c.h.b16 %v2532
        %v2973 = vunpack.c.l.b16 %v2533
        %v2974 = vunpack.c.h.b16 %v2533
        %v2975 = vunpack.c.l.b16 %v2534
        %v2976 = vunpack.c.h.b16 %v2534
        %v2977 = vunpack.c.l.b16 %v2535
        %v2978 = vunpack.c.h.b16 %v2535
        %v2979 = vunpack.c.l.b16 %v2536
        %v2980 = vunpack.c.h.b16 %v2536
        %v2981 = vunpack.c.l.b16 %v2537
        %v2982 = vunpack.c.h.b16 %v2537
        %v2983 = vunpack.c.l.b16 %v2538
        %v2984 = vunpack.c.h.b16 %v2538
        %v2985 = vunpack.c.l.b16 %v2539
        %v2986 = vunpack.c.h.b16 %v2539
        %v2987 = vunpack.c.l.b16 %v2540
        %v2988 = vunpack.c.h.b16 %v2540
        %v2989 = vunpack.c.l.b16 %v2541
        %v2990 = vunpack.c.h.b16 %v2541
        %v2991 = vunpack.c.l.b16 %v2542
        %v2992 = vunpack.c.h.b16 %v2542
        %v2993 = vunpack.c.l.b16 %v2543
        %v2994 = vunpack.c.h.b16 %v2543
        %v2995 = vunpack.c.l.b16 %v2544
        %v2996 = vunpack.c.h.b16 %v2544
        %v2997 = vunpack.c.l.b16 %v2545
        %v2998 = vunpack.c.h.b16 %v2545
        %v2999 = vunpack.c.l.b16 %v2546
        %v3000 = vunpack.c.h.b16 %v2546
        %v3001 = vunpack.c.l.b16 %v2547
        %v3002 = vunpack.c.h.b16 %v2547
        %v3003 = vunpack.c.l.b16 %v2548
        %v3004 = vunpack.c.h.b16 %v2548
        %v3005 = vunpack.c.l.b16 %v2549
        %v3006 = vunpack.c.h.b16 %v2549
        %v3007 = vunpack.c.l.b16 %v2550
        %v3008 = vunpack.c.h.b16 %v2550
        %v3009 = vunpack.c.l.b16 %v2551
        %v3010 = vunpack.c.h.b16 %v2551
        %v3011 = vunpack.c.l.b16 %v2552
        %v3012 = vunpack.c.h.b16 %v2552
        %v3013 = vunpack.c.l.b16 %v2553
        %v3014 = vunpack.c.h.b16 %v2553
        %v3015 = vunpack.c.l.b16 %v2554
        %v3016 = vunpack.c.h.b16 %v2554
        %v3017 = vunpack.c.l.b16 %v2555
        %v3018 = vunpack.c.h.b16 %v2555
        %v3019 = vunpack.c.l.b16 %v2556
        %v3020 = vunpack.c.h.b16 %v2556
        %v3021 = vunpack.c.l.b16 %v2557
        %v3022 = vunpack.c.h.b16 %v2557
        %v3023 = vunpack.c.l.b16 %v2558
        %v3024 = vunpack.c.h.b16 %v2558
        %v3025 = vunpack.c.l.b16 %v2559
        %v3026 = vunpack.c.h.b16 %v2559
        %v3027 = vunpack.c.l.b16 %v2560
        %v3028 = vunpack.c.h.b16 %v2560
        %v3029 = vunpack.c.l.b16 %v2561
        %v3030 = vunpack.c.h.b16 %v2561
        %v3031 = vunpack.c.l.b16 %v2562
        %v3032 = vunpack.c.h.b16 %v2562
        %v3033 = vunpack.c.l.b16 %v2563
        %v3034 = vunpack.c.h.b16 %v2563
        %v3035 = vunpack.c.l.b16 %v2564
        %v3036 = vunpack.c.h.b16 %v2564
        %v3037 = vunpack.c.l.b16 %v2565
        %v3038 = vunpack.c.h.b16 %v2565
        %v3039 = vunpack.c.l.b16 %v2566
        %v3040 = vunpack.c.h.b16 %v2566
        %v3041 = vunpack.c.l.b16 %v2567
        %v3042 = vunpack.c.h.b16 %v2567
        %v3043 = vunpack.c.l.b16 %v2568
        %v3044 = vunpack.c.h.b16 %v2568
        %v3045 = vunpack.c.l.b16 %v2569
        %v3046 = vunpack.c.h.b16 %v2569
        %v3047 = vunpack.c.l.b16 %v2570
        %v3048 = vunpack.c.h.b16 %v2570
        %v3049 = vunpack.c.l.b16 %v2571
        %v3050 = vunpack.c.h.b16 %v2571
        %v3051 = vunpack.c.l.b16 %v2572
        %v3052 = vunpack.c.h.b16 %v2572
        %v3053 = vunpack.c.l.b16 %v2573
        %v3054 = vunpack.c.h.b16 %v2573
        %v3055 = vunpack.c.l.b16 %v2574
        %v3056 = vunpack.c.h.b16 %v2574
        %v3057 = vunpack.c.l.b16 %v2575
        %v3058 = vunpack.c.h.b16 %v2575
        %v3059 = vunpack.c.l.b16 %v2576
        %v3060 = vunpack.c.h.b16 %v2576
        %v3061 = vunpack.c.l.b16 %v2577
        %v3062 = vunpack.c.h.b16 %v2577
        %v3063 = vunpack.c.l.b16 %v2578
        %v3064 = vunpack.c.h.b16 %v2578
        %v3065 = vunpack.c.l.b16 %v2579
        %v3066 = vunpack.c.h.b16 %v2579
        %v3067 = vunpack.c.l.b16 %v2580
        %v3068 = vunpack.c.h.b16 %v2580
        %v3069 = vunpack.c.l.b16 %v2581
        %v3070 = vunpack.c.h.b16 %v2581
        %v3071 = vunpack.c.l.b16 %v2582
        %v3072 = vunpack.c.h.b16 %v2582
        %v3073 = vunpack.c.l.b16 %v2583
        %v3074 = vunpack.c.h.b16 %v2583
        %v3075 = vunpack.c.l.b16 %v2584
        %v3076 = vunpack.c.h.b16 %v2584
        %v3077 = vunpack.c.l.b16 %v2585
        %v3078 = vunpack.c.h.b16 %v2585
        %v3079 = vunpack.c.l.b16 %v2586
        %v3080 = vunpack.c.h.b16 %v2586
        %v3081 = vunpack.c.l.b16 %v2587
        %v3082 = vunpack.c.h.b16 %v2587
        %v3083 = vunpack.c.l.b16 %v2588
        %v3084 = vunpack.c.h.b16 %v2588
        %v3085 = vunpack.c.l.b16 %v2589
        %v3086 = vunpack.c.h.b16 %v2589
        %v3087 = vunpack.c.l.b16 %v2590
        %v3088 = vunpack.c.h.b16 %v2590
        %v3089 = vunpack.c.l.b16 %v2591
        %v3090 = vunpack.c.h.b16 %v2591
        %v3091 = vunpack.c.l.b16 %v2592
        %v3092 = vunpack.c.h.b16 %v2592
        %v3093 = vunpack.c.l.b16 %v2593
        %v3094 = vunpack.c.h.b16 %v2593
        %v3095 = vunpack.c.l.b16 %v2594
        %v3096 = vunpack.c.h.b16 %v2594
        %v3097 = vunpack.c.l.b16 %v2595
        %v3098 = vunpack.c.h.b16 %v2595
        %v3099 = vunpack.c.l.b16 %v2596
        %v3100 = vunpack.c.h.b16 %v2596
        %v3101 = vunpack.c.l.b16 %v2597
        %v3102 = vunpack.c.h.b16 %v2597
        %v3103 = vunpack.c.l.b16 %v2598
        %v3104 = vunpack.c.h.b16 %v2598
        %v3105 = vunpack.c.l.b16 %v2599
        %v3106 = vunpack.c.h.b16 %v2599
        %v3107 = vunpack.c.l.b16 %v2600
        %v3108 = vunpack.c.h.b16 %v2600
        %v3109 = vunpack.c.l.b16 %v2601
        %v3110 = vunpack.c.h.b16 %v2601
        %v3111 = vunpack.c.l.b16 %v2602
        %v3112 = vunpack.c.h.b16 %v2602
        %v3113 = vunpack.c.l.b16 %v2603
        %v3114 = vunpack.c.h.b16 %v2603
        %v3115 = vunpack.c.l.b16 %v2604
        %v3116 = vunpack.c.h.b16 %v2604
        %v3117 = vunpack.c.l.b16 %v2605
        %v3118 = vunpack.c.h.b16 %v2605
        %v3119 = vunpack.c.l.b16 %v2606
        %v3120 = vunpack.c.h.b16 %v2606
        %v3121 = vunpack.c.l.b16 %v2607
        %v3122 = vunpack.c.h.b16 %v2607
        %v3123 = vunpack.c.l.b16 %v2608
        %v3124 = vunpack.c.h.b16 %v2608
        %v3125 = vunpack.c.l.b16 %v2609
        %v3126 = vunpack.c.h.b16 %v2609
        %v3127 = vunpack.c.l.b16 %v2610
        %v3128 = vunpack.c.h.b16 %v2610
        %v3129 = vunpack.c.l.b16 %v2611
        %v3130 = vunpack.c.h.b16 %v2611
        %v3131 = vunpack.c.l.b16 %v2612
        %v3132 = vunpack.c.h.b16 %v2612
        %v3133 = vunpack.c.l.b16 %v2613
        %v3134 = vunpack.c.h.b16 %v2613
        %v3135 = vunpack.c.l.b16 %v2614
        %v3136 = vunpack.c.h.b16 %v2614
        %v3137 = vunpack.c.l.b16 %v2615
        %v3138 = vunpack.c.h.b16 %v2615
        %v3139 = vunpack.c.l.b16 %v2616
        %v3140 = vunpack.c.h.b16 %v2616
        %v3141 = vunpack.c.l.b16 %v2617
        %v3142 = vunpack.c.h.b16 %v2617
        %v3143 = vunpack.c.l.b16 %v2618
        %v3144 = vunpack.c.h.b16 %v2618
        %v3145 = vunpack.c.l.b16 %v2619
        %v3146 = vunpack.c.h.b16 %v2619
        %v3147 = vunpack.c.l.b16 %v2620
        %v3148 = vunpack.c.h.b16 %v2620
        %v3149 = vunpack.c.l.b16 %v2621
        %v3150 = vunpack.c.h.b16 %v2621
        %v3151 = vunpack.c.l.b16 %v2622
        %v3152 = vunpack.c.h.b16 %v2622
        %v3153 = vunpack.c.l.b16 %v2623
        %v3154 = vunpack.c.h.b16 %v2623
        %v3155 = vunpack.c.l.b16 %v2624
        %v3156 = vunpack.c.h.b16 %v2624
        %v3157 = vunpack.c.l.b16 %v2625
        %v3158 = vunpack.c.h.b16 %v2625
        %v3159 = vunpack.c.l.b16 %v2626
        %v3160 = vunpack.c.h.b16 %v2626
        %v3161 = vunpack.c.l.b16 %v2627
        %v3162 = vunpack.c.h.b16 %v2627
        %v3163 = vunpack.c.l.b16 %v2628
        %v3164 = vunpack.c.h.b16 %v2628
        %v3165 = vunpack.c.l.b16 %v2629
        %v3166 = vunpack.c.h.b16 %v2629
        %v3167 = vunpack.c.l.b16 %v2630
        %v3168 = vunpack.c.h.b16 %v2630
        %v3169 = vunpack.c.l.b16 %v2631
        %v3170 = vunpack.c.h.b16 %v2631
        %v3171 = vunpack.c.l.b16 %v2632
        %v3172 = vunpack.c.h.b16 %v2632
        %v3173 = vunpack.c.l.b16 %v2633
        %v3174 = vunpack.c.h.b16 %v2633
        %v3175 = vunpack.c.l.b16 %v2634
        %v3176 = vunpack.c.h.b16 %v2634
        %v3177 = vunpack.c.l.b16 %v2635
        %v3178 = vunpack.c.h.b16 %v2635
        %v3179 = vunpack.c.l.b16 %v2636
        %v3180 = vunpack.c.h.b16 %v2636
        %v3181 = vunpack.c.l.b16 %v2637
        %v3182 = vunpack.c.h.b16 %v2637
        %v3183 = vunpack.c.l.b16 %v2638
        %v3184 = vunpack.c.h.b16 %v2638
        %v3185 = vunpack.c.l.b16 %v2639
        %v3186 = vunpack.c.h.b16 %v2639
        %v3187 = vunpack.c.l.b16 %v2640
        %v3188 = vunpack.c.h.b16 %v2640
        %v3189 = vunpack.c.l.b16 %v2641
        %v3190 = vunpack.c.h.b16 %v2641
        %v3191 = vunpack.c.l.b16 %v2642
        %v3192 = vunpack.c.h.b16 %v2642
        %v3193 = vunpack.c.l.b16 %v2643
        %v3194 = vunpack.c.h.b16 %v2643
        %v3195 = vunpack.c.l.b16 %v2644
        %v3196 = vunpack.c.h.b16 %v2644
        %v3197 = vunpack.c.l.b16 %v2645
        %v3198 = vunpack.c.h.b16 %v2645
        %v3199 = vunpack.c.l.b16 %v2646
        %v3200 = vunpack.c.h.b16 %v2646
        %v3201 = vunpack.c.l.b16 %v2647
        %v3202 = vunpack.c.h.b16 %v2647
        %v3203 = vunpack.c.l.b16 %v2648
        %v3204 = vunpack.c.h.b16 %v2648
        %v3205 = vunpack.c.l.b16 %v2649
        %v3206 = vunpack.c.h.b16 %v2649
        %v3207 = vunpack.c.l.b16 %v2650
        %v3208 = vunpack.c.h.b16 %v2650
        %v3209 = vunpack.c.l.b16 %v2651
        %v3210 = vunpack.c.h.b16 %v2651
        %v3211 = vunpack.c.l.b16 %v2652
        %v3212 = vunpack.c.h.b16 %v2652
        %v3213 = vunpack.c.l.b16 %v2653
        %v3214 = vunpack.c.h.b16 %v2653
        %v3215 = vunpack.c.l.b16 %v2654
        %v3216 = vunpack.c.h.b16 %v2654
        %v3217 = vunpack.c.l.b16 %v2655
        %v3218 = vunpack.c.h.b16 %v2655
        %v3219 = vunpack.c.l.b16 %v2656
        %v3220 = vunpack.c.h.b16 %v2656
        %v3221 = vunpack.c.l.b16 %v2657
        %v3222 = vunpack.c.h.b16 %v2657
        %v3223 = vunpack.c.l.b16 %v2658
        %v3224 = vunpack.c.h.b16 %v2658
        %v3225 = vunpack.c.l.b16 %v2659
        %v3226 = vunpack.c.h.b16 %v2659
        %v3227 = vunpack.c.l.b16 %v2660
        %v3228 = vunpack.c.h.b16 %v2660
        %v3229 = vunpack.c.l.b16 %v2661
        %v3230 = vunpack.c.h.b16 %v2661
        %v3231 = vunpack.c.l.b16 %v2662
        %v3232 = vunpack.c.h.b16 %v2662
        %v3233 = vunpack.c.l.b16 %v2663
        %v3234 = vunpack.c.h.b16 %v2663
        %v3235 = vunpack.c.l.b16 %v2664
        %v3236 = vunpack.c.h.b16 %v2664
        %v3237 = vunpack.c.l.b16 %v2665
        %v3238 = vunpack.c.h.b16 %v2665
        %v3239 = vunpack.c.l.b16 %v2666
        %v3240 = vunpack.c.h.b16 %v2666
        %v3241 = vunpack.c.l.b16 %v2667
        %v3242 = vunpack.c.h.b16 %v2667
        %v3243 = vunpack.c.l.b16 %v2668
        %v3244 = vunpack.c.h.b16 %v2668
        %v3245 = vunpack.c.l.b16 %v2669
        %v3246 = vunpack.c.h.b16 %v2669
        %v3247 = vunpack.c.l.b16 %v2670
        %v3248 = vunpack.c.h.b16 %v2670
        %v3249 = vunpack.c.l.b16 %v2671
        %v3250 = vunpack.c.h.b16 %v2671
        %v3251 = vunpack.c.l.b16 %v2672
        %v3252 = vunpack.c.h.b16 %v2672
        %v3253 = vunpack.c.l.b16 %v2673
        %v3254 = vunpack.c.h.b16 %v2673
        %v3255 = vunpack.c.l.b16 %v2674
        %v3256 = vunpack.c.h.b16 %v2674
        %v3257 = vunpack.c.l.b16 %v2675
        %v3258 = vunpack.c.h.b16 %v2675
        %v3259 = vunpack.c.l.b16 %v2676
        %v3260 = vunpack.c.h.b16 %v2676
        %v3261 = vunpack.c.l.b16 %v2677
        %v3262 = vunpack.c.h.b16 %v2677
        %v3263 = vunpack.c.l.b16 %v2678
        %v3264 = vunpack.c.h.b16 %v2678
        %v3265 = vunpack.c.l.b16 %v2679
        %v3266 = vunpack.c.h.b16 %v2679
        %v3267 = vunpack.c.l.b16 %v2680
        %v3268 = vunpack.c.h.b16 %v2680
        %v3269 = vunpack.c.l.b16 %v2681
        %v3270 = vunpack.c.h.b16 %v2681
        %v3271 = vunpack.c.l.b16 %v2682
        %v3272 = vunpack.c.h.b16 %v2682
        %v3273 = vunpack.c.l.b16 %v2683
        %v3274 = vunpack.c.h.b16 %v2683
        %v3275 = vunpack.c.l.b16 %v2684
        %v3276 = vunpack.c.h.b16 %v2684
        %v3277 = vunpack.c.l.b16 %v2685
        %v3278 = vunpack.c.h.b16 %v2685
        %v3279 = vpack.c.b16 %v2923, %v2919
        %v3280 = vpack.c.b16 %v2924, %v2920
        %v3281 = vpack.c.b16 %v2925, %v2921
        %v3282 = vpack.c.b16 %v2926, %v2922
        %v3283 = vpack.c.b16 %v2931, %v2927
        %v3284 = vpack.c.b16 %v2932, %v2928
        %v3285 = vpack.c.b16 %v2933, %v2929
        %v3286 = vpack.c.b16 %v2934, %v2930
        %v3287 = vpack.c.b16 %v2939, %v2935
        %v3288 = vpack.c.b16 %v2940, %v2936
        %v3289 = vpack.c.b16 %v2941, %v2937
        %v3290 = vpack.c.b16 %v2942, %v2938
        %v3291 = vpack.c.b16 %v2947, %v2943
        %v3292 = vpack.c.b16 %v2948, %v2944
        %v3293 = vpack.c.b16 %v2949, %v2945
        %v3294 = vpack.c.b16 %v2950, %v2946
        %v3295 = vpack.c.b16 %v2955, %v2951
        %v3296 = vpack.c.b16 %v2956, %v2952
        %v3297 = vpack.c.b16 %v2957, %v2953
        %v3298 = vpack.c.b16 %v2958, %v2954
        %v3299 = vpack.c.b16 %v2963, %v2959
        %v3300 = vpack.c.b16 %v2964, %v2960
        %v3301 = vpack.c.b16 %v2965, %v2961
        %v3302 = vpack.c.b16 %v2966, %v2962
        %v3303 = vpack.c.b16 %v2971, %v2967
        %v3304 = vpack.c.b16 %v2972, %v2968
        %v3305 = vpack.c.b16 %v2973, %v2969
        %v3306 = vpack.c.b16 %v2974, %v2970
        %v3307 = vpack.c.b16 %v2979, %v2975
        %v3308 = vpack.c.b16 %v2980, %v2976
        %v3309 = vpack.c.b16 %v2981, %v2977
        %v3310 = vpack.c.b16 %v2982, %v2978
        %v3311 = vpack.c.b16 %v2987, %v2983
        %v3312 = vpack.c.b16 %v2988, %v2984
        %v3313 = vpack.c.b16 %v2989, %v2985
        %v3314 = vpack.c.b16 %v2990, %v2986
        %v3315 = vpack.c.b16 %v2995, %v2991
        %v3316 = vpack.c.b16 %v2996, %v2992
        %v3317 = vpack.c.b16 %v2997, %v2993
        %v3318 = vpack.c.b16 %v2998, %v2994
        %v3319 = vpack.c.b16 %v3003, %v2999
        %v3320 = vpack.c.b16 %v3004, %v3000
        %v3321 = vpack.c.b16 %v3005, %v3001
        %v3322 = vpack.c.b16 %v3006, %v3002
        %v3323 = vpack.c.b16 %v3011, %v3007
        %v3324 = vpack.c.b16 %v3012, %v3008
        %v3325 = vpack.c.b16 %v3013, %v3009
        %v3326 = vpack.c.b16 %v3014, %v3010
        %v3327 = vpack.c.b16 %v3019, %v3015
        %v3328 = vpack.c.b16 %v3020, %v3016
        %v3329 = vpack.c.b16 %v3021, %v3017
        %v3330 = vpack.c.b16 %v3022, %v3018
        %v3331 = vpack.c.b16 %v3027, %v3023
        %v3332 = vpack.c.b16 %v3028, %v3024
        %v3333 = vpack.c.b16 %v3029, %v3025
        %v3334 = vpack.c.b16 %v3030, %v3026
        %v3335 = vpack.c.b16 %v3035, %v3031
        %v3336 = vpack.c.b16 %v3036, %v3032
        %v3337 = vpack.c.b16 %v3037, %v3033
        %v3338 = vpack.c.b16 %v3038, %v3034
        %v3339 = vpack.c.b16 %v3043, %v3039
        %v3340 = vpack.c.b16 %v3044, %v3040
        %v3341 = vpack.c.b16 %v3045, %v3041
        %v3342 = vpack.c.b16 %v3046, %v3042
        %v3343 = vpack.c.b16 %v3051, %v3047
        %v3344 = vpack.c.b16 %v3052, %v3048
        %v3345 = vpack.c.b16 %v3053, %v3049
        %v3346 = vpack.c.b16 %v3054, %v3050
        %v3347 = vpack.c.b16 %v3059, %v3055
        %v3348 = vpack.c.b16 %v3060, %v3056
        %v3349 = vpack.c.b16 %v3061, %v3057
        %v3350 = vpack.c.b16 %v3062, %v3058
        %v3351 = vpack.c.b16 %v3067, %v3063
        %v3352 = vpack.c.b16 %v3068, %v3064
        %v3353 = vpack.c.b16 %v3069, %v3065
        %v3354 = vpack.c.b16 %v3070, %v3066
        %v3355 = vpack.c.b16 %v3075, %v3071
        %v3356 = vpack.c.b16 %v3076, %v3072
        %v3357 = vpack.c.b16 %v3077, %v3073
        %v3358 = vpack.c.b16 %v3078, %v3074
        %v3359 = vpack.c.b16 %v3083, %v3079
        %v3360 = vpack.c.b16 %v3084, %v3080
        %v3361 = vpack.c.b16 %v3085, %v3081
        %v3362 = vpack.c.b16 %v3086, %v3082
        %v3363 = vpack.c.b16 %v3091, %v3087
        %v3364 = vpack.c.b16 %v3092, %v3088
        %v3365 = vpack.c.b16 %v3093, %v3089
        %v3366 = vpack.c.b16 %v3094, %v3090
        %v3367 = vpack.c.b16 %v3099, %v3095
        %v3368 = vpack.c.b16 %v3100, %v3096
        %v3369 = vpack.c.b16 %v3101, %v3097
        %v3370 = vpack.c.b16 %v3102, %v3098
        %v3371 = vpack.c.b16 %v3107, %v3103
        %v3372 = vpack.c.b16 %v3108, %v3104
        %v3373 = vpack.c.b16 %v3109, %v3105
        %v3374 = vpack.c.b16 %v3110, %v3106
        %v3375 = vpack.c.b16 %v3115, %v3111
        %v3376 = vpack.c.b16 %v3116, %v3112
        %v3377 = vpack.c.b16 %v3117, %v3113
        %v3378 = vpack.c.b16 %v3118, %v3114
        %v3379 = vpack.c.b16 %v3123, %v3119
        %v3380 = vpack.c.b16 %v3124, %v3120
        %v3381 = vpack.c.b16 %v3125, %v3121
        %v3382 = vpack.c.b16 %v3126, %v3122
        %v3383 = vpack.c.b16 %v3131, %v3127
        %v3384 = vpack.c.b16 %v3132, %v3128
        %v3385 = vpack.c.b16 %v3133, %v3129
        %v3386 = vpack.c.b16 %v3134, %v3130
        %v3387 = vpack.c.b16 %v3139, %v3135
        %v3388 = vpack.c.b16 %v3140, %v3136
        %v3389 = vpack.c.b16 %v3141, %v3137
        %v3390 = vpack.c.b16 %v3142, %v3138
        %v3391 = vpack.c.b16 %v3147, %v3143
        %v3392 = vpack.c.b16 %v3148, %v3144
        %v3393 = vpack.c.b16 %v3149, %v3145
        %v3394 = vpack.c.b16 %v3150, %v3146
        %v3395 = vpack.c.b16 %v3155, %v3151
        %v3396 = vpack.c.b16 %v3156, %v3152
        %v3397 = vpack.c.b16 %v3157, %v3153
        %v3398 = vpack.c.b16 %v3158, %v3154
        %v3399 = vpack.c.b16 %v3163, %v3159
        %v3400 = vpack.c.b16 %v3164, %v3160
        %v3401 = vpack.c.b16 %v3165, %v3161
        %v3402 = vpack.c.b16 %v3166, %v3162
        %v3403 = vpack.c.b16 %v3171, %v3167
        %v3404 = vpack.c.b16 %v3172, %v3168
        %v3405 = vpack.c.b16 %v3173, %v3169
        %v3406 = vpack.c.b16 %v3174, %v3170
        %v3407 = vpack.c.b16 %v3179, %v3175
        %v3408 = vpack.c.b16 %v3180, %v3176
        %v3409 = vpack.c.b16 %v3181, %v3177
        %v3410 = vpack.c.b16 %v3182, %v3178
        %v3411 = vpack.c.b16 %v3187, %v3183
        %v3412 = vpack.c.b16 %v3188, %v3184
        %v3413 = vpack.c.b16 %v3189, %v3185
        %v3414 = vpack.c.b16 %v3190, %v3186
        %v3415 = vpack.c.b16 %v3195, %v3191
        %v3416 = vpack.c.b16 %v3196, %v3192
        %v3417 = vpack.c.b16 %v3197, %v3193
        %v3418 = vpack.c.b16 %v3198, %v3194
        %v3419 = vpack.c.b16 %v3203, %v3199
        %v3420 = vpack.c.b16 %v3204, %v3200
        %v3421 = vpack.c.b16 %v3205, %v3201
        %v3422 = vpack.c.b16 %v3206, %v3202
        %v3423 = vpack.c.b16 %v3211, %v3207
        %v3424 = vpack.c.b16 %v3212, %v3208
        %v3425 = vpack.c.b16 %v3213, %v3209
        %v3426 = vpack.c.b16 %v3214, %v3210
        %v3427 = vpack.c.b16 %v3219, %v3215
        %v3428 = vpack.c.b16 %v3220, %v3216
        %v3429 = vpack.c.b16 %v3221, %v3217
        %v3430 = vpack.c.b16 %v3222, %v3218
        %v3431 = vpack.c.b16 %v3227, %v3223
        %v3432 = vpack.c.b16 %v3228, %v3224
        %v3433 = vpack.c.b16 %v3229, %v3225
        %v3434 = vpack.c.b16 %v3230, %v3226
        %v3435 = vpack.c.b16 %v3235, %v3231
        %v3436 = vpack.c.b16 %v3236, %v3232
        %v3437 = vpack.c.b16 %v3237, %v3233
        %v3438 = vpack.c.b16 %v3238, %v3234
        %v3439 = vpack.c.b16 %v3243, %v3239
        %v3440 = vpack.c.b16 %v3244, %v3240
        %v3441 = vpack.c.b16 %v3245, %v3241
        %v3442 = vpack.c.b16 %v3246, %v3242
        %v3443 = vpack.c.b16 %v3251, %v3247
        %v3444 = vpack.c.b16 %v3252, %v3248
        %v3445 = vpack.c.b16 %v3253, %v3249
        %v3446 = vpack.c.b16 %v3254, %v3250
        %v3447 = vpack.c.b16 %v3259, %v3255
        %v3448 = vpack.c.b16 %v3260, %v3256
        %v3449 = vpack.c.b16 %v3261, %v3257
        %v3450 = vpack.c.b16 %v3262, %v3258
        %v3451 = vpack.c.b16 %v3267, %v3263
        %v3452 = vpack.c.b16 %v3268, %v3264
        %v3453 = vpack.c.b16 %v3269, %v3265
        %v3454 = vpack.c.b16 %v3270, %v3266
        %v3455 = vpack.c.b16 %v3275, %v3271
        %v3456 = vpack.c.b16 %v3276, %v3272
        %v3457 = vpack.c.b16 %v3277, %v3273
        %v3458 = vpack.c.b16 %v3278, %v3274
        %vm3639 = vcmask 654336
        %v3641 = vsel %vm3639, %v2731, 0
        %3643 = vmatprep.subr.bf16.mxu0 %v3308
        %3644 = vmatpush1.bf16.msra.mxu0 %v3307
        %3645 = vmatprep.subr.bf16.mxu0 %v3304
        %3646 = vmatpush1.bf16.msra.mxu0 %v3303
        %3647 = vmatprep.subr.bf16.mxu0 %v3300
        %3648 = vmatpush1.bf16.msra.mxu0 %v3299
        %3649 = vmatprep.subr.bf16.mxu0 %v3296
        %3650 = vmatpush1.bf16.msra.mxu0 %v3295
        %3651 = vmatprep.subr.bf16.mxu0 %v3292
        %3652 = vmatpush1.bf16.msra.mxu0 %v3291
        %3653 = vmatprep.subr.bf16.mxu0 %v3288
        %3654 = vmatpush1.bf16.msra.mxu0 %v3287
        %3655 = vmatprep.subr.bf16.mxu0 %v3284
        %3656 = vmatpush1.bf16.msra.mxu0 %v3283
        %3657 = vmatprep.subr.bf16.mxu0 %v3280
        %3658 = vmatpush1.bf16.msra.mxu0 %v3279
        %3659 = vmatprep.subr.bf16.mxu0 %v3340
        %3660 = vmatpush2.bf16.msra.mxu0 %v3339
        %3661 = vmatprep.subr.bf16.mxu0 %v3336
        %3662 = vmatpush2.bf16.msra.mxu0 %v3335
        %3663 = vmatprep.subr.bf16.mxu0 %v3332
        %3664 = vmatpush2.bf16.msra.mxu0 %v3331
        %3665 = vmatprep.subr.bf16.mxu0 %v3328
        %3666 = vmatpush2.bf16.msra.mxu0 %v3327
        %3667 = vmatprep.subr.bf16.mxu0 %v3324
        %3668 = vmatpush2.bf16.msra.mxu0 %v3323
        %3669 = vmatprep.subr.bf16.mxu0 %v3320
        %3670 = vmatpush2.bf16.msra.mxu0 %v3319
        %3671 = vmatprep.subr.bf16.mxu0 %v3316
        %3672 = vmatpush2.bf16.msra.mxu0 %v3315
        %3673 = vmatprep.subr.bf16.mxu0 %v3312
        %3674 = vmatpush2.bf16.msra.mxu0 %v3311
        %3675 = vmatprep.mubr.bf16.mxu0 %v2724
        %3676 = vmatmul.mubr.bf16.gmra.mxu0 %v2710
        %v3677 = vpop.f32.mrf.mxu0
        %v3678 = vadd.f32 0.0, %v3677
        %v3679 = vpop.f32.mrf.mxu0
        %v3680 = vadd.f32 0.0, %v3679
        %v3681 = vpop.f32.mrf.mxu0
        %v3682 = vpop.f32.mrf.mxu0
        %3683 = vdwg.mxu0
        %3684 = vmatprep.subr.bf16.mxu0 %v3372
        %3685 = vmatpush1.bf16.msra.mxu0 %v3371
        %3686 = vmatprep.subr.bf16.mxu0 %v3368
        %3687 = vmatpush1.bf16.msra.mxu0 %v3367
        %3688 = vmatprep.subr.bf16.mxu0 %v3364
        %3689 = vmatpush1.bf16.msra.mxu0 %v3363
        %3690 = vmatprep.subr.bf16.mxu0 %v3360
        %3691 = vmatpush1.bf16.msra.mxu0 %v3359
        %3692 = vmatprep.subr.bf16.mxu0 %v3356
        %3693 = vmatpush1.bf16.msra.mxu0 %v3355
        %3694 = vmatprep.subr.bf16.mxu0 %v3352
        %3695 = vmatpush1.bf16.msra.mxu0 %v3351
        %3696 = vmatprep.subr.bf16.mxu0 %v3348
        %3697 = vmatpush1.bf16.msra.mxu0 %v3347
        %3698 = vmatprep.subr.bf16.mxu0 %v3344
        %3699 = vmatpush1.bf16.msra.mxu0 %v3343
        %3700 = vmatprep.subr.bf16.mxu0 %v3404
        %3701 = vmatpush2.bf16.msra.mxu0 %v3403
        %3702 = vmatprep.subr.bf16.mxu0 %v3400
        %3703 = vmatpush2.bf16.msra.mxu0 %v3399
        %3704 = vmatprep.subr.bf16.mxu0 %v3396
        %3705 = vmatpush2.bf16.msra.mxu0 %v3395
        %3706 = vmatprep.subr.bf16.mxu0 %v3392
        %3707 = vmatpush2.bf16.msra.mxu0 %v3391
        %3708 = vmatprep.subr.bf16.mxu0 %v3388
        %3709 = vmatpush2.bf16.msra.mxu0 %v3387
        %3710 = vmatprep.subr.bf16.mxu0 %v3384
        %3711 = vmatpush2.bf16.msra.mxu0 %v3383
        %3712 = vmatprep.subr.bf16.mxu0 %v3380
        %3713 = vmatpush2.bf16.msra.mxu0 %v3379
        %3714 = vmatprep.subr.bf16.mxu0 %v3376
        %3715 = vmatpush2.bf16.msra.mxu0 %v3375
        %3716 = vmatprep.mubr.bf16.mxu0 %v2733
        %3717 = vmatmul.mubr.bf16.gmra.mxu0 %v2732
        %v3718 = vpop.f32.mrf.mxu0
        %v3719 = vadd.f32 %v3678, %v3718
        %v3720 = vpop.f32.mrf.mxu0
        %v3721 = vadd.f32 %v3680, %v3720
        %v3722 = vpop.f32.mrf.mxu0
        %v3723 = vpop.f32.mrf.mxu0
        %3724 = vdwg.mxu0
        %3725 = vmatprep.subr.bf16.mxu0 %v3436
        %3726 = vmatpush1.bf16.msra.mxu0 %v3435
        %3727 = vmatprep.subr.bf16.mxu0 %v3432
        %3728 = vmatpush1.bf16.msra.mxu0 %v3431
        %3729 = vmatprep.subr.bf16.mxu0 %v3428
        %3730 = vmatpush1.bf16.msra.mxu0 %v3427
        %3731 = vmatprep.subr.bf16.mxu0 %v3424
        %3732 = vmatpush1.bf16.msra.mxu0 %v3423
        %3733 = vmatprep.subr.bf16.mxu0 %v3420
        %3734 = vmatpush1.bf16.msra.mxu0 %v3419
        %3735 = vmatprep.subr.bf16.mxu0 %v3416
        %3736 = vmatpush1.bf16.msra.mxu0 %v3415
        %3737 = vmatprep.subr.bf16.mxu0 %v3412
        %3738 = vmatpush1.bf16.msra.mxu0 %v3411
        %3739 = vmatprep.subr.bf16.mxu0 %v3408
        %3740 = vmatpush1.bf16.msra.mxu0 %v3407
        %3741 = vmatprep.subr.bf16.mxu0 0
        %3742 = vmatpush2.bf16.msra.mxu0 0
        %3743 = vmatprep.subr.bf16.mxu0 0
        %3744 = vmatpush2.bf16.msra.mxu0 0
        %3745 = vmatprep.subr.bf16.mxu0 0
        %3746 = vmatpush2.bf16.msra.mxu0 0
        %3747 = vmatprep.subr.bf16.mxu0 %v3456
        %3748 = vmatpush2.bf16.msra.mxu0 %v3455
        %3749 = vmatprep.subr.bf16.mxu0 %v3452
        %3750 = vmatpush2.bf16.msra.mxu0 %v3451
        %3751 = vmatprep.subr.bf16.mxu0 %v3448
        %3752 = vmatpush2.bf16.msra.mxu0 %v3447
        %3753 = vmatprep.subr.bf16.mxu0 %v3444
        %3754 = vmatpush2.bf16.msra.mxu0 %v3443
        %3755 = vmatprep.subr.bf16.mxu0 %v3440
        %3756 = vmatpush2.bf16.msra.mxu0 %v3439
        %3757 = vmatprep.mubr.bf16.mxu0 %v3641
        %3758 = vmatmul.mubr.bf16.gmra.mxu0 %v2717
        %v3759 = vpop.f32.mrf.mxu0
        %v3760 = vadd.f32 %v3719, %v3759
        %v3761 = vpop.f32.mrf.mxu0
        %v3762 = vadd.f32 %v3721, %v3761
        %v3763 = vpop.f32.mrf.mxu0
        %v3764 = vpop.f32.mrf.mxu0
        %3765 = vdwg.mxu0
        %3766 = vmatprep.subr.bf16.mxu0 %v3310
        %3767 = vmatpush1.bf16.msra.mxu0 %v3309
        %3768 = vmatprep.subr.bf16.mxu0 %v3306
        %3769 = vmatpush1.bf16.msra.mxu0 %v3305
        %3770 = vmatprep.subr.bf16.mxu0 %v3302
        %3771 = vmatpush1.bf16.msra.mxu0 %v3301
        %3772 = vmatprep.subr.bf16.mxu0 %v3298
        %3773 = vmatpush1.bf16.msra.mxu0 %v3297
        %3774 = vmatprep.subr.bf16.mxu0 %v3294
        %3775 = vmatpush1.bf16.msra.mxu0 %v3293
        %3776 = vmatprep.subr.bf16.mxu0 %v3290
        %3777 = vmatpush1.bf16.msra.mxu0 %v3289
        %3778 = vmatprep.subr.bf16.mxu0 %v3286
        %3779 = vmatpush1.bf16.msra.mxu0 %v3285
        %3780 = vmatprep.subr.bf16.mxu0 %v3282
        %3781 = vmatpush1.bf16.msra.mxu0 %v3281
        %3782 = vmatprep.subr.bf16.mxu0 %v3342
        %3783 = vmatpush2.bf16.msra.mxu0 %v3341
        %3784 = vmatprep.subr.bf16.mxu0 %v3338
        %3785 = vmatpush2.bf16.msra.mxu0 %v3337
        %3786 = vmatprep.subr.bf16.mxu0 %v3334
        %3787 = vmatpush2.bf16.msra.mxu0 %v3333
        %3788 = vmatprep.subr.bf16.mxu0 %v3330
        %3789 = vmatpush2.bf16.msra.mxu0 %v3329
        %3790 = vmatprep.subr.bf16.mxu0 %v3326
        %3791 = vmatpush2.bf16.msra.mxu0 %v3325
        %3792 = vmatprep.subr.bf16.mxu0 %v3322
        %3793 = vmatpush2.bf16.msra.mxu0 %v3321
        %3794 = vmatprep.subr.bf16.mxu0 %v3318
        %3795 = vmatpush2.bf16.msra.mxu0 %v3317
        %3796 = vmatprep.subr.bf16.mxu0 %v3314
        %3797 = vmatpush2.bf16.msra.mxu0 %v3313
        %3798 = vmatprep.mubr.bf16.mxu0 %v2724
        %3799 = vmatmul.mubr.bf16.gmra.mxu0 %v2710
        %v3800 = vpop.f32.mrf.mxu0
        %v3801 = vadd.f32 0.0, %v3800
        %v3802 = vpop.f32.mrf.mxu0
        %v3803 = vadd.f32 0.0, %v3802
        %v3804 = vpop.f32.mrf.mxu0
        %v3805 = vpop.f32.mrf.mxu0
        %3806 = vdwg.mxu0
        %3807 = vmatprep.subr.bf16.mxu0 %v3374
        %3808 = vmatpush1.bf16.msra.mxu0 %v3373
        %3809 = vmatprep.subr.bf16.mxu0 %v3370
        %3810 = vmatpush1.bf16.msra.mxu0 %v3369
        %3811 = vmatprep.subr.bf16.mxu0 %v3366
        %3812 = vmatpush1.bf16.msra.mxu0 %v3365
        %3813 = vmatprep.subr.bf16.mxu0 %v3362
        %3814 = vmatpush1.bf16.msra.mxu0 %v3361
        %3815 = vmatprep.subr.bf16.mxu0 %v3358
        %3816 = vmatpush1.bf16.msra.mxu0 %v3357
        %3817 = vmatprep.subr.bf16.mxu0 %v3354
        %3818 = vmatpush1.bf16.msra.mxu0 %v3353
        %3819 = vmatprep.subr.bf16.mxu0 %v3350
        %3820 = vmatpush1.bf16.msra.mxu0 %v3349
        %3821 = vmatprep.subr.bf16.mxu0 %v3346
        %3822 = vmatpush1.bf16.msra.mxu0 %v3345
        %3823 = vmatprep.subr.bf16.mxu0 %v3406
        %3824 = vmatpush2.bf16.msra.mxu0 %v3405
        %3825 = vmatprep.subr.bf16.mxu0 %v3402
        %3826 = vmatpush2.bf16.msra.mxu0 %v3401
        %3827 = vmatprep.subr.bf16.mxu0 %v3398
        %3828 = vmatpush2.bf16.msra.mxu0 %v3397
        %3829 = vmatprep.subr.bf16.mxu0 %v3394
        %3830 = vmatpush2.bf16.msra.mxu0 %v3393
        %3831 = vmatprep.subr.bf16.mxu0 %v3390
        %3832 = vmatpush2.bf16.msra.mxu0 %v3389
        %3833 = vmatprep.subr.bf16.mxu0 %v3386
        %3834 = vmatpush2.bf16.msra.mxu0 %v3385
        %3835 = vmatprep.subr.bf16.mxu0 %v3382
        %3836 = vmatpush2.bf16.msra.mxu0 %v3381
        %3837 = vmatprep.subr.bf16.mxu0 %v3378
        %3838 = vmatpush2.bf16.msra.mxu0 %v3377
        %3839 = vmatprep.mubr.bf16.mxu0 %v2733
        %3840 = vmatmul.mubr.bf16.gmra.mxu0 %v2732
        %v3841 = vpop.f32.mrf.mxu0
        %v3842 = vadd.f32 %v3801, %v3841
        %v3843 = vpop.f32.mrf.mxu0
        %v3844 = vadd.f32 %v3803, %v3843
        %v3845 = vpop.f32.mrf.mxu0
        %v3846 = vpop.f32.mrf.mxu0
        %3847 = vdwg.mxu0
        %3848 = vmatprep.subr.bf16.mxu0 %v3438
        %3849 = vmatpush1.bf16.msra.mxu0 %v3437
        %3850 = vmatprep.subr.bf16.mxu0 %v3434
        %3851 = vmatpush1.bf16.msra.mxu0 %v3433
        %3852 = vmatprep.subr.bf16.mxu0 %v3430
        %3853 = vmatpush1.bf16.msra.mxu0 %v3429
        %3854 = vmatprep.subr.bf16.mxu0 %v3426
        %3855 = vmatpush1.bf16.msra.mxu0 %v3425
        %3856 = vmatprep.subr.bf16.mxu0 %v3422
        %3857 = vmatpush1.bf16.msra.mxu0 %v3421
        %3858 = vmatprep.subr.bf16.mxu0 %v3418
        %3859 = vmatpush1.bf16.msra.mxu0 %v3417
        %3860 = vmatprep.subr.bf16.mxu0 %v3414
        %3861 = vmatpush1.bf16.msra.mxu0 %v3413
        %3862 = vmatprep.subr.bf16.mxu0 %v3410
        %3863 = vmatpush1.bf16.msra.mxu0 %v3409
        %3864 = vmatprep.subr.bf16.mxu0 0
        %3865 = vmatpush2.bf16.msra.mxu0 0
        %3866 = vmatprep.subr.bf16.mxu0 0
        %3867 = vmatpush2.bf16.msra.mxu0 0
        %3868 = vmatprep.subr.bf16.mxu0 0
        %3869 = vmatpush2.bf16.msra.mxu0 0
        %3870 = vmatprep.subr.bf16.mxu0 %v3458
        %3871 = vmatpush2.bf16.msra.mxu0 %v3457
        %3872 = vmatprep.subr.bf16.mxu0 %v3454
        %3873 = vmatpush2.bf16.msra.mxu0 %v3453
        %3874 = vmatprep.subr.bf16.mxu0 %v3450
        %3875 = vmatpush2.bf16.msra.mxu0 %v3449
        %3876 = vmatprep.subr.bf16.mxu0 %v3446
        %3877 = vmatpush2.bf16.msra.mxu0 %v3445
        %3878 = vmatprep.subr.bf16.mxu0 %v3442
        %3879 = vmatpush2.bf16.msra.mxu0 %v3441
        %3880 = vmatprep.mubr.bf16.mxu0 %v3641
        %3881 = vmatmul.mubr.bf16.gmra.mxu0 %v2717
        %v3882 = vpop.f32.mrf.mxu0
        %v3883 = vadd.f32 %v3842, %v3882
        %v3884 = vpop.f32.mrf.mxu0
        %v3885 = vadd.f32 %v3844, %v3884
        %v3886 = vpop.f32.mrf.mxu0
        %v3887 = vpop.f32.mrf.mxu0
        %3888 = vdwg.mxu0
        %v3893 = vcombine.low %v3760, %v3762
        %v3894 = vcombine.low %v3883, %v3885
        %v3896 = vunpack.c.l.s4 1983009808
        %v3897 = vunpack.c.0.s8 %v3896
        %v3898 = vlaneseq
        %v3899 = vshrl.u32 %v3898, 7
        %v3900 = vsub.s32 %v3897, %v3899
        %v3901 = vrot.slane %v3893, %v3900
        %v3903 = vunpack.c.l.s4 1983009808
        %v3904 = vunpack.c.0.s8 %v3903
        %v3905 = vlaneseq
        %v3906 = vshrl.u32 %v3905, 7
        %v3907 = vsub.s32 %v3904, %v3906
        %v3908 = vrot.slane %v3894, %v3907
        %v3909 = vcombine.low %v3901, %v3908
        %v3911 = vadd.f32 %v2504, %v3909
        %vm3912 = vcmask 1041408
        %vm3913 = vcmask 1043458
        %vm3914 = vmor %vm3913, %vm3912
        %vm3915 = vcmask 1045508
        %vm3916 = vmor %vm3915, %vm3914
        %vm3917 = vcmask 949254
        %vm3918 = vmor %vm3917, %vm3916
        %3919 = vst.msk [vmem:[#allocation2] sm:$0xff] %vm3918, %v3911
        %p3920 = scmp.eq.s32.totalorder %s31, 3
        // Predicated region
        $region101: #{a_call__.3} parent=95 // pred_check
          %p3921 = pneg %p3920
        $region102: #{a_call__.3} parent=95 // pred_check_branch
          %3923 = sbr.rel (%p3921) target = $region104
        $region103: #{a_call__.3} parent=95 // pred_region
          %v3924 = vld [vmem:[#allocation2] sm:$0xff]
          %v3925 = vld [vmem:[%s13] sm:$0xff]
          %v3926 = vld [vmem:[%s13 + $0x8] sm:$0xff]
          %v3927 = vld [vmem:[%s13 + $0x10] sm:$0xff]
          %v3928 = vld [vmem:[%s13 + $0x18] sm:$0xff]
          %v3929 = vld [vmem:[%s13 + $0x20] sm:$0xff]
          %v3930 = vld [vmem:[%s13 + $0x28] sm:$0xff]
          %v3931 = vld [vmem:[%s13 + $0x30] sm:$0xff]
          %v3932 = vld [vmem:[%s13 + $0x38] sm:$0xff]
          %v3933 = vld [vmem:[%s13 + $0x40] sm:$0xff]
          %v3934 = vld [vmem:[%s13 + $0x48] sm:$0xff]
          %v3935 = vld [vmem:[%s13 + $0x50] sm:$0xff]
          %v3936 = vld [vmem:[%s13 + $0x58] sm:$0xff]
          %v3937 = vld [vmem:[%s13 + $0x60] sm:$0xff]
          %v3938 = vld [vmem:[%s13 + $0x68] sm:$0xff]
          %v3939 = vld [vmem:[%s13 + $0x70] sm:$0xff]
          %v3940 = vld [vmem:[%s13 + $0x78] sm:$0xff]
          %v3941 = vld [vmem:[%s13 + $0x80] sm:$0xff]
          %v3942 = vld [vmem:[%s13 + $0x88] sm:$0xff]
          %v3943 = vld [vmem:[%s13 + $0x90] sm:$0xff]
          %v3944 = vld [vmem:[%s13 + $0x98] sm:$0xff]
          %v3945 = vld [vmem:[%s13 + $0xa0] sm:$0xff]
          %v3946 = vld [vmem:[%s13 + $0xa8] sm:$0xff]
          %v3947 = vld [vmem:[%s13 + $0xb0] sm:$0xff]
          %v3948 = vld [vmem:[%s13 + $0xb8] sm:$0xff]
          %v3949 = vld [vmem:[%s13 + $0xc0] sm:$0xff]
          %v3950 = vld [vmem:[%s13 + $0xc8] sm:$0xff]
          %v3951 = vld [vmem:[%s13 + $0xd0] sm:$0xff]
          %v3952 = vld [vmem:[%s13 + $0xd8] sm:$0xff]
          %v3953 = vld [vmem:[%s13 + $0xe0] sm:$0xff]
          %v3954 = vld [vmem:[%s13 + $0xe8] sm:$0xff]
          %v3955 = vld [vmem:[%s13 + $0xf0] sm:$0xff]
          %v3956 = vld [vmem:[%s13 + $0xf8] sm:$0xff]
          %v3957 = vld [vmem:[%s13 + $0x100] sm:$0xff]
          %v3958 = vld [vmem:[%s13 + $0x108] sm:$0xff]
          %v3959 = vld [vmem:[%s13 + $0x110] sm:$0xff]
          %v3960 = vld [vmem:[%s13 + $0x118] sm:$0xff]
          %v3961 = vld [vmem:[%s13 + $0x120] sm:$0xff]
          %v3962 = vld [vmem:[%s13 + $0x128] sm:$0xff]
          %v3963 = vld [vmem:[%s13 + $0x130] sm:$0xff]
          %v3964 = vld [vmem:[%s13 + $0x138] sm:$0xff]
          %v3965 = vld [vmem:[%s13 + $0x140] sm:$0xff]
          %v3966 = vld [vmem:[%s13 + $0x148] sm:$0xff]
          %v3967 = vld [vmem:[%s13 + $0x150] sm:$0xff]
          %v3968 = vld [vmem:[%s13 + $0x158] sm:$0xff]
          %v3969 = vld [vmem:[%s13 + $0x160] sm:$0xff]
          %v3970 = vld [vmem:[%s13 + $0x168] sm:$0xff]
          %v3971 = vld [vmem:[%s13 + $0x170] sm:$0xff]
          %v3972 = vld [vmem:[%s13 + $0x178] sm:$0xff]
          %v3973 = vld [vmem:[%s13 + $0x180] sm:$0xff]
          %v3974 = vld [vmem:[%s13 + $0x188] sm:$0xff]
          %v3975 = vld [vmem:[%s13 + $0x190] sm:$0xff]
          %v3976 = vld [vmem:[%s13 + $0x198] sm:$0xff]
          %v3977 = vld [vmem:[%s13 + $0x1a0] sm:$0xff]
          %v3978 = vld [vmem:[%s13 + $0x1a8] sm:$0xff]
          %v3979 = vld [vmem:[%s13 + $0x1b0] sm:$0xff]
          %v3980 = vld [vmem:[%s13 + $0x1b8] sm:$0xff]
          %v3981 = vld [vmem:[%s13 + $0x1c0] sm:$0xff]
          %v3982 = vld [vmem:[%s13 + $0x1c8] sm:$0xff]
          %v3983 = vld [vmem:[%s13 + $0x1d0] sm:$0xff]
          %v3984 = vld [vmem:[%s13 + $0x1d8] sm:$0xff]
          %v3985 = vld [vmem:[%s13 + $0x1e0] sm:$0xff]
          %v3986 = vld [vmem:[%s13 + $0x1e8] sm:$0xff]
          %v3987 = vld [vmem:[%s13 + $0x1f0] sm:$0xf]
          %v3989 = vcombine.high %v3924, %v3924
          %v3991 = vunpack.c.l.s4 1983009808
          %v3992 = vunpack.c.0.s8 %v3991
          %v3993 = vlaneseq
          %v3994 = vshrl.u32 %v3993, 7
          %v3995 = vsub.s32 %v3992, %v3994
          %v3996 = vrot.slane %v3924, %v3995
          %v3998 = vunpack.c.l.s4 1983009808
          %v3999 = vunpack.c.0.s8 %v3998
          %v4000 = vlaneseq
          %v4001 = vshrl.u32 %v4000, 7
          %v4002 = vsub.s32 %v3999, %v4001
          %v4003 = vrot.slane %v3989, %v4002
          %v4004 = vcombine.high %v3996, %v3996
          %v4005 = vcombine.high %v4003, %v4003
          %vm4009 = vcmask 949248
          %v4010 = vsel %vm4009, %v4005, 0
          %vm4012 = vcmask 1043456
          %v4014 = vsel %vm4012, %v3987, 0
          %4016 = vmatprep.subr.mxu0 0.0
          %4017 = vmatpush1.msra.mxu0 %v3940
          %4018 = vmatprep.subr.mxu0 0.0
          %4019 = vmatpush1.msra.mxu0 %v3939
          %4020 = vmatprep.subr.mxu0 0.0
          %4021 = vmatpush1.msra.mxu0 %v3938
          %4022 = vmatprep.subr.mxu0 0.0
          %4023 = vmatpush1.msra.mxu0 %v3937
          %4024 = vmatprep.subr.mxu0 0.0
          %4025 = vmatpush1.msra.mxu0 %v3936
          %4026 = vmatprep.subr.mxu0 0.0
          %4027 = vmatpush1.msra.mxu0 %v3935
          %4028 = vmatprep.subr.mxu0 0.0
          %4029 = vmatpush1.msra.mxu0 %v3934
          %4030 = vmatprep.subr.mxu0 0.0
          %4031 = vmatpush1.msra.mxu0 %v3933
          %4032 = vmatprep.subr.mxu0 0.0
          %4033 = vmatpush1.msra.mxu0 %v3932
          %4034 = vmatprep.subr.mxu0 0.0
          %4035 = vmatpush1.msra.mxu0 %v3931
          %4036 = vmatprep.subr.mxu0 0.0
          %4037 = vmatpush1.msra.mxu0 %v3930
          %4038 = vmatprep.subr.mxu0 0.0
          %4039 = vmatpush1.msra.mxu0 %v3929
          %4040 = vmatprep.subr.mxu0 0.0
          %4041 = vmatpush1.msra.mxu0 %v3928
          %4042 = vmatprep.subr.mxu0 0.0
          %4043 = vmatpush1.msra.mxu0 %v3927
          %4044 = vmatprep.subr.mxu0 0.0
          %4045 = vmatpush1.msra.mxu0 %v3926
          %4046 = vmatprep.subr.mxu0 0.0
          %4047 = vmatpush1.msra.mxu0 %v3925
          %4048 = vmatprep.subr.mxu0 0.0
          %4049 = vmatpush2.msra.mxu0 %v3956
          %4050 = vmatprep.subr.mxu0 0.0
          %4051 = vmatpush2.msra.mxu0 %v3955
          %4052 = vmatprep.subr.mxu0 0.0
          %4053 = vmatpush2.msra.mxu0 %v3954
          %4054 = vmatprep.subr.mxu0 0.0
          %4055 = vmatpush2.msra.mxu0 %v3953
          %4056 = vmatprep.subr.mxu0 0.0
          %4057 = vmatpush2.msra.mxu0 %v3952
          %4058 = vmatprep.subr.mxu0 0.0
          %4059 = vmatpush2.msra.mxu0 %v3951
          %4060 = vmatprep.subr.mxu0 0.0
          %4061 = vmatpush2.msra.mxu0 %v3950
          %4062 = vmatprep.subr.mxu0 0.0
          %4063 = vmatpush2.msra.mxu0 %v3949
          %4064 = vmatprep.subr.mxu0 0.0
          %4065 = vmatpush2.msra.mxu0 %v3948
          %4066 = vmatprep.subr.mxu0 0.0
          %4067 = vmatpush2.msra.mxu0 %v3947
          %4068 = vmatprep.subr.mxu0 0.0
          %4069 = vmatpush2.msra.mxu0 %v3946
          %4070 = vmatprep.subr.mxu0 0.0
          %4071 = vmatpush2.msra.mxu0 %v3945
          %4072 = vmatprep.subr.mxu0 0.0
          %4073 = vmatpush2.msra.mxu0 %v3944
          %4074 = vmatprep.subr.mxu0 0.0
          %4075 = vmatpush2.msra.mxu0 %v3943
          %4076 = vmatprep.subr.mxu0 0.0
          %4077 = vmatpush2.msra.mxu0 %v3942
          %4078 = vmatprep.subr.mxu0 0.0
          %4079 = vmatpush2.msra.mxu0 %v3941
          %4080 = vmatprep.mubr.f32.mxu0 %v4004
          %4081 = vmatmul.mubr.f32.gmra.mxu0 %v3996
          %v4082 = vpop.f32.mrf.mxu0
          %v4083 = vadd.f32 0.0, %v4082
          %v4084 = vpop.f32.mrf.mxu0
          %4085 = vdwg.mxu0
          %4086 = vmatprep.subr.mxu0 0.0
          %4087 = vmatpush1.msra.mxu0 %v3972
          %4088 = vmatprep.subr.mxu0 0.0
          %4089 = vmatpush1.msra.mxu0 %v3971
          %4090 = vmatprep.subr.mxu0 0.0
          %4091 = vmatpush1.msra.mxu0 %v3970
          %4092 = vmatprep.subr.mxu0 0.0
          %4093 = vmatpush1.msra.mxu0 %v3969
          %4094 = vmatprep.subr.mxu0 0.0
          %4095 = vmatpush1.msra.mxu0 %v3968
          %4096 = vmatprep.subr.mxu0 0.0
          %4097 = vmatpush1.msra.mxu0 %v3967
          %4098 = vmatprep.subr.mxu0 0.0
          %4099 = vmatpush1.msra.mxu0 %v3966
          %4100 = vmatprep.subr.mxu0 0.0
          %4101 = vmatpush1.msra.mxu0 %v3965
          %4102 = vmatprep.subr.mxu0 0.0
          %4103 = vmatpush1.msra.mxu0 %v3964
          %4104 = vmatprep.subr.mxu0 0.0
          %4105 = vmatpush1.msra.mxu0 %v3963
          %4106 = vmatprep.subr.mxu0 0.0
          %4107 = vmatpush1.msra.mxu0 %v3962
          %4108 = vmatprep.subr.mxu0 0.0
          %4109 = vmatpush1.msra.mxu0 %v3961
          %4110 = vmatprep.subr.mxu0 0.0
          %4111 = vmatpush1.msra.mxu0 %v3960
          %4112 = vmatprep.subr.mxu0 0.0
          %4113 = vmatpush1.msra.mxu0 %v3959
          %4114 = vmatprep.subr.mxu0 0.0
          %4115 = vmatpush1.msra.mxu0 %v3958
          %4116 = vmatprep.subr.mxu0 0.0
          %4117 = vmatpush1.msra.mxu0 %v3957
          %4118 = vmatprep.subr.mxu0 0.0
          %4119 = vmatpush2.msra.mxu0 0.0
          %4120 = vmatprep.subr.mxu0 0.0
          %4121 = vmatpush2.msra.mxu0 %v4014
          %4122 = vmatprep.subr.mxu0 0.0
          %4123 = vmatpush2.msra.mxu0 %v3986
          %4124 = vmatprep.subr.mxu0 0.0
          %4125 = vmatpush2.msra.mxu0 %v3985
          %4126 = vmatprep.subr.mxu0 0.0
          %4127 = vmatpush2.msra.mxu0 %v3984
          %4128 = vmatprep.subr.mxu0 0.0
          %4129 = vmatpush2.msra.mxu0 %v3983
          %4130 = vmatprep.subr.mxu0 0.0
          %4131 = vmatpush2.msra.mxu0 %v3982
          %4132 = vmatprep.subr.mxu0 0.0
          %4133 = vmatpush2.msra.mxu0 %v3981
          %4134 = vmatprep.subr.mxu0 0.0
          %4135 = vmatpush2.msra.mxu0 %v3980
          %4136 = vmatprep.subr.mxu0 0.0
          %4137 = vmatpush2.msra.mxu0 %v3979
          %4138 = vmatprep.subr.mxu0 0.0
          %4139 = vmatpush2.msra.mxu0 %v3978
          %4140 = vmatprep.subr.mxu0 0.0
          %4141 = vmatpush2.msra.mxu0 %v3977
          %4142 = vmatprep.subr.mxu0 0.0
          %4143 = vmatpush2.msra.mxu0 %v3976
          %4144 = vmatprep.subr.mxu0 0.0
          %4145 = vmatpush2.msra.mxu0 %v3975
          %4146 = vmatprep.subr.mxu0 0.0
          %4147 = vmatpush2.msra.mxu0 %v3974
          %4148 = vmatprep.subr.mxu0 0.0
          %4149 = vmatpush2.msra.mxu0 %v3973
          %4150 = vmatprep.mubr.f32.mxu0 %v4010
          %4151 = vmatmul.mubr.f32.gmra.mxu0 %v4003
          %v4152 = vpop.f32.mrf.mxu0
          %v4153 = vadd.f32 %v4083, %v4152
          %v4154 = vpop.f32.mrf.mxu0
          %4155 = vdwg.mxu0
          %v4156 = vmul.f32 %v4153, 0.008
          %v4157 = vld [vmem:[%s14] sm:$0xff]
          %v4158 = vld [vmem:[%s14 + $0x8] sm:$0xff]
          %v4161 = vcombine.high %v4157, %v4157
          %v4162 = vcombine.high %v4158, %v4158
          %vm4163 = vcmask 31744
          %v4165 = vsel %vm4163, %v4156, 0
          %v4167 = vsel %vm4012, %v4157, 0
          %v4169 = vsel %vm4012, %v4161, 0
          %v4171 = vsel %vm4012, %v4158, 0
          %v4173 = vsel %vm4012, %v4162, 0
          %4175 = vmatprep.subr.mxu0 0.0
          %4176 = vmatpush1.msra.mxu0 0.0
          %4177 = vmatprep.subr.mxu0 0.0
          %4178 = vmatpush1.msra.mxu0 0.0
          %4179 = vmatprep.subr.mxu0 0.0
          %4180 = vmatpush1.msra.mxu0 0.0
          %4181 = vmatprep.subr.mxu0 0.0
          %4182 = vmatpush1.msra.mxu0 0.0
          %4183 = vmatprep.subr.mxu0 0.0
          %4184 = vmatpush1.msra.mxu0 0.0
          %4185 = vmatprep.subr.mxu0 0.0
          %4186 = vmatpush1.msra.mxu0 0.0
          %4187 = vmatprep.subr.mxu0 0.0
          %4188 = vmatpush1.msra.mxu0 0.0
          %4189 = vmatprep.subr.mxu0 0.0
          %4190 = vmatpush1.msra.mxu0 0.0
          %4191 = vmatprep.subr.mxu0 0.0
          %4192 = vmatpush1.msra.mxu0 0.0
          %4193 = vmatprep.subr.mxu0 0.0
          %4194 = vmatpush1.msra.mxu0 0.0
          %4195 = vmatprep.subr.mxu0 0.0
          %4196 = vmatpush1.msra.mxu0 0.0
          %4197 = vmatprep.subr.mxu0 0.0
          %4198 = vmatpush1.msra.mxu0 0.0
          %4199 = vmatprep.subr.mxu0 0.0
          %4200 = vmatpush1.msra.mxu0 0.0
          %4201 = vmatprep.subr.mxu0 0.0
          %4202 = vmatpush1.msra.mxu0 0.0
          %4203 = vmatprep.subr.mxu0 0.0
          %4204 = vmatpush1.msra.mxu0 0.0
          %4205 = vmatprep.subr.mxu0 %v4169
          %4206 = vmatpush1.msra.mxu0 %v4167
          %4207 = vmatprep.subr.mxu0 0.0
          %4208 = vmatpush2.msra.mxu0 0.0
          %4209 = vmatprep.subr.mxu0 0.0
          %4210 = vmatpush2.msra.mxu0 0.0
          %4211 = vmatprep.subr.mxu0 0.0
          %4212 = vmatpush2.msra.mxu0 0.0
          %4213 = vmatprep.subr.mxu0 0.0
          %4214 = vmatpush2.msra.mxu0 0.0
          %4215 = vmatprep.subr.mxu0 0.0
          %4216 = vmatpush2.msra.mxu0 0.0
          %4217 = vmatprep.subr.mxu0 0.0
          %4218 = vmatpush2.msra.mxu0 0.0
          %4219 = vmatprep.subr.mxu0 0.0
          %4220 = vmatpush2.msra.mxu0 0.0
          %4221 = vmatprep.subr.mxu0 0.0
          %4222 = vmatpush2.msra.mxu0 0.0
          %4223 = vmatprep.subr.mxu0 0.0
          %4224 = vmatpush2.msra.mxu0 0.0
          %4225 = vmatprep.subr.mxu0 0.0
          %4226 = vmatpush2.msra.mxu0 0.0
          %4227 = vmatprep.subr.mxu0 0.0
          %4228 = vmatpush2.msra.mxu0 0.0
          %4229 = vmatprep.subr.mxu0 0.0
          %4230 = vmatpush2.msra.mxu0 0.0
          %4231 = vmatprep.subr.mxu0 0.0
          %4232 = vmatpush2.msra.mxu0 0.0
          %4233 = vmatprep.subr.mxu0 0.0
          %4234 = vmatpush2.msra.mxu0 0.0
          %4235 = vmatprep.subr.mxu0 0.0
          %4236 = vmatpush2.msra.mxu0 0.0
          %4237 = vmatprep.subr.mxu0 0.0
          %4238 = vmatpush2.msra.mxu0 0.0
          %4239 = vmatprep.mubr.f32.mxu0 0.0
          %4240 = vmatmul.mubr.f32.gmra.mxu0 %v4165
          %v4241 = vpop.f32.mrf.mxu0
          %v4242 = vadd.f32 0.0, %v4241
          %v4243 = vpop.f32.mrf.mxu0
          %v4244 = vadd.f32 0.0, %v4243
          %4245 = vdwg.mxu0
          %4246 = vmatprep.subr.mxu0 0.0
          %4247 = vmatpush1.msra.mxu0 0.0
          %4248 = vmatprep.subr.mxu0 0.0
          %4249 = vmatpush1.msra.mxu0 0.0
          %4250 = vmatprep.subr.mxu0 0.0
          %4251 = vmatpush1.msra.mxu0 0.0
          %4252 = vmatprep.subr.mxu0 0.0
          %4253 = vmatpush1.msra.mxu0 0.0
          %4254 = vmatprep.subr.mxu0 0.0
          %4255 = vmatpush1.msra.mxu0 0.0
          %4256 = vmatprep.subr.mxu0 0.0
          %4257 = vmatpush1.msra.mxu0 0.0
          %4258 = vmatprep.subr.mxu0 0.0
          %4259 = vmatpush1.msra.mxu0 0.0
          %4260 = vmatprep.subr.mxu0 0.0
          %4261 = vmatpush1.msra.mxu0 0.0
          %4262 = vmatprep.subr.mxu0 0.0
          %4263 = vmatpush1.msra.mxu0 0.0
          %4264 = vmatprep.subr.mxu0 0.0
          %4265 = vmatpush1.msra.mxu0 0.0
          %4266 = vmatprep.subr.mxu0 0.0
          %4267 = vmatpush1.msra.mxu0 0.0
          %4268 = vmatprep.subr.mxu0 0.0
          %4269 = vmatpush1.msra.mxu0 0.0
          %4270 = vmatprep.subr.mxu0 0.0
          %4271 = vmatpush1.msra.mxu0 0.0
          %4272 = vmatprep.subr.mxu0 0.0
          %4273 = vmatpush1.msra.mxu0 0.0
          %4274 = vmatprep.subr.mxu0 0.0
          %4275 = vmatpush1.msra.mxu0 0.0
          %4276 = vmatprep.subr.mxu0 %v4173
          %4277 = vmatpush1.msra.mxu0 %v4171
          %4278 = vmatprep.subr.mxu0 0.0
          %4279 = vmatpush2.msra.mxu0 0.0
          %4280 = vmatprep.subr.mxu0 0.0
          %4281 = vmatpush2.msra.mxu0 0.0
          %4282 = vmatprep.subr.mxu0 0.0
          %4283 = vmatpush2.msra.mxu0 0.0
          %4284 = vmatprep.subr.mxu0 0.0
          %4285 = vmatpush2.msra.mxu0 0.0
          %4286 = vmatprep.subr.mxu0 0.0
          %4287 = vmatpush2.msra.mxu0 0.0
          %4288 = vmatprep.subr.mxu0 0.0
          %4289 = vmatpush2.msra.mxu0 0.0
          %4290 = vmatprep.subr.mxu0 0.0
          %4291 = vmatpush2.msra.mxu0 0.0
          %4292 = vmatprep.subr.mxu0 0.0
          %4293 = vmatpush2.msra.mxu0 0.0
          %4294 = vmatprep.subr.mxu0 0.0
          %4295 = vmatpush2.msra.mxu0 0.0
          %4296 = vmatprep.subr.mxu0 0.0
          %4297 = vmatpush2.msra.mxu0 0.0
          %4298 = vmatprep.subr.mxu0 0.0
          %4299 = vmatpush2.msra.mxu0 0.0
          %4300 = vmatprep.subr.mxu0 0.0
          %4301 = vmatpush2.msra.mxu0 0.0
          %4302 = vmatprep.subr.mxu0 0.0
          %4303 = vmatpush2.msra.mxu0 0.0
          %4304 = vmatprep.subr.mxu0 0.0
          %4305 = vmatpush2.msra.mxu0 0.0
          %4306 = vmatprep.subr.mxu0 0.0
          %4307 = vmatpush2.msra.mxu0 0.0
          %4308 = vmatprep.subr.mxu0 0.0
          %4309 = vmatpush2.msra.mxu0 0.0
          %4310 = vmatprep.mubr.f32.mxu0 0.0
          %4311 = vmatmul.mubr.f32.gmra.mxu0 %v4165
          %v4312 = vpop.f32.mrf.mxu0
          %v4313 = vadd.f32 0.0, %v4312
          %v4314 = vpop.f32.mrf.mxu0
          %v4315 = vadd.f32 0.0, %v4314
          %4316 = vdwg.mxu0
          %v4321 = vcombine.low %v4242, %v4244
          %v4322 = vcombine.low %v4313, %v4315
          %v4324 = vunpack.c.l.s4 1983009808
          %v4325 = vunpack.c.0.s8 %v4324
          %v4326 = vlaneseq
          %v4327 = vshrl.u32 %v4326, 7
          %v4328 = vsub.s32 %v4325, %v4327
          %v4329 = vrot.slane %v4321, %v4328
          %v4331 = vunpack.c.l.s4 1983009808
          %v4332 = vunpack.c.0.s8 %v4331
          %v4333 = vlaneseq
          %v4334 = vshrl.u32 %v4333, 7
          %v4335 = vsub.s32 %v4332, %v4334
          %v4336 = vrot.slane %v4322, %v4335
          %v4337 = vcombine.low %v4329, %v4336
          %v4339 = vsub.f32 %v3924, %v4337
          %v4340 = vmul.f32 %v4339, %v4339
          %v4342 = vcombine.high %v4340, %v4340
          %v4344 = vunpack.c.l.s4 1983009808
          %v4345 = vunpack.c.0.s8 %v4344
          %v4346 = vlaneseq
          %v4347 = vshrl.u32 %v4346, 7
          %v4348 = vsub.s32 %v4345, %v4347
          %v4349 = vrot.slane %v4340, %v4348
          %v4351 = vunpack.c.l.s4 1983009808
          %v4352 = vunpack.c.0.s8 %v4351
          %v4353 = vlaneseq
          %v4354 = vshrl.u32 %v4353, 7
          %v4355 = vsub.s32 %v4352, %v4354
          %v4356 = vrot.slane %v4342, %v4355
          %v4357 = vcombine.high %v4349, %v4349
          %v4358 = vcombine.high %v4356, %v4356
          %v4362 = vsel %vm4009, %v4358, 0
          %4364 = vmatprep.subr.mxu0 0.0
          %4365 = vmatpush1.msra.mxu0 %v3940
          %4366 = vmatprep.subr.mxu0 0.0
          %4367 = vmatpush1.msra.mxu0 %v3939
          %4368 = vmatprep.subr.mxu0 0.0
          %4369 = vmatpush1.msra.mxu0 %v3938
          %4370 = vmatprep.subr.mxu0 0.0
          %4371 = vmatpush1.msra.mxu0 %v3937
          %4372 = vmatprep.subr.mxu0 0.0
          %4373 = vmatpush1.msra.mxu0 %v3936
          %4374 = vmatprep.subr.mxu0 0.0
          %4375 = vmatpush1.msra.mxu0 %v3935
          %4376 = vmatprep.subr.mxu0 0.0
          %4377 = vmatpush1.msra.mxu0 %v3934
          %4378 = vmatprep.subr.mxu0 0.0
          %4379 = vmatpush1.msra.mxu0 %v3933
          %4380 = vmatprep.subr.mxu0 0.0
          %4381 = vmatpush1.msra.mxu0 %v3932
          %4382 = vmatprep.subr.mxu0 0.0
          %4383 = vmatpush1.msra.mxu0 %v3931
          %4384 = vmatprep.subr.mxu0 0.0
          %4385 = vmatpush1.msra.mxu0 %v3930
          %4386 = vmatprep.subr.mxu0 0.0
          %4387 = vmatpush1.msra.mxu0 %v3929
          %4388 = vmatprep.subr.mxu0 0.0
          %4389 = vmatpush1.msra.mxu0 %v3928
          %4390 = vmatprep.subr.mxu0 0.0
          %4391 = vmatpush1.msra.mxu0 %v3927
          %4392 = vmatprep.subr.mxu0 0.0
          %4393 = vmatpush1.msra.mxu0 %v3926
          %4394 = vmatprep.subr.mxu0 0.0
          %4395 = vmatpush1.msra.mxu0 %v3925
          %4396 = vmatprep.subr.mxu0 0.0
          %4397 = vmatpush2.msra.mxu0 %v3956
          %4398 = vmatprep.subr.mxu0 0.0
          %4399 = vmatpush2.msra.mxu0 %v3955
          %4400 = vmatprep.subr.mxu0 0.0
          %4401 = vmatpush2.msra.mxu0 %v3954
          %4402 = vmatprep.subr.mxu0 0.0
          %4403 = vmatpush2.msra.mxu0 %v3953
          %4404 = vmatprep.subr.mxu0 0.0
          %4405 = vmatpush2.msra.mxu0 %v3952
          %4406 = vmatprep.subr.mxu0 0.0
          %4407 = vmatpush2.msra.mxu0 %v3951
          %4408 = vmatprep.subr.mxu0 0.0
          %4409 = vmatpush2.msra.mxu0 %v3950
          %4410 = vmatprep.subr.mxu0 0.0
          %4411 = vmatpush2.msra.mxu0 %v3949
          %4412 = vmatprep.subr.mxu0 0.0
          %4413 = vmatpush2.msra.mxu0 %v3948
          %4414 = vmatprep.subr.mxu0 0.0
          %4415 = vmatpush2.msra.mxu0 %v3947
          %4416 = vmatprep.subr.mxu0 0.0
          %4417 = vmatpush2.msra.mxu0 %v3946
          %4418 = vmatprep.subr.mxu0 0.0
          %4419 = vmatpush2.msra.mxu0 %v3945
          %4420 = vmatprep.subr.mxu0 0.0
          %4421 = vmatpush2.msra.mxu0 %v3944
          %4422 = vmatprep.subr.mxu0 0.0
          %4423 = vmatpush2.msra.mxu0 %v3943
          %4424 = vmatprep.subr.mxu0 0.0
          %4425 = vmatpush2.msra.mxu0 %v3942
          %4426 = vmatprep.subr.mxu0 0.0
          %4427 = vmatpush2.msra.mxu0 %v3941
          %4428 = vmatprep.mubr.f32.mxu0 %v4357
          %4429 = vmatmul.mubr.f32.gmra.mxu0 %v4349
          %v4430 = vpop.f32.mrf.mxu0
          %v4431 = vadd.f32 0.0, %v4430
          %v4432 = vpop.f32.mrf.mxu0
          %4433 = vdwg.mxu0
          %4434 = vmatprep.subr.mxu0 0.0
          %4435 = vmatpush1.msra.mxu0 %v3972
          %4436 = vmatprep.subr.mxu0 0.0
          %4437 = vmatpush1.msra.mxu0 %v3971
          %4438 = vmatprep.subr.mxu0 0.0
          %4439 = vmatpush1.msra.mxu0 %v3970
          %4440 = vmatprep.subr.mxu0 0.0
          %4441 = vmatpush1.msra.mxu0 %v3969
          %4442 = vmatprep.subr.mxu0 0.0
          %4443 = vmatpush1.msra.mxu0 %v3968
          %4444 = vmatprep.subr.mxu0 0.0
          %4445 = vmatpush1.msra.mxu0 %v3967
          %4446 = vmatprep.subr.mxu0 0.0
          %4447 = vmatpush1.msra.mxu0 %v3966
          %4448 = vmatprep.subr.mxu0 0.0
          %4449 = vmatpush1.msra.mxu0 %v3965
          %4450 = vmatprep.subr.mxu0 0.0
          %4451 = vmatpush1.msra.mxu0 %v3964
          %4452 = vmatprep.subr.mxu0 0.0
          %4453 = vmatpush1.msra.mxu0 %v3963
          %4454 = vmatprep.subr.mxu0 0.0
          %4455 = vmatpush1.msra.mxu0 %v3962
          %4456 = vmatprep.subr.mxu0 0.0
          %4457 = vmatpush1.msra.mxu0 %v3961
          %4458 = vmatprep.subr.mxu0 0.0
          %4459 = vmatpush1.msra.mxu0 %v3960
          %4460 = vmatprep.subr.mxu0 0.0
          %4461 = vmatpush1.msra.mxu0 %v3959
          %4462 = vmatprep.subr.mxu0 0.0
          %4463 = vmatpush1.msra.mxu0 %v3958
          %4464 = vmatprep.subr.mxu0 0.0
          %4465 = vmatpush1.msra.mxu0 %v3957
          %4466 = vmatprep.subr.mxu0 0.0
          %4467 = vmatpush2.msra.mxu0 0.0
          %4468 = vmatprep.subr.mxu0 0.0
          %4469 = vmatpush2.msra.mxu0 %v4014
          %4470 = vmatprep.subr.mxu0 0.0
          %4471 = vmatpush2.msra.mxu0 %v3986
          %4472 = vmatprep.subr.mxu0 0.0
          %4473 = vmatpush2.msra.mxu0 %v3985
          %4474 = vmatprep.subr.mxu0 0.0
          %4475 = vmatpush2.msra.mxu0 %v3984
          %4476 = vmatprep.subr.mxu0 0.0
          %4477 = vmatpush2.msra.mxu0 %v3983
          %4478 = vmatprep.subr.mxu0 0.0
          %4479 = vmatpush2.msra.mxu0 %v3982
          %4480 = vmatprep.subr.mxu0 0.0
          %4481 = vmatpush2.msra.mxu0 %v3981
          %4482 = vmatprep.subr.mxu0 0.0
          %4483 = vmatpush2.msra.mxu0 %v3980
          %4484 = vmatprep.subr.mxu0 0.0
          %4485 = vmatpush2.msra.mxu0 %v3979
          %4486 = vmatprep.subr.mxu0 0.0
          %4487 = vmatpush2.msra.mxu0 %v3978
          %4488 = vmatprep.subr.mxu0 0.0
          %4489 = vmatpush2.msra.mxu0 %v3977
          %4490 = vmatprep.subr.mxu0 0.0
          %4491 = vmatpush2.msra.mxu0 %v3976
          %4492 = vmatprep.subr.mxu0 0.0
          %4493 = vmatpush2.msra.mxu0 %v3975
          %4494 = vmatprep.subr.mxu0 0.0
          %4495 = vmatpush2.msra.mxu0 %v3974
          %4496 = vmatprep.subr.mxu0 0.0
          %4497 = vmatpush2.msra.mxu0 %v3973
          %4498 = vmatprep.mubr.f32.mxu0 %v4362
          %4499 = vmatmul.mubr.f32.gmra.mxu0 %v4356
          %v4500 = vpop.f32.mrf.mxu0
          %v4501 = vadd.f32 %v4431, %v4500
          %v4502 = vpop.f32.mrf.mxu0
          %4503 = vdwg.mxu0
          %v4504 = vmul.f32 %v4501, 0.008
          %v4506 = vsel %vm4163, %v4504, 0
          %4508 = vmatprep.subr.mxu0 0.0
          %4509 = vmatpush1.msra.mxu0 0.0
          %4510 = vmatprep.subr.mxu0 0.0
          %4511 = vmatpush1.msra.mxu0 0.0
          %4512 = vmatprep.subr.mxu0 0.0
          %4513 = vmatpush1.msra.mxu0 0.0
          %4514 = vmatprep.subr.mxu0 0.0
          %4515 = vmatpush1.msra.mxu0 0.0
          %4516 = vmatprep.subr.mxu0 0.0
          %4517 = vmatpush1.msra.mxu0 0.0
          %4518 = vmatprep.subr.mxu0 0.0
          %4519 = vmatpush1.msra.mxu0 0.0
          %4520 = vmatprep.subr.mxu0 0.0
          %4521 = vmatpush1.msra.mxu0 0.0
          %4522 = vmatprep.subr.mxu0 0.0
          %4523 = vmatpush1.msra.mxu0 0.0
          %4524 = vmatprep.subr.mxu0 0.0
          %4525 = vmatpush1.msra.mxu0 0.0
          %4526 = vmatprep.subr.mxu0 0.0
          %4527 = vmatpush1.msra.mxu0 0.0
          %4528 = vmatprep.subr.mxu0 0.0
          %4529 = vmatpush1.msra.mxu0 0.0
          %4530 = vmatprep.subr.mxu0 0.0
          %4531 = vmatpush1.msra.mxu0 0.0
          %4532 = vmatprep.subr.mxu0 0.0
          %4533 = vmatpush1.msra.mxu0 0.0
          %4534 = vmatprep.subr.mxu0 0.0
          %4535 = vmatpush1.msra.mxu0 0.0
          %4536 = vmatprep.subr.mxu0 0.0
          %4537 = vmatpush1.msra.mxu0 0.0
          %4538 = vmatprep.subr.mxu0 %v4169
          %4539 = vmatpush1.msra.mxu0 %v4167
          %4540 = vmatprep.subr.mxu0 0.0
          %4541 = vmatpush2.msra.mxu0 0.0
          %4542 = vmatprep.subr.mxu0 0.0
          %4543 = vmatpush2.msra.mxu0 0.0
          %4544 = vmatprep.subr.mxu0 0.0
          %4545 = vmatpush2.msra.mxu0 0.0
          %4546 = vmatprep.subr.mxu0 0.0
          %4547 = vmatpush2.msra.mxu0 0.0
          %4548 = vmatprep.subr.mxu0 0.0
          %4549 = vmatpush2.msra.mxu0 0.0
          %4550 = vmatprep.subr.mxu0 0.0
          %4551 = vmatpush2.msra.mxu0 0.0
          %4552 = vmatprep.subr.mxu0 0.0
          %4553 = vmatpush2.msra.mxu0 0.0
          %4554 = vmatprep.subr.mxu0 0.0
          %4555 = vmatpush2.msra.mxu0 0.0
          %4556 = vmatprep.subr.mxu0 0.0
          %4557 = vmatpush2.msra.mxu0 0.0
          %4558 = vmatprep.subr.mxu0 0.0
          %4559 = vmatpush2.msra.mxu0 0.0
          %4560 = vmatprep.subr.mxu0 0.0
          %4561 = vmatpush2.msra.mxu0 0.0
          %4562 = vmatprep.subr.mxu0 0.0
          %4563 = vmatpush2.msra.mxu0 0.0
          %4564 = vmatprep.subr.mxu0 0.0
          %4565 = vmatpush2.msra.mxu0 0.0
          %4566 = vmatprep.subr.mxu0 0.0
          %4567 = vmatpush2.msra.mxu0 0.0
          %4568 = vmatprep.subr.mxu0 0.0
          %4569 = vmatpush2.msra.mxu0 0.0
          %4570 = vmatprep.subr.mxu0 0.0
          %4571 = vmatpush2.msra.mxu0 0.0
          %4572 = vmatprep.mubr.f32.mxu0 0.0
          %4573 = vmatmul.mubr.f32.gmra.mxu0 %v4506
          %v4574 = vpop.f32.mrf.mxu0
          %v4575 = vadd.f32 1e-05, %v4574
          %v4576 = vpop.f32.mrf.mxu0
          %v4577 = vadd.f32 1e-05, %v4576
          %4578 = vdwg.mxu0
          %4579 = vmatprep.subr.mxu0 0.0
          %4580 = vmatpush1.msra.mxu0 0.0
          %4581 = vmatprep.subr.mxu0 0.0
          %4582 = vmatpush1.msra.mxu0 0.0
          %4583 = vmatprep.subr.mxu0 0.0
          %4584 = vmatpush1.msra.mxu0 0.0
          %4585 = vmatprep.subr.mxu0 0.0
          %4586 = vmatpush1.msra.mxu0 0.0
          %4587 = vmatprep.subr.mxu0 0.0
          %4588 = vmatpush1.msra.mxu0 0.0
          %4589 = vmatprep.subr.mxu0 0.0
          %4590 = vmatpush1.msra.mxu0 0.0
          %4591 = vmatprep.subr.mxu0 0.0
          %4592 = vmatpush1.msra.mxu0 0.0
          %4593 = vmatprep.subr.mxu0 0.0
          %4594 = vmatpush1.msra.mxu0 0.0
          %4595 = vmatprep.subr.mxu0 0.0
          %4596 = vmatpush1.msra.mxu0 0.0
          %4597 = vmatprep.subr.mxu0 0.0
          %4598 = vmatpush1.msra.mxu0 0.0
          %4599 = vmatprep.subr.mxu0 0.0
          %4600 = vmatpush1.msra.mxu0 0.0
          %4601 = vmatprep.subr.mxu0 0.0
          %4602 = vmatpush1.msra.mxu0 0.0
          %4603 = vmatprep.subr.mxu0 0.0
          %4604 = vmatpush1.msra.mxu0 0.0
          %4605 = vmatprep.subr.mxu0 0.0
          %4606 = vmatpush1.msra.mxu0 0.0
          %4607 = vmatprep.subr.mxu0 0.0
          %4608 = vmatpush1.msra.mxu0 0.0
          %4609 = vmatprep.subr.mxu0 %v4173
          %4610 = vmatpush1.msra.mxu0 %v4171
          %4611 = vmatprep.subr.mxu0 0.0
          %4612 = vmatpush2.msra.mxu0 0.0
          %4613 = vmatprep.subr.mxu0 0.0
          %4614 = vmatpush2.msra.mxu0 0.0
          %4615 = vmatprep.subr.mxu0 0.0
          %4616 = vmatpush2.msra.mxu0 0.0
          %4617 = vmatprep.subr.mxu0 0.0
          %4618 = vmatpush2.msra.mxu0 0.0
          %4619 = vmatprep.subr.mxu0 0.0
          %4620 = vmatpush2.msra.mxu0 0.0
          %4621 = vmatprep.subr.mxu0 0.0
          %4622 = vmatpush2.msra.mxu0 0.0
          %4623 = vmatprep.subr.mxu0 0.0
          %4624 = vmatpush2.msra.mxu0 0.0
          %4625 = vmatprep.subr.mxu0 0.0
          %4626 = vmatpush2.msra.mxu0 0.0
          %4627 = vmatprep.subr.mxu0 0.0
          %4628 = vmatpush2.msra.mxu0 0.0
          %4629 = vmatprep.subr.mxu0 0.0
          %4630 = vmatpush2.msra.mxu0 0.0
          %4631 = vmatprep.subr.mxu0 0.0
          %4632 = vmatpush2.msra.mxu0 0.0
          %4633 = vmatprep.subr.mxu0 0.0
          %4634 = vmatpush2.msra.mxu0 0.0
          %4635 = vmatprep.subr.mxu0 0.0
          %4636 = vmatpush2.msra.mxu0 0.0
          %4637 = vmatprep.subr.mxu0 0.0
          %4638 = vmatpush2.msra.mxu0 0.0
          %4639 = vmatprep.subr.mxu0 0.0
          %4640 = vmatpush2.msra.mxu0 0.0
          %4641 = vmatprep.subr.mxu0 0.0
          %4642 = vmatpush2.msra.mxu0 0.0
          %4643 = vmatprep.mubr.f32.mxu0 0.0
          %4644 = vmatmul.mubr.f32.gmra.mxu0 %v4506
          %v4645 = vpop.f32.mrf.mxu0
          %v4646 = vadd.f32 1e-05, %v4645
          %v4647 = vpop.f32.mrf.mxu0
          %v4648 = vadd.f32 1e-05, %v4647
          %4649 = vdwg.mxu0
          %v4650 = vrsqrt.pop %v4575
          %v4651 = vrsqrt.pop %v4577
          %v4652 = vrsqrt.pop %v4646
          %v4653 = vrsqrt.pop %v4648
          %v4658 = vcombine.low %v4650, %v4651
          %v4659 = vcombine.low %v4652, %v4653
          %v4661 = vunpack.c.l.s4 1983009808
          %v4662 = vunpack.c.0.s8 %v4661
          %v4663 = vlaneseq
          %v4664 = vshrl.u32 %v4663, 7
          %v4665 = vsub.s32 %v4662, %v4664
          %v4666 = vrot.slane %v4658, %v4665
          %v4668 = vunpack.c.l.s4 1983009808
          %v4669 = vunpack.c.0.s8 %v4668
          %v4670 = vlaneseq
          %v4671 = vshrl.u32 %v4670, 7
          %v4672 = vsub.s32 %v4669, %v4671
          %v4673 = vrot.slane %v4659, %v4672
          %v4674 = vcombine.low %v4666, %v4673
          %v4676 = vmul.f32 %v4339, %v4674
          %v4677 = vld [vmem:[%s15] sm:$0xf]
          %v4679 = vlaneseq
          %v4680 = vshrl.u32 %v4679, 7
          %v4681 = vsub.s32 0, %v4680
          %v4682 = vrot.slane %v4677, %v4681
          %v4683 = vlaneseq
          %v4684 = vshrl.u32 %v4683, 7
          %v4685 = vsub.s32 1, %v4684
          %v4686 = vrot.slane %v4677, %v4685
          %v4687 = vlaneseq
          %v4688 = vshrl.u32 %v4687, 7
          %v4689 = vsub.s32 2, %v4688
          %v4690 = vrot.slane %v4677, %v4689
          %v4691 = vlaneseq
          %v4692 = vshrl.u32 %v4691, 7
          %v4693 = vsub.s32 3, %v4692
          %v4694 = vrot.slane %v4677, %v4693
          %v4695 = vcombine.low %v4682, %v4686
          %v4696 = vcombine.low %v4690, %v4694
          %v4698 = vunpack.c.l.s4 1983009808
          %v4699 = vunpack.c.0.s8 %v4698
          %v4700 = vlaneseq
          %v4701 = vshrl.u32 %v4700, 7
          %v4702 = vsub.s32 %v4699, %v4701
          %v4703 = vrot.slane %v4695, %v4702
          %v4705 = vunpack.c.l.s4 1983009808
          %v4706 = vunpack.c.0.s8 %v4705
          %v4707 = vlaneseq
          %v4708 = vshrl.u32 %v4707, 7
          %v4709 = vsub.s32 %v4706, %v4708
          %v4710 = vrot.slane %v4696, %v4709
          %v4711 = vcombine.low %v4703, %v4710
          %v4713 = vmul.f32 %v4676, %v4711
          %v4714 = vld [vmem:[%s16] sm:$0xf]
          %v4716 = vlaneseq
          %v4717 = vshrl.u32 %v4716, 7
          %v4718 = vsub.s32 0, %v4717
          %v4719 = vrot.slane %v4714, %v4718
          %v4720 = vlaneseq
          %v4721 = vshrl.u32 %v4720, 7
          %v4722 = vsub.s32 1, %v4721
          %v4723 = vrot.slane %v4714, %v4722
          %v4724 = vlaneseq
          %v4725 = vshrl.u32 %v4724, 7
          %v4726 = vsub.s32 2, %v4725
          %v4727 = vrot.slane %v4714, %v4726
          %v4728 = vlaneseq
          %v4729 = vshrl.u32 %v4728, 7
          %v4730 = vsub.s32 3, %v4729
          %v4731 = vrot.slane %v4714, %v4730
          %v4732 = vcombine.low %v4719, %v4723
          %v4733 = vcombine.low %v4727, %v4731
          %v4735 = vunpack.c.l.s4 1983009808
          %v4736 = vunpack.c.0.s8 %v4735
          %v4737 = vlaneseq
          %v4738 = vshrl.u32 %v4737, 7
          %v4739 = vsub.s32 %v4736, %v4738
          %v4740 = vrot.slane %v4732, %v4739
          %v4742 = vunpack.c.l.s4 1983009808
          %v4743 = vunpack.c.0.s8 %v4742
          %v4744 = vlaneseq
          %v4745 = vshrl.u32 %v4744, 7
          %v4746 = vsub.s32 %v4743, %v4745
          %v4747 = vrot.slane %v4733, %v4746
          %v4748 = vcombine.low %v4740, %v4747
          %v4750 = vadd.f32 %v4713, %v4748
          %v4751 = vmax.f32 %v4750, 0.0
          %v4753 = vcombine.high %v4751, %v4751
          %v4755 = vunpack.c.l.s4 1983009808
          %v4756 = vunpack.c.0.s8 %v4755
          %v4757 = vlaneseq
          %v4758 = vshrl.u32 %v4757, 7
          %v4759 = vsub.s32 %v4756, %v4758
          %v4760 = vrot.slane %v4751, %v4759
          %v4762 = vunpack.c.l.s4 1983009808
          %v4763 = vunpack.c.0.s8 %v4762
          %v4764 = vlaneseq
          %v4765 = vshrl.u32 %v4764, 7
          %v4766 = vsub.s32 %v4763, %v4765
          %v4767 = vrot.slane %v4753, %v4766
          %v4768 = vcombine.high %v4760, %v4760
          %v4769 = vcombine.high %v4767, %v4767
          %v4774 = vpack.c.bf16 %v4760, %v4760
          %v4775 = vpack.c.bf16 %v4768, %v4768
          %v4776 = vpack.c.bf16 %v4767, %v4767
          %v4777 = vpack.c.bf16 %v4769, %v4769
          %v4778 = vld [vmem:[%s17] sm:$0xf]
          %v4779 = vld [vmem:[%s17 + $0x4] sm:$0xf]
          %v4780 = vld [vmem:[%s17 + $0x8] sm:$0xf]
          %v4781 = vld [vmem:[%s17 + $0xc] sm:$0xf]
          %v4782 = vld [vmem:[%s17 + $0x10] sm:$0xf]
          %v4783 = vld [vmem:[%s17 + $0x14] sm:$0xf]
          %v4784 = vld [vmem:[%s17 + $0x18] sm:$0xf]
          %v4785 = vld [vmem:[%s17 + $0x1c] sm:$0xf]
          %v4786 = vld [vmem:[%s17 + $0x20] sm:$0xf]
          %v4787 = vld [vmem:[%s17 + $0x24] sm:$0xf]
          %v4788 = vld [vmem:[%s17 + $0x28] sm:$0xf]
          %v4789 = vld [vmem:[%s17 + $0x2c] sm:$0xf]
          %v4790 = vld [vmem:[%s17 + $0x30] sm:$0xf]
          %v4791 = vld [vmem:[%s17 + $0x34] sm:$0xf]
          %v4792 = vld [vmem:[%s17 + $0x38] sm:$0xf]
          %v4793 = vld [vmem:[%s17 + $0x3c] sm:$0xf]
          %v4794 = vld [vmem:[%s17 + $0x40] sm:$0xf]
          %v4795 = vld [vmem:[%s17 + $0x44] sm:$0xf]
          %v4796 = vld [vmem:[%s17 + $0x48] sm:$0xf]
          %v4797 = vld [vmem:[%s17 + $0x4c] sm:$0xf]
          %v4798 = vld [vmem:[%s17 + $0x50] sm:$0xf]
          %v4799 = vld [vmem:[%s17 + $0x54] sm:$0xf]
          %v4800 = vld [vmem:[%s17 + $0x58] sm:$0xf]
          %v4801 = vld [vmem:[%s17 + $0x5c] sm:$0xf]
          %v4802 = vld [vmem:[%s17 + $0x60] sm:$0xf]
          %v4803 = vld [vmem:[%s17 + $0x64] sm:$0xf]
          %v4804 = vld [vmem:[%s17 + $0x68] sm:$0xf]
          %v4805 = vld [vmem:[%s17 + $0x6c] sm:$0xf]
          %v4806 = vld [vmem:[%s17 + $0x70] sm:$0xf]
          %v4807 = vld [vmem:[%s17 + $0x74] sm:$0xf]
          %v4808 = vld [vmem:[%s17 + $0x78] sm:$0xf]
          %v4809 = vld [vmem:[%s17 + $0x7c] sm:$0xf]
          %v4810 = vld [vmem:[%s17 + $0x80] sm:$0xf]
          %v4811 = vld [vmem:[%s17 + $0x84] sm:$0xf]
          %v4812 = vld [vmem:[%s17 + $0x88] sm:$0xf]
          %v4813 = vld [vmem:[%s17 + $0x8c] sm:$0xf]
          %v4814 = vld [vmem:[%s17 + $0x90] sm:$0xf]
          %v4815 = vld [vmem:[%s17 + $0x94] sm:$0xf]
          %v4816 = vld [vmem:[%s17 + $0x98] sm:$0xf]
          %v4817 = vld [vmem:[%s17 + $0x9c] sm:$0xf]
          %v4818 = vld [vmem:[%s17 + $0xa0] sm:$0xf]
          %v4819 = vld [vmem:[%s17 + $0xa4] sm:$0xf]
          %v4820 = vld [vmem:[%s17 + $0xa8] sm:$0xf]
          %v4821 = vld [vmem:[%s17 + $0xac] sm:$0xf]
          %v4822 = vld [vmem:[%s17 + $0xb0] sm:$0xf]
          %v4823 = vld [vmem:[%s17 + $0xb4] sm:$0xf]
          %v4824 = vld [vmem:[%s17 + $0xb8] sm:$0xf]
          %v4825 = vld [vmem:[%s17 + $0xbc] sm:$0xf]
          %v4826 = vld [vmem:[%s17 + $0xc0] sm:$0xf]
          %v4827 = vld [vmem:[%s17 + $0xc4] sm:$0xf]
          %v4828 = vld [vmem:[%s17 + $0xc8] sm:$0xf]
          %v4829 = vld [vmem:[%s17 + $0xcc] sm:$0xf]
          %v4830 = vld [vmem:[%s17 + $0xd0] sm:$0xf]
          %v4831 = vld [vmem:[%s17 + $0xd4] sm:$0xf]
          %v4832 = vld [vmem:[%s17 + $0xd8] sm:$0xf]
          %v4833 = vld [vmem:[%s17 + $0xdc] sm:$0xf]
          %v4834 = vld [vmem:[%s17 + $0xe0] sm:$0xf]
          %v4835 = vld [vmem:[%s17 + $0xe4] sm:$0xf]
          %v4836 = vld [vmem:[%s17 + $0xe8] sm:$0xf]
          %v4837 = vld [vmem:[%s17 + $0xec] sm:$0xf]
          %v4838 = vld [vmem:[%s17 + $0xf0] sm:$0xf]
          %v4839 = vld [vmem:[%s17 + $0xf4] sm:$0xf]
          %v4840 = vld [vmem:[%s17 + $0xf8] sm:$0x3]
          %v4841 = vld [vmem:[%s18] sm:$0x1]
          %v4843 = vlaneseq
          %v4844 = vshrl.u32 %v4843, 7
          %v4845 = vsub.s32 0, %v4844
          %v4846 = vrot.slane %v4841, %v4845
          %v4911 = vunpack.c.l.b16 %v4778
          %v4912 = vunpack.c.l.b16 %v4779
          %v4913 = vunpack.c.l.b16 %v4780
          %v4914 = vunpack.c.l.b16 %v4781
          %v4915 = vunpack.c.l.b16 %v4782
          %v4916 = vunpack.c.l.b16 %v4783
          %v4917 = vunpack.c.l.b16 %v4784
          %v4918 = vunpack.c.l.b16 %v4785
          %v4919 = vunpack.c.l.b16 %v4786
          %v4920 = vunpack.c.l.b16 %v4787
          %v4921 = vunpack.c.l.b16 %v4788
          %v4922 = vunpack.c.l.b16 %v4789
          %v4923 = vunpack.c.l.b16 %v4790
          %v4924 = vunpack.c.l.b16 %v4791
          %v4925 = vunpack.c.l.b16 %v4792
          %v4926 = vunpack.c.l.b16 %v4793
          %v4927 = vunpack.c.l.b16 %v4794
          %v4928 = vunpack.c.l.b16 %v4795
          %v4929 = vunpack.c.l.b16 %v4796
          %v4930 = vunpack.c.l.b16 %v4797
          %v4931 = vunpack.c.l.b16 %v4798
          %v4932 = vunpack.c.l.b16 %v4799
          %v4933 = vunpack.c.l.b16 %v4800
          %v4934 = vunpack.c.l.b16 %v4801
          %v4935 = vunpack.c.l.b16 %v4802
          %v4936 = vunpack.c.l.b16 %v4803
          %v4937 = vunpack.c.l.b16 %v4804
          %v4938 = vunpack.c.l.b16 %v4805
          %v4939 = vunpack.c.l.b16 %v4806
          %v4940 = vunpack.c.l.b16 %v4807
          %v4941 = vunpack.c.l.b16 %v4808
          %v4942 = vunpack.c.l.b16 %v4809
          %v4943 = vunpack.c.l.b16 %v4810
          %v4944 = vunpack.c.l.b16 %v4811
          %v4945 = vunpack.c.l.b16 %v4812
          %v4946 = vunpack.c.l.b16 %v4813
          %v4947 = vunpack.c.l.b16 %v4814
          %v4948 = vunpack.c.l.b16 %v4815
          %v4949 = vunpack.c.l.b16 %v4816
          %v4950 = vunpack.c.l.b16 %v4817
          %v4951 = vunpack.c.l.b16 %v4818
          %v4952 = vunpack.c.l.b16 %v4819
          %v4953 = vunpack.c.l.b16 %v4820
          %v4954 = vunpack.c.l.b16 %v4821
          %v4955 = vunpack.c.l.b16 %v4822
          %v4956 = vunpack.c.l.b16 %v4823
          %v4957 = vunpack.c.l.b16 %v4824
          %v4958 = vunpack.c.l.b16 %v4825
          %v4959 = vunpack.c.l.b16 %v4826
          %v4960 = vunpack.c.l.b16 %v4827
          %v4961 = vunpack.c.l.b16 %v4828
          %v4962 = vunpack.c.l.b16 %v4829
          %v4963 = vunpack.c.l.b16 %v4830
          %v4964 = vunpack.c.l.b16 %v4831
          %v4965 = vunpack.c.l.b16 %v4832
          %v4966 = vunpack.c.l.b16 %v4833
          %v4967 = vunpack.c.l.b16 %v4834
          %v4968 = vunpack.c.l.b16 %v4835
          %v4969 = vunpack.c.l.b16 %v4836
          %v4970 = vunpack.c.l.b16 %v4837
          %v4971 = vunpack.c.l.b16 %v4838
          %v4972 = vunpack.c.l.b16 %v4839
          %v4973 = vunpack.c.l.b16 %v4840
          %v4974 = vpack.c.b16 %v4912, %v4911
          %v4975 = vpack.c.b16 %v4914, %v4913
          %v4976 = vpack.c.b16 %v4916, %v4915
          %v4977 = vpack.c.b16 %v4918, %v4917
          %v4978 = vpack.c.b16 %v4920, %v4919
          %v4979 = vpack.c.b16 %v4922, %v4921
          %v4980 = vpack.c.b16 %v4924, %v4923
          %v4981 = vpack.c.b16 %v4926, %v4925
          %v4982 = vpack.c.b16 %v4928, %v4927
          %v4983 = vpack.c.b16 %v4930, %v4929
          %v4984 = vpack.c.b16 %v4932, %v4931
          %v4985 = vpack.c.b16 %v4934, %v4933
          %v4986 = vpack.c.b16 %v4936, %v4935
          %v4987 = vpack.c.b16 %v4938, %v4937
          %v4988 = vpack.c.b16 %v4940, %v4939
          %v4989 = vpack.c.b16 %v4942, %v4941
          %v4990 = vpack.c.b16 %v4944, %v4943
          %v4991 = vpack.c.b16 %v4946, %v4945
          %v4992 = vpack.c.b16 %v4948, %v4947
          %v4993 = vpack.c.b16 %v4950, %v4949
          %v4994 = vpack.c.b16 %v4952, %v4951
          %v4995 = vpack.c.b16 %v4954, %v4953
          %v4996 = vpack.c.b16 %v4956, %v4955
          %v4997 = vpack.c.b16 %v4958, %v4957
          %v4998 = vpack.c.b16 %v4960, %v4959
          %v4999 = vpack.c.b16 %v4962, %v4961
          %v5000 = vpack.c.b16 %v4964, %v4963
          %v5001 = vpack.c.b16 %v4966, %v4965
          %v5002 = vpack.c.b16 %v4968, %v4967
          %v5003 = vpack.c.b16 %v4970, %v4969
          %v5004 = vpack.c.b16 %v4972, %v4971
          %v5005 = vpack.c.b16 %v4973, %v4973
          %v5038 = vsel %vm4009, %v4777, 0
          %v5041 = vsel %vm3912, %v5005, 0
          %5043 = vmatprep.subr.bf16.mxu0 0
          %5044 = vmatpush1.bf16.msra.mxu0 %v4981
          %5045 = vmatprep.subr.bf16.mxu0 0
          %5046 = vmatpush1.bf16.msra.mxu0 %v4980
          %5047 = vmatprep.subr.bf16.mxu0 0
          %5048 = vmatpush1.bf16.msra.mxu0 %v4979
          %5049 = vmatprep.subr.bf16.mxu0 0
          %5050 = vmatpush1.bf16.msra.mxu0 %v4978
          %5051 = vmatprep.subr.bf16.mxu0 0
          %5052 = vmatpush1.bf16.msra.mxu0 %v4977
          %5053 = vmatprep.subr.bf16.mxu0 0
          %5054 = vmatpush1.bf16.msra.mxu0 %v4976
          %5055 = vmatprep.subr.bf16.mxu0 0
          %5056 = vmatpush1.bf16.msra.mxu0 %v4975
          %5057 = vmatprep.subr.bf16.mxu0 0
          %5058 = vmatpush1.bf16.msra.mxu0 %v4974
          %5059 = vmatprep.subr.bf16.mxu0 0
          %5060 = vmatpush2.bf16.msra.mxu0 %v4989
          %5061 = vmatprep.subr.bf16.mxu0 0
          %5062 = vmatpush2.bf16.msra.mxu0 %v4988
          %5063 = vmatprep.subr.bf16.mxu0 0
          %5064 = vmatpush2.bf16.msra.mxu0 %v4987
          %5065 = vmatprep.subr.bf16.mxu0 0
          %5066 = vmatpush2.bf16.msra.mxu0 %v4986
          %5067 = vmatprep.subr.bf16.mxu0 0
          %5068 = vmatpush2.bf16.msra.mxu0 %v4985
          %5069 = vmatprep.subr.bf16.mxu0 0
          %5070 = vmatpush2.bf16.msra.mxu0 %v4984
          %5071 = vmatprep.subr.bf16.mxu0 0
          %5072 = vmatpush2.bf16.msra.mxu0 %v4983
          %5073 = vmatprep.subr.bf16.mxu0 0
          %5074 = vmatpush2.bf16.msra.mxu0 %v4982
          %5075 = vmatprep.mubr.bf16.mxu0 %v4775
          %5076 = vmatmul.mubr.bf16.gmra.mxu0 %v4774
          %v5077 = vpop.f32.mrf.mxu0
          %v5078 = vadd.f32 %v4846, %v5077
          %v5079 = vpop.f32.mrf.mxu0
          %v5080 = vpop.f32.mrf.mxu0
          %v5081 = vpop.f32.mrf.mxu0
          %5082 = vdwg.mxu0
          %5083 = vmatprep.subr.bf16.mxu0 0
          %5084 = vmatpush1.bf16.msra.mxu0 %v4997
          %5085 = vmatprep.subr.bf16.mxu0 0
          %5086 = vmatpush1.bf16.msra.mxu0 %v4996
          %5087 = vmatprep.subr.bf16.mxu0 0
          %5088 = vmatpush1.bf16.msra.mxu0 %v4995
          %5089 = vmatprep.subr.bf16.mxu0 0
          %5090 = vmatpush1.bf16.msra.mxu0 %v4994
          %5091 = vmatprep.subr.bf16.mxu0 0
          %5092 = vmatpush1.bf16.msra.mxu0 %v4993
          %5093 = vmatprep.subr.bf16.mxu0 0
          %5094 = vmatpush1.bf16.msra.mxu0 %v4992
          %5095 = vmatprep.subr.bf16.mxu0 0
          %5096 = vmatpush1.bf16.msra.mxu0 %v4991
          %5097 = vmatprep.subr.bf16.mxu0 0
          %5098 = vmatpush1.bf16.msra.mxu0 %v4990
          %5099 = vmatprep.subr.bf16.mxu0 0
          %5100 = vmatpush2.bf16.msra.mxu0 %v5041
          %5101 = vmatprep.subr.bf16.mxu0 0
          %5102 = vmatpush2.bf16.msra.mxu0 %v5004
          %5103 = vmatprep.subr.bf16.mxu0 0
          %5104 = vmatpush2.bf16.msra.mxu0 %v5003
          %5105 = vmatprep.subr.bf16.mxu0 0
          %5106 = vmatpush2.bf16.msra.mxu0 %v5002
          %5107 = vmatprep.subr.bf16.mxu0 0
          %5108 = vmatpush2.bf16.msra.mxu0 %v5001
          %5109 = vmatprep.subr.bf16.mxu0 0
          %5110 = vmatpush2.bf16.msra.mxu0 %v5000
          %5111 = vmatprep.subr.bf16.mxu0 0
          %5112 = vmatpush2.bf16.msra.mxu0 %v4999
          %5113 = vmatprep.subr.bf16.mxu0 0
          %5114 = vmatpush2.bf16.msra.mxu0 %v4998
          %5115 = vmatprep.mubr.bf16.mxu0 %v5038
          %5116 = vmatmul.mubr.bf16.gmra.mxu0 %v4776
          %v5117 = vpop.f32.mrf.mxu0
          %v5118 = vadd.f32 %v5078, %v5117
          %v5119 = vpop.f32.mrf.mxu0
          %v5120 = vpop.f32.mrf.mxu0
          %v5121 = vpop.f32.mrf.mxu0
          %5122 = vdwg.mxu0
          %vm5123 = vcmask 74752
          %v5124 = vsel %vm5123, %v5118, -inf
          %5125 = vmax.xlane.f32.xlu0 %v5124
          %v5126 = vpop.xlane.xlu0 %5125
          %v5127 = vsub.f32 %v5118, %v5126
          %v5128 = vmul.f32 %v5127, 1.442695
          %v5129 = vpow.pop %v5128
          %v5130 = vsel %vm5123, %v5129, 0.0
          %5131 = vadd.xlane.f32.xlu0 %v5130
          %v5132 = vpop.xlane.xlu0 %5131
          %v5133 = vlog2.pop %v5132
          %v5134 = vmul.f32 %v5133, 0.6931472
          %v5135 = vsub.f32 %v5127, %v5134
          %5136 = vst.msk [vmem:[#allocation3] sm:$0x3] %vm5123, %v5135
        $region104: #{a_call__.3} parent=95 // pred_fallthru
          _
        // Predicated region
        $region105: #{a_call__.3} parent=95 // pred_check
          %p5137 = pneg %p453
        $region106: #{a_call__.3} parent=95 // pred_check_branch
          %5139 = sbr.rel (%p5137) target = $region108
        $region107: #{a_call__.3} parent=95 // pred_region
          %s5141 = ssub.s32 32, 32
          %5142 = vsyncadd [#allocation4], %s5141
          %s5144 = sshll.u32 [#allocation3], 4
          %s5145 = int_to_ptr.vmem [resolvable:$true] %s5144
          %5147 = dma.vmem_to_hbm [thread:$0]  %s5145, 32, %s19, [#allocation4]
        $region108: #{a_call__.3} parent=95 // pred_fallthru
          _
        // Predicated region
        $region109: #{a_call__.3} parent=95 // pred_check
          %p5148 = pneg %p453
        $region110: #{a_call__.3} parent=95 // pred_check_branch
          %5150 = sbr.rel (%p5148) target = $region112
        $region111: #{a_call__.3} parent=95 // pred_region
          %5151 = dma.done [#allocation4], 32
        $region112: #{a_call__.3} parent=95 // pred_fallthru
          _
      $region96: #{a_call__.3} parent=5 // pred_fallthru
        _
      %p5152 = scmp.le.s32.totalorder 2, %s26
      // Predicated region
      $region113: #{a_call__.3} parent=5 // pred_check
        %p5153 = pneg %p5152
      $region114: #{a_call__.3} parent=5 // pred_check_branch
        %5155 = sbr.rel (%p5153) target = $region116
      $region115: #{a_call__.3} parent=5 // pred_region
        %s5156 = ssub.s32 %s26, 2
      $region116: #{a_call__.3} parent=5 // pred_fallthru
        _
    $region6: #{a_call__.3} parent=1 // loop_footer
      %s30 = sadd.s32 1, %s26
    $region7: #{a_call__.3} parent=1 // loop_footer_branch
      %25 = sbr.rel target = $region3
    $region8: #{a_call__.3} parent=1 // loop_exit
      _
    %5157 = vsyncpa [#allocation4], 1
    %s5158 = scalar_lea.sflag [#allocation4], 1
    %5159 = vsyncpa %s5158, 1

</llo_original>
